<compile_context>
chip_gen: v7x
topology: tpu7x:2x2x1
jax: 0.10.0
libtpu: 0.0.40
codegen_flags: <defaults>
</compile_context>

<pallas_src>
import jax
import jax.numpy as jnp
from jax import lax
from jax.experimental import pallas as pl
from jax.experimental.pallas import tpu as pltpu

LANE = 128
_ACC_BUDGET_ELEMS = 32 * 1024      # f32 result tile <= ~128 KiB


def _round_up(x, m):
    return ((x + m - 1) // m) * m


def _vmem_limit_bytes():
    # ~75% of physical VMEM: ~96 MiB on v5e/v6e (128 MiB), ~48 MiB on v7x (64 MiB).
    try:
        cap = int(pltpu.get_tpu_info().vmem_capacity_bytes)
    except Exception:
        cap = 64 * 1024 * 1024
    return max(32 * 1024 * 1024, min((cap * 3) // 4, 100 * 1024 * 1024))


# ---------------------------------------------------------------------------
# Pallas kernel: 3x3 conv (+bias) (+residual / fused 1x1 projection) (+ReLU)
# One im2col MXU contraction per row tile (K = 9*Cin).
# ---------------------------------------------------------------------------
def _make_conv3x3_kernel(*, stride, dilation, relu, res_mode):
    """res_mode in {"none", "add", "project"}."""

    def kernel(*refs):
        if res_mode == "none":
            x_ref, w_ref, b_ref, o_ref = refs
        elif res_mode == "add":
            x_ref, w_ref, b_ref, r_ref, o_ref = refs
        else:  # "project"
            x_ref, w_ref, b_ref, rx_ref, wd_ref, bd_ref, o_ref = refs

        _, TH, Wo, Cout = o_ref.shape
        Cin = x_ref.shape[-1]
        d, s = dilation, stride
        # First padded-input row needed by this output row-tile.
        r0 = pl.program_id(1) * (TH * s)

        # im2col: gather the 9 (TH, Wo, Cin) tap windows and concatenate them
        # along the channel axis (lane-aligned: Cin is a multiple of 128), so
        # the whole tile is ONE MXU contraction with K = 9*Cin instead of nine
        # K = Cin matmuls plus eight f32 VPU accumulator passes.
        taps = []
        for kh in range(3):
            h0 = r0 + kh * d
            if s == 1:
                rows = x_ref[0, pl.ds(h0, TH), :, :]            # (TH, Wp, Cin)
            else:
                rows = x_ref[0, pl.ds(h0, TH, stride=s), :, :]
            for kw in range(3):
                w0 = kw * d
                if s == 1:
                    taps.append(rows[:, w0:w0 + Wo, :])
                else:
                    taps.append(lax.slice(
                        rows, (0, w0, 0),
                        (TH, w0 + (Wo - 1) * s + 1, Cin), (1, s, 1)))
        patch = jnp.concatenate(taps, axis=-1).reshape(TH * Wo, 9 * Cin)

        y = jnp.dot(patch, w_ref[...], preferred_element_type=jnp.float32)
        y = y + b_ref[...]                                      # folded-BN bias

        if res_mode == "add":
            y = y + r_ref[0].reshape(TH * Wo, Cout).astype(jnp.float32)
        elif res_mode == "project":
            rx = rx_ref[0].reshape(TH * Wo, rx_ref.shape[-1])
            y = y + jnp.dot(rx, wd_ref[...],
                            preferred_element_type=jnp.float32) + bd_ref[...]
        if relu:
            y = jnp.maximum(y, 0.0)
        o_ref[0] = y.reshape(TH, Wo, Cout).astype(o_ref.dtype)

    return kernel


def conv3x3_block(x_nhwc, w_k, bias, *, stride, dilation, relu=True,
                  residual=None, proj=None, out_dtype=jnp.bfloat16):
    """3x3 conv (stride s, dilation d, padding d) + bias (+residual) (+ReLU).

    x_nhwc   : (N, H, W, Cin) bf16, channel-padded, NOT spatially padded.
    w_k      : (9*Cin, Cout) bf16, tap-major im2col layout, BN scale folded in.
    bias     : (1, Cout) f32 (folded BN bias).
    residual : (N, Ho, Wo, Cout) added before ReLU (identity shortcut), or None.
    proj     : (x_res (N,Ho,Wo,Cres), wd (Cres,Cout), bd (1,Cout)) fused
               1x1-conv downsample shortcut, or None.
    """
    N, H, W, Cin = x_nhwc.shape
    Cout = w_k.shape[-1]
    assert w_k.shape[0] == 9 * Cin
    d, s = dilation, stride
    Ho = (H - 1) // s + 1
    Wo = (W - 1) // s + 1

    # Row tile capped so the f32 result tile stays small; ragged Ho handled by
    # a cdiv grid (out-of-range rows of the last block are dropped on write).
    TH = max(1, min(Ho, _ACC_BUDGET_ELEMS // max(1, Wo * Cout)))
    n_rt = pl.cdiv(Ho, TH)

    # Spatial zero-padding.  Enough bottom rows are added that even the last
    # (possibly partial) row tile only reads in-bounds VMEM.
    rows_needed = (n_rt * TH - 1) * s + 2 * d + 1
    pad_bot = max(d, rows_needed - H - d)
    x_pad = jnp.pad(x_nhwc, ((0, 0), (d, pad_bot), (d, d), (0, 0)))
    Hp, Wp = H + d + pad_bot, W + 2 * d
    grid = (N, n_rt)

    def _build(single_buffer_consts):
        cpm = ({"pipeline_mode": pl.Buffered(1)} if single_buffer_consts else {})
        in_specs = [
            pl.BlockSpec((1, Hp, Wp, Cin), lambda n, r: (n, 0, 0, 0)),
            pl.BlockSpec((9 * Cin, Cout), lambda n, r: (0, 0), **cpm),
            pl.BlockSpec((1, Cout), lambda n, r: (0, 0), **cpm),
        ]
        args = [x_pad, w_k, bias]
        if residual is not None:
            res_mode = "add"
            in_specs.append(pl.BlockSpec((1, TH, Wo, Cout),
                                         lambda n, r: (n, r, 0, 0)))
            args.append(residual)
        elif proj is not None:
            res_mode = "project"
            xr, wd, bd = proj
            Cres = xr.shape[-1]
            in_specs += [
                pl.BlockSpec((1, TH, Wo, Cres), lambda n, r: (n, r, 0, 0)),
                pl.BlockSpec((Cres, Cout), lambda n, r: (0, 0), **cpm),
                pl.BlockSpec((1, Cout), lambda n, r: (0, 0), **cpm),
            ]
            args += [xr, wd, bd]
        else:
            res_mode = "none"

        kernel = _make_conv3x3_kernel(stride=s, dilation=d, relu=relu,
                                      res_mode=res_mode)
        call = pl.pallas_call(
            kernel,
            out_shape=jax.ShapeDtypeStruct((N, Ho, Wo, Cout), out_dtype),
            grid=grid,
            in_specs=in_specs,
            out_specs=pl.BlockSpec((1, TH, Wo, Cout), lambda n, r: (n, r, 0, 0)),
            compiler_params=pltpu.CompilerParams(
                # Megacore (v7x) splits the batch axis; row tiles are a serial
                # loop so both cores never re-DMA the same sample's image.
                dimension_semantics=("parallel", "arbitrary"),
                vmem_limit_bytes=_vmem_limit_bytes()),
        )
        return call, args

    try:
        call, args = _build(True)
        return call(*args)
    except Exception:
        # pl.Buffered(1) single-buffering of grid-invariant operands not
        # available on this jax build -> fall back to default buffering.
        call, args = _build(False)
        return call(*args)


# ---------------------------------------------------------------------------
# Parameter prep (BN folding, im2col weight layout, channel padding)
# ---------------------------------------------------------------------------
def fold_bn(gamma, beta, mean, var, eps=1e-5):
    scale = gamma / jnp.sqrt(var + eps)
    bias = beta - mean * scale
    return scale, bias


def _prep_conv3x3_w(w_oihw, scale, cin_pad, cout_pad):
    """(Cout,Cin,3,3) -> (9*Cin_pad, Cout_pad) bf16, BN scale folded, tap-major
    rows matching the kernel's kh/kw im2col concat order."""
    cout, cin = w_oihw.shape[:2]
    w = jnp.transpose(w_oihw, (2, 3, 1, 0)).reshape(9, cin, cout)  # (kh*3+kw,Ci,Co)
    w = w * scale.reshape(1, 1, cout)
    w = jnp.pad(w, ((0, 0), (0, cin_pad - cin), (0, cout_pad - cout)))
    return w.reshape(9 * cin_pad, cout_pad).astype(jnp.bfloat16)


def _pad_bias(bias, c_pad):
    c = bias.shape[0]
    return jnp.pad(bias, (0, c_pad - c)).reshape(1, c_pad).astype(jnp.float32)


def init_params(key, in_channels, channels, stride):
    out_channels = channels  # expansion = 1
    keys = jax.random.split(key, 6)

    def conv_w(k, cout, cin, kh, kw):
        fan_in = cin * kh * kw
        return jax.random.normal(k, (cout, cin, kh, kw),
                                 jnp.float32) / jnp.sqrt(fan_in)

    def bn_params(k, c):
        k1, k2, k3, k4 = jax.random.split(k, 4)
        gamma = jax.random.uniform(k1, (c,), jnp.float32, 0.5, 1.5)
        beta = jax.random.normal(k2, (c,), jnp.float32) * 0.1
        mean = jax.random.normal(k3, (c,), jnp.float32) * 0.1
        var = jax.random.uniform(k4, (c,), jnp.float32, 0.5, 1.5)
        return gamma, beta, mean, var

    p = {
        "w1": conv_w(keys[0], channels, in_channels, 3, 3),
        "bn1": bn_params(keys[1], channels),
        "w2": conv_w(keys[2], channels, channels, 3, 3),
        "bn2": bn_params(keys[3], channels),
        "has_downsample": (stride != 1) or (in_channels != out_channels),
    }
    if p["has_downsample"]:
        p["wd"] = conv_w(keys[4], out_channels, in_channels, 1, 1)
        p["bnd"] = bn_params(keys[5], out_channels)
    return p


# ---------------------------------------------------------------------------
# BasicBlock_2 forward (NCHW in / NCHW out, like the PyTorch module)
# ---------------------------------------------------------------------------
def basicblock2_forward(x_nchw, p, stride=1, dilation=1):
    N, Cin, H, W = x_nchw.shape
    channels = p["w1"].shape[0]
    out_channels = channels
    cin_p = _round_up(Cin, LANE)
    cmid_p = _round_up(channels, LANE)
    cout_p = _round_up(out_channels, LANE)

    # NCHW -> NHWC (channels on the lane dim), channel-pad, bf16.
    # TODO(synk): for stacked blocks keep activations NHWC/bf16 end-to-end and
    #             drop these boundary transposes entirely.
    x = jnp.transpose(x_nchw, (0, 2, 3, 1))
    x = jnp.pad(x, ((0, 0), (0, 0), (0, 0), (0, cin_p - Cin))).astype(jnp.bfloat16)

    s1, b1 = fold_bn(*p["bn1"])
    s2, b2 = fold_bn(*p["bn2"])
    w1 = _prep_conv3x3_w(p["w1"], s1, cin_p, cmid_p)
    w2 = _prep_conv3x3_w(p["w2"], s2, cmid_p, cout_p)
    b1p = _pad_bias(b1, cmid_p)
    b2p = _pad_bias(b2, cout_p)

    # conv1 + bn1 + relu (stride & dilation handled inside the kernel).
    out1 = conv3x3_block(x, w1, b1p, stride=stride, dilation=dilation,
                         relu=True, out_dtype=jnp.bfloat16)

    # Residual branch, fused into the second kernel's epilogue.
    residual, proj = None, None
    if p["has_downsample"]:
        sd, bd = fold_bn(*p["bnd"])
        wd = (p["wd"][:, :, 0, 0] * sd[:, None]).T               # (Cin, Cout)
        wd = jnp.pad(wd, ((0, cin_p - Cin), (0, cout_p - out_channels)))
        wd = wd.astype(jnp.bfloat16)
        bdp = _pad_bias(bd, cout_p)
        # TODO(synk): for stride>1 the shortcut decimation still happens in XLA;
        #             a fused strided pl.ds read of x inside the second kernel
        #             would remove this extra HBM pass.
        xr = x if stride == 1 else x[:, ::stride, ::stride, :]
        proj = (xr, wd, bdp)
    else:
        residual = x  # identity (stride==1 and Cin==Cout here)

    # conv2 + bn2 + residual add (+ fused 1x1 downsample) + relu, bf16 out.
    out2 = conv3x3_block(out1, w2, b2p, stride=1, dilation=dilation,
                         relu=True, residual=residual, proj=proj,
                         out_dtype=jnp.bfloat16)

    out2 = out2[:, :, :, :out_channels]                 # bf16 epilogue
    return jnp.transpose(out2, (0, 3, 1, 2)).astype(jnp.float32)


# ---------------------------------------------------------------------------
# Pure-JAX reference (mirrors the PyTorch forward, eval-mode BN, f32)
# ---------------------------------------------------------------------------
def ref_forward(x_nchw, p, stride=1, dilation=1, eps=1e-5):
    def conv2d(x, w, stride=1, padding=0, dilation=1):
        return lax.conv_general_dilated(
            x, w, window_strides=(stride, stride),
            padding=[(padding, padding), (padding, padding)],
            rhs_dilation=(dilation, dilation),
            dimension_numbers=("NCHW", "OIHW", "NCHW"),
            precision=lax.Precision.HIGHEST)

    def bn(x, params):
        gamma, beta, mean, var = params
        inv = gamma / jnp.sqrt(var + eps)
        return ((x - mean[None, :, None, None]) * inv[None, :, None, None]
                + beta[None, :, None, None])

    out = jax.nn.relu(bn(conv2d(x_nchw, p["w1"], stride=stride,
                                padding=dilation, dilation=dilation), p["bn1"]))
    out = bn(conv2d(out, p["w2"], stride=1,
                    padding=dilation, dilation=dilation), p["bn2"])
    if p["has_downsample"]:
        res = bn(conv2d(x_nchw, p["wd"], stride=stride), p["bnd"])
    else:
        res = x_nchw
    return jax.nn.relu(out + res)


if __name__ == "__main__":
    key = jax.random.PRNGKey(0)
    configs = [
        # projected 1x1 shortcut (in_channels != channels)
        dict(N=2, in_channels=16, channels=32, H=16, W=16, stride=1, dilation=1),
        # identity shortcut, dilated conv
        dict(N=2, in_channels=32, channels=32, H=16, W=16, stride=1, dilation=2),
        # identity shortcut, Ho not divisible by the row tile (ragged last tile)
        dict(N=2, in_channels=32, channels=32, H=24, W=24, stride=1, dilation=1),
    ]
    for cfg in configs:
        kx, kp, key = jax.random.split(key, 3)
        x = jax.random.normal(
            kx, (cfg["N"], cfg["in_channels"], cfg["H"], cfg["W"]), jnp.float32)
        params = init_params(kp, cfg["in_channels"], cfg["channels"], cfg["stride"])

        out = basicblock2_forward(x, params, stride=cfg["stride"],
                                  dilation=cfg["dilation"])
        out = jax.block_until_ready(out)

        ref = ref_forward(x, params, stride=cfg["stride"], dilation=cfg["dilation"])
        assert out.shape == ref.shape, (out.shape, ref.shape)
        # bf16 weights/activations with f32 accumulation vs f32 reference.
        assert jnp.allclose(out, ref, atol=5e-2, rtol=5e-2), \
            float(jnp.max(jnp.abs(out - ref)))

    print("KERNEL_OK")
</pallas_src>

<mosaic_0001>
module attributes {stable_mosaic.version = 11 : i64} {
  func.func @kernel(%arg0: i32, %arg1: i32, %arg2: memref<1x18x18x128xbf16, #tpu.memory_space<vmem>>, %arg3: memref<1152x128xbf16, #tpu.memory_space<vmem>>, %arg4: memref<1x128xf32, #tpu.memory_space<vmem>>, %arg5: memref<1x16x16x128xbf16, #tpu.memory_space<vmem>>) attributes {dimension_semantics = [#tpu.dimension_semantics<parallel>, #tpu.dimension_semantics<arbitrary>], iteration_bounds = array<i64: 2, 1>, scalar_prefetch = 0 : i64, scratch_operands = 0 : i64, tpu.core_type = #tpu.core_type<tc>, window_params = [{transform_indices = @transform_0, window_bounds = array<i64: 1, 18, 18, 128>}, {pipeline_mode = #tpu.pipeline_mode<synchronous>, transform_indices = @transform_1, window_bounds = array<i64: 1152, 128>}, {pipeline_mode = #tpu.pipeline_mode<synchronous>, transform_indices = @transform_2, window_bounds = array<i64: 1, 128>}, {transform_indices = @transform_3, window_bounds = array<i64: 1, 16, 16, 128>}]} {
    %c16_i32 = arith.constant 16 : i32
    %0 = arith.muli %arg1, %c16_i32 : i32
    %c0_i32 = arith.constant 0 : i32
    %1 = arith.addi %0, %c0_i32 : i32
    %c0 = arith.constant 0 : index
    %2 = arith.index_cast %1 : i32 to index
    %c0_0 = arith.constant 0 : index
    %c0_1 = arith.constant 0 : index
    %3 = vector.load %arg2[%c0, %2, %c0_0, %c0_1] : memref<1x18x18x128xbf16, #tpu.memory_space<vmem>>, vector<1x16x18x128xbf16>
    %4 = vector.shape_cast %3 : vector<1x16x18x128xbf16> to vector<16x18x128xbf16>
    %5 = vector.extract_strided_slice %4 {offsets = [0, 0, 0], sizes = [16, 16, 128], strides = [1, 1, 1]} : vector<16x18x128xbf16> to vector<16x16x128xbf16>
    %6 = vector.extract_strided_slice %4 {offsets = [0, 1, 0], sizes = [16, 16, 128], strides = [1, 1, 1]} : vector<16x18x128xbf16> to vector<16x16x128xbf16>
    %7 = vector.extract_strided_slice %4 {offsets = [0, 2, 0], sizes = [16, 16, 128], strides = [1, 1, 1]} : vector<16x18x128xbf16> to vector<16x16x128xbf16>
    %c1_i32 = arith.constant 1 : i32
    %8 = arith.addi %0, %c1_i32 : i32
    %c0_2 = arith.constant 0 : index
    %9 = arith.index_cast %8 : i32 to index
    %c0_3 = arith.constant 0 : index
    %c0_4 = arith.constant 0 : index
    %10 = vector.load %arg2[%c0_2, %9, %c0_3, %c0_4] : memref<1x18x18x128xbf16, #tpu.memory_space<vmem>>, vector<1x16x18x128xbf16>
    %11 = vector.shape_cast %10 : vector<1x16x18x128xbf16> to vector<16x18x128xbf16>
    %12 = vector.extract_strided_slice %11 {offsets = [0, 0, 0], sizes = [16, 16, 128], strides = [1, 1, 1]} : vector<16x18x128xbf16> to vector<16x16x128xbf16>
    %13 = vector.extract_strided_slice %11 {offsets = [0, 1, 0], sizes = [16, 16, 128], strides = [1, 1, 1]} : vector<16x18x128xbf16> to vector<16x16x128xbf16>
    %14 = vector.extract_strided_slice %11 {offsets = [0, 2, 0], sizes = [16, 16, 128], strides = [1, 1, 1]} : vector<16x18x128xbf16> to vector<16x16x128xbf16>
    %c2_i32 = arith.constant 2 : i32
    %15 = arith.addi %0, %c2_i32 : i32
    %c0_5 = arith.constant 0 : index
    %16 = arith.index_cast %15 : i32 to index
    %c0_6 = arith.constant 0 : index
    %c0_7 = arith.constant 0 : index
    %17 = vector.load %arg2[%c0_5, %16, %c0_6, %c0_7] : memref<1x18x18x128xbf16, #tpu.memory_space<vmem>>, vector<1x16x18x128xbf16>
    %18 = vector.shape_cast %17 : vector<1x16x18x128xbf16> to vector<16x18x128xbf16>
    %19 = vector.extract_strided_slice %18 {offsets = [0, 0, 0], sizes = [16, 16, 128], strides = [1, 1, 1]} : vector<16x18x128xbf16> to vector<16x16x128xbf16>
    %20 = vector.extract_strided_slice %18 {offsets = [0, 1, 0], sizes = [16, 16, 128], strides = [1, 1, 1]} : vector<16x18x128xbf16> to vector<16x16x128xbf16>
    %21 = vector.extract_strided_slice %18 {offsets = [0, 2, 0], sizes = [16, 16, 128], strides = [1, 1, 1]} : vector<16x18x128xbf16> to vector<16x16x128xbf16>
    %22 = tpu.concatenate %5, %6, %7, %12, %13, %14, %19, %20, %21 in 2 : vector<16x16x128xbf16>, vector<16x16x128xbf16>, vector<16x16x128xbf16>, vector<16x16x128xbf16>, vector<16x16x128xbf16>, vector<16x16x128xbf16>, vector<16x16x128xbf16>, vector<16x16x128xbf16>, vector<16x16x128xbf16> -> vector<16x16x1152xbf16>
    %23 = vector.shape_cast %22 : vector<16x16x1152xbf16> to vector<256x1152xbf16>
    %c0_8 = arith.constant 0 : index
    %c0_9 = arith.constant 0 : index
    %24 = vector.load %arg3[%c0_8, %c0_9] : memref<1152x128xbf16, #tpu.memory_space<vmem>>, vector<1152x128xbf16>
    %cst = arith.constant dense<0.000000e+00> : vector<256x128xf32>
    %25 = tpu.matmul %23, %24, %cst {dimension_numbers = #tpu.dot_dimension_numbers<[1], [0], [0], [1], [0, 0, 1, 1], [], []>} : vector<256x1152xbf16>, vector<1152x128xbf16>, vector<256x128xf32> -> vector<256x128xf32>
    %c0_10 = arith.constant 0 : index
    %c0_11 = arith.constant 0 : index
    %26 = vector.load %arg4[%c0_10, %c0_11] : memref<1x128xf32, #tpu.memory_space<vmem>>, vector<1x128xf32>
    %27 = vector.broadcast %26 : vector<1x128xf32> to vector<256x128xf32>
    %28 = arith.addf %25, %27 : vector<256x128xf32>
    %cst_12 = arith.constant 0.000000e+00 : f32
    %29 = vector.broadcast %cst_12 : f32 to vector<256x128xf32>
    %30 = arith.maximumf %28, %29 : vector<256x128xf32>
    %31 = vector.shape_cast %30 : vector<256x128xf32> to vector<16x16x128xf32>
    %32 = arith.truncf %31 : vector<16x16x128xf32> to vector<16x16x128xbf16>
    %c0_13 = arith.constant 0 : index
    %c0_14 = arith.constant 0 : index
    %c0_15 = arith.constant 0 : index
    %c0_16 = arith.constant 0 : index
    %33 = vector.load %arg5[%c0_13, %c0_14, %c0_15, %c0_16] : memref<1x16x16x128xbf16, #tpu.memory_space<vmem>>, vector<1x16x16x128xbf16>
    %34 = vector.shape_cast %33 : vector<1x16x16x128xbf16> to vector<16x16x128xbf16>
    %35 = vector.shape_cast %32 : vector<16x16x128xbf16> to vector<1x16x16x128xbf16>
    tpu.vector_store %arg5[%c0_13, %c0_14, %c0_15, %c0_16], %35 {strides = array<i32>} : memref<1x16x16x128xbf16, #tpu.memory_space<vmem>>, vector<1x16x16x128xbf16>,
    return
  }
  func.func @transform_0(%arg0: i32, %arg1: i32) -> (i32, i32, i32, i32) {
    %c0_i32 = arith.constant 0 : i32
    %c0_i32_0 = arith.constant 0 : i32
    %c0_i32_1 = arith.constant 0 : i32
    %c0_i32_2 = arith.constant 0 : i32
    return %arg0, %c0_i32, %c0_i32_0, %c0_i32_1 : i32, i32, i32, i32
  }
  func.func @transform_1(%arg0: i32, %arg1: i32) -> (i32, i32) {
    %c0_i32 = arith.constant 0 : i32
    %c0_i32_0 = arith.constant 0 : i32
    %c0_i32_1 = arith.constant 0 : i32
    return %c0_i32, %c0_i32_0 : i32, i32
  }
  func.func @transform_2(%arg0: i32, %arg1: i32) -> (i32, i32) {
    %c0_i32 = arith.constant 0 : i32
    %c0_i32_0 = arith.constant 0 : i32
    %c0_i32_1 = arith.constant 0 : i32
    return %c0_i32, %c0_i32_0 : i32, i32
  }
  func.func @transform_3(%arg0: i32, %arg1: i32) -> (i32, i32, i32, i32) {
    %c0_i32 = arith.constant 0 : i32
    %c0_i32_0 = arith.constant 0 : i32
    %c0_i32_1 = arith.constant 0 : i32
    return %arg0, %arg1, %c0_i32, %c0_i32_0 : i32, i32, i32, i32
  }
}

module attributes {stable_mosaic.version = 11 : i64} {
  func.func @kernel(%arg0: i32, %arg1: i32, %arg2: memref<1x18x18x128xbf16, #tpu.memory_space<vmem>>, %arg3: memref<1152x128xbf16, #tpu.memory_space<vmem>>, %arg4: memref<1x128xf32, #tpu.memory_space<vmem>>, %arg5: memref<1x16x16x128xbf16, #tpu.memory_space<vmem>>) attributes {dimension_semantics = [#tpu.dimension_semantics<parallel>, #tpu.dimension_semantics<arbitrary>], iteration_bounds = array<i64: 2, 1>, scalar_prefetch = 0 : i64, scratch_operands = 0 : i64, tpu.core_type = #tpu.core_type<tc>, window_params = [{transform_indices = @transform_0, window_bounds = array<i64: 1, 18, 18, 128>}, {pipeline_mode = #tpu.pipeline_mode<synchronous>, transform_indices = @transform_1, window_bounds = array<i64: 1152, 128>}, {pipeline_mode = #tpu.pipeline_mode<synchronous>, transform_indices = @transform_2, window_bounds = array<i64: 1, 128>}, {transform_indices = @transform_3, window_bounds = array<i64: 1, 16, 16, 128>}]} {
    %c16_i32 = arith.constant 16 : i32
    %0 = arith.muli %arg1, %c16_i32 : i32
    %c0_i32 = arith.constant 0 : i32
    %1 = arith.addi %0, %c0_i32 : i32
    %c0 = arith.constant 0 : index
    %2 = arith.index_cast %1 : i32 to index
    %c0_0 = arith.constant 0 : index
    %c0_1 = arith.constant 0 : index
    %3 = vector.load %arg2[%c0, %2, %c0_0, %c0_1] : memref<1x18x18x128xbf16, #tpu.memory_space<vmem>>, vector<1x16x18x128xbf16>
    %4 = vector.shape_cast %3 : vector<1x16x18x128xbf16> to vector<16x18x128xbf16>
    %5 = vector.extract_strided_slice %4 {offsets = [0, 0, 0], sizes = [16, 16, 128], strides = [1, 1, 1]} : vector<16x18x128xbf16> to vector<16x16x128xbf16>
    %6 = vector.extract_strided_slice %4 {offsets = [0, 1, 0], sizes = [16, 16, 128], strides = [1, 1, 1]} : vector<16x18x128xbf16> to vector<16x16x128xbf16>
    %7 = vector.extract_strided_slice %4 {offsets = [0, 2, 0], sizes = [16, 16, 128], strides = [1, 1, 1]} : vector<16x18x128xbf16> to vector<16x16x128xbf16>
    %c1_i32 = arith.constant 1 : i32
    %8 = arith.addi %0, %c1_i32 : i32
    %c0_2 = arith.constant 0 : index
    %9 = arith.index_cast %8 : i32 to index
    %c0_3 = arith.constant 0 : index
    %c0_4 = arith.constant 0 : index
    %10 = vector.load %arg2[%c0_2, %9, %c0_3, %c0_4] : memref<1x18x18x128xbf16, #tpu.memory_space<vmem>>, vector<1x16x18x128xbf16>
    %11 = vector.shape_cast %10 : vector<1x16x18x128xbf16> to vector<16x18x128xbf16>
    %12 = vector.extract_strided_slice %11 {offsets = [0, 0, 0], sizes = [16, 16, 128], strides = [1, 1, 1]} : vector<16x18x128xbf16> to vector<16x16x128xbf16>
    %13 = vector.extract_strided_slice %11 {offsets = [0, 1, 0], sizes = [16, 16, 128], strides = [1, 1, 1]} : vector<16x18x128xbf16> to vector<16x16x128xbf16>
    %14 = vector.extract_strided_slice %11 {offsets = [0, 2, 0], sizes = [16, 16, 128], strides = [1, 1, 1]} : vector<16x18x128xbf16> to vector<16x16x128xbf16>
    %c2_i32 = arith.constant 2 : i32
    %15 = arith.addi %0, %c2_i32 : i32
    %c0_5 = arith.constant 0 : index
    %16 = arith.index_cast %15 : i32 to index
    %c0_6 = arith.constant 0 : index
    %c0_7 = arith.constant 0 : index
    %17 = vector.load %arg2[%c0_5, %16, %c0_6, %c0_7] : memref<1x18x18x128xbf16, #tpu.memory_space<vmem>>, vector<1x16x18x128xbf16>
    %18 = vector.shape_cast %17 : vector<1x16x18x128xbf16> to vector<16x18x128xbf16>
    %19 = vector.extract_strided_slice %18 {offsets = [0, 0, 0], sizes = [16, 16, 128], strides = [1, 1, 1]} : vector<16x18x128xbf16> to vector<16x16x128xbf16>
    %20 = vector.extract_strided_slice %18 {offsets = [0, 1, 0], sizes = [16, 16, 128], strides = [1, 1, 1]} : vector<16x18x128xbf16> to vector<16x16x128xbf16>
    %21 = vector.extract_strided_slice %18 {offsets = [0, 2, 0], sizes = [16, 16, 128], strides = [1, 1, 1]} : vector<16x18x128xbf16> to vector<16x16x128xbf16>
    %22 = tpu.concatenate %5, %6, %7, %12, %13, %14, %19, %20, %21 in 2 : vector<16x16x128xbf16>, vector<16x16x128xbf16>, vector<16x16x128xbf16>, vector<16x16x128xbf16>, vector<16x16x128xbf16>, vector<16x16x128xbf16>, vector<16x16x128xbf16>, vector<16x16x128xbf16>, vector<16x16x128xbf16> -> vector<16x16x1152xbf16>
    %23 = vector.shape_cast %22 : vector<16x16x1152xbf16> to vector<256x1152xbf16>
    %c0_8 = arith.constant 0 : index
    %c0_9 = arith.constant 0 : index
    %24 = vector.load %arg3[%c0_8, %c0_9] : memref<1152x128xbf16, #tpu.memory_space<vmem>>, vector<1152x128xbf16>
    %cst = arith.constant dense<0.000000e+00> : vector<256x128xf32>
    %25 = tpu.matmul %23, %24, %cst {dimension_numbers = #tpu.dot_dimension_numbers<[1], [0], [0], [1], [0, 0, 1, 1], [], []>} : vector<256x1152xbf16>, vector<1152x128xbf16>, vector<256x128xf32> -> vector<256x128xf32>
    %c0_10 = arith.constant 0 : index
    %c0_11 = arith.constant 0 : index
    %26 = vector.load %arg4[%c0_10, %c0_11] : memref<1x128xf32, #tpu.memory_space<vmem>>, vector<1x128xf32>
    %27 = vector.broadcast %26 : vector<1x128xf32> to vector<256x128xf32>
    %28 = arith.addf %25, %27 : vector<256x128xf32>
    %cst_12 = arith.constant 0.000000e+00 : f32
    %29 = vector.broadcast %cst_12 : f32 to vector<256x128xf32>
    %30 = arith.maximumf %28, %29 : vector<256x128xf32>
    %31 = vector.shape_cast %30 : vector<256x128xf32> to vector<16x16x128xf32>
    %32 = arith.truncf %31 : vector<16x16x128xf32> to vector<16x16x128xbf16>
    %c0_13 = arith.constant 0 : index
    %c0_14 = arith.constant 0 : index
    %c0_15 = arith.constant 0 : index
    %c0_16 = arith.constant 0 : index
    %33 = vector.load %arg5[%c0_13, %c0_14, %c0_15, %c0_16] : memref<1x16x16x128xbf16, #tpu.memory_space<vmem>>, vector<1x16x16x128xbf16>
    %34 = vector.shape_cast %33 : vector<1x16x16x128xbf16> to vector<16x16x128xbf16>
    %35 = vector.shape_cast %32 : vector<16x16x128xbf16> to vector<1x16x16x128xbf16>
    tpu.vector_store %arg5[%c0_13, %c0_14, %c0_15, %c0_16], %35 {strides = array<i32>} : memref<1x16x16x128xbf16, #tpu.memory_space<vmem>>, vector<1x16x16x128xbf16>,
    return
  }
  func.func @transform_0(%arg0: i32, %arg1: i32) -> (i32, i32, i32, i32) {
    %c0_i32 = arith.constant 0 : i32
    %c0_i32_0 = arith.constant 0 : i32
    %c0_i32_1 = arith.constant 0 : i32
    %c0_i32_2 = arith.constant 0 : i32
    return %arg0, %c0_i32, %c0_i32_0, %c0_i32_1 : i32, i32, i32, i32
  }
  func.func @transform_1(%arg0: i32, %arg1: i32) -> (i32, i32) {
    %c0_i32 = arith.constant 0 : i32
    %c0_i32_0 = arith.constant 0 : i32
    %c0_i32_1 = arith.constant 0 : i32
    return %c0_i32, %c0_i32_0 : i32, i32
  }
  func.func @transform_2(%arg0: i32, %arg1: i32) -> (i32, i32) {
    %c0_i32 = arith.constant 0 : i32
    %c0_i32_0 = arith.constant 0 : i32
    %c0_i32_1 = arith.constant 0 : i32
    return %c0_i32, %c0_i32_0 : i32, i32
  }
  func.func @transform_3(%arg0: i32, %arg1: i32) -> (i32, i32, i32, i32) {
    %c0_i32 = arith.constant 0 : i32
    %c0_i32_0 = arith.constant 0 : i32
    %c0_i32_1 = arith.constant 0 : i32
    return %arg0, %arg1, %c0_i32, %c0_i32_0 : i32, i32, i32, i32
  }
}

</mosaic_0001>

<llo_original>
// kernel: tpu_custom_call.1
$region0: #{tpu_custom_call.1}
  #allocation0 [shape = 'u32[]', space=smem, size = 0x4, offset = 0x4, fixed_abs, tag = 'smem constant byte address 0x4 - core index']
  #allocation1 [shape = 'u32[144,128]{1,0:T(1,128)}', space=vmem, size = 0x12000, scoped, tag = 'internal scratch']
  %s0 = inlined_call_operand.vmem [shape: bf16[2,18,18,128], index: 0, kind: input, shape index: {}]
  %s1 = inlined_call_operand.vmem [shape: bf16[1152,128], index: 1, kind: input, shape index: {}]
  %s2 = inlined_call_operand.vmem [shape: f32[1,128], index: 2, kind: input, shape index: {}]
  %s3 = inlined_call_operand.hbm [shape: bf16[2,16,16,128], index: 3, kind: output, shape index: {}]
  %s4 = sld [smem:[#allocation0]]
  $region45: #{tpu_custom_call.1} parent=0
    _
  %s6 = ssub.s32 1, %s4
  %s7 = scalar_select 0, %s6, %s4
  $region1: #{tpu_custom_call.1} parent=0
    #allocation2 [shape = 'u8[131072]{0}', space=vmem, size = 0x20000, scoped, tag = 'output window, operand 0']
    #allocation3 [shape = 's32[2]{0}', space=sflag, size = 0x8, scoped, tag = 'scoped memory for tpu_custom_call.1']
    %8 = vsyncpa [#allocation3], 0
    %s9 = scalar_lea.sflag [#allocation3], 1
    %10 = vsyncpa %s9, 0
    loop: start=0, step=1, limit=4
    $region2: #{tpu_custom_call.1} parent=1 // loop_pre_header
      _
    $region3: #{tpu_custom_call.1} parent=1 // loop_header
      %s12 = sphi 0, %s16
      %p13 = scmp.ge.s32.totalorder %s12, 4
      %s19 = sphi 0, %s31
      %s20 = sphi 0, %s27
      %s21 = sphi 0, %s19
      %s22 = sphi 0, %s20
      %s23 = sphi 0, %s21
      %s24 = sphi 0, %s22
      %s34 = sphi 0, %s36
      %s37 = sphi 0, %s34
      %s38 = sphi 0, %s37
      %s54 = sphi 0, %s38
      %s58 = sphi 0, %s58
      %s60 = sphi 0, %s58
      %s61 = sphi 0, %s60
      %s75 = sphi 0, %s61
      %s79 = sphi 0, %s79
      %s81 = sphi 0, %s79
      %s82 = sphi 0, %s81
      %s96 = sphi 0, %s82
      %s104 = sphi 0, %s106
      %s107 = sphi 0, %s104
      %s108 = sphi 0, %s107
      %s124 = sphi 0, %s108
    $region4: #{tpu_custom_call.1} parent=1 // loop_header_branch
      %15 = sbr.rel (%p13) target = $region8
    $region5: #{tpu_custom_call.1} parent=1 // loop_body
      %s17 = ssub.s32 %s12, 1
      %s18 = ssub.s32 %s12, 2
      %s25 = sadd.s32 1, %s20
      %p26 = scmp.ge.s32.totalorder %s25, 1
      %s27 = scalar_select %p26, 0, %s25
      %s28 = sadd.s32 1, %s19
      %s29 = scalar_select %p26, %s28, %s19
      %p30 = scmp.ge.s32.totalorder %s29, 2
      %s31 = scalar_select %p30, 0, %s29
      %s32 = ssub.s32 %s19, %s31
      %p33 = scmp.eq.s32.totalorder %s32, 0
      %s35 = sadd.s32 %s34, 1
      %s36 = scalar_select %p33, %s34, %s35
      %p39 = pneg %p33
      %p40 = scmp.eq.s32.totalorder %s12, 1
      %p41 = por %p39, %p40
      %p42 = scmp.ne.s32.totalorder %s34, %s37
      %p43 = scmp.eq.s32.totalorder %s12, 0
      %p44 = por %p42, %p43
      %p45 = scmp.ne.s32.totalorder %s34, %s37
      %p46 = scmp.eq.s32.totalorder %s17, 1
      %p47 = por %p45, %p46
      %p48 = scmp.ne.s32.totalorder %s37, %s38
      %p49 = scmp.eq.s32.totalorder %s17, 0
      %p50 = por %p48, %p49
      %p51 = scmp.ne.s32.totalorder %s37, %s38
      %p52 = scmp.eq.s32.totalorder %s18, 1
      %p53 = por %p51, %p52
      %p55 = scmp.ne.s32.totalorder %s38, %s54
      %p56 = scmp.eq.s32.totalorder %s18, 0
      %p57 = por %p55, %p56
      %s59 = sadd.s32 %s58, 1
      %p62 = scmp.eq.s32.totalorder %s12, 1
      %p63 = scmp.ne.s32.totalorder %s58, %s60
      %p64 = scmp.eq.s32.totalorder %s12, 0
      %p65 = por %p63, %p64
      %p66 = scmp.ne.s32.totalorder %s58, %s60
      %p67 = scmp.eq.s32.totalorder %s17, 1
      %p68 = por %p66, %p67
      %p69 = scmp.ne.s32.totalorder %s60, %s61
      %p70 = scmp.eq.s32.totalorder %s17, 0
      %p71 = por %p69, %p70
      %p72 = scmp.ne.s32.totalorder %s60, %s61
      %p73 = scmp.eq.s32.totalorder %s18, 1
      %p74 = por %p72, %p73
      %p76 = scmp.ne.s32.totalorder %s61, %s75
      %p77 = scmp.eq.s32.totalorder %s18, 0
      %p78 = por %p76, %p77
      %s80 = sadd.s32 %s79, 1
      %p83 = scmp.eq.s32.totalorder %s12, 1
      %p84 = scmp.ne.s32.totalorder %s79, %s81
      %p85 = scmp.eq.s32.totalorder %s12, 0
      %p86 = por %p84, %p85
      %p87 = scmp.ne.s32.totalorder %s79, %s81
      %p88 = scmp.eq.s32.totalorder %s17, 1
      %p89 = por %p87, %p88
      %p90 = scmp.ne.s32.totalorder %s81, %s82
      %p91 = scmp.eq.s32.totalorder %s17, 0
      %p92 = por %p90, %p91
      %p93 = scmp.ne.s32.totalorder %s81, %s82
      %p94 = scmp.eq.s32.totalorder %s18, 1
      %p95 = por %p93, %p94
      %p97 = scmp.ne.s32.totalorder %s82, %s96
      %p98 = scmp.eq.s32.totalorder %s18, 0
      %p99 = por %p97, %p98
      %s100 = ssub.s32 %s19, %s31
      %s101 = ssub.s32 %s20, %s27
      %s102 = sor.u32 %s100, %s101
      %p103 = scmp.eq.s32.totalorder %s102, 0
      %s105 = sadd.s32 %s104, 1
      %s106 = scalar_select %p103, %s104, %s105
      %p109 = pneg %p103
      %p110 = scmp.eq.s32.totalorder %s12, 1
      %p111 = por %p109, %p110
      %p112 = scmp.ne.s32.totalorder %s104, %s107
      %p113 = scmp.eq.s32.totalorder %s12, 0
      %p114 = por %p112, %p113
      %p115 = scmp.ne.s32.totalorder %s104, %s107
      %p116 = scmp.eq.s32.totalorder %s17, 1
      %p117 = por %p115, %p116
      %p118 = scmp.ne.s32.totalorder %s107, %s108
      %p119 = scmp.eq.s32.totalorder %s17, 0
      %p120 = por %p118, %p119
      %p121 = scmp.ne.s32.totalorder %s107, %s108
      %p122 = scmp.eq.s32.totalorder %s18, 1
      %p123 = por %p121, %p122
      %p125 = scmp.ne.s32.totalorder %s108, %s124
      %p126 = scmp.eq.s32.totalorder %s18, 0
      %p127 = por %p125, %p126
      %p128 = scmp.le.s32.totalorder 1, %s12
      %p129 = scmp.lt.s32.totalorder %s12, 3
      %p130 = pnand %p128, %p129
      %p131 = pneg %p130
      // Predicated region
      $region9: #{tpu_custom_call.1} parent=5 // pred_check
        _
      $region10: #{tpu_custom_call.1} parent=5 // pred_check_branch
        %133 = sbr.rel (%p130) target = $region12
      $region11: #{tpu_custom_call.1} parent=5 // pred_region
        %s134 = ssub.s32 %s12, 1
        // Predicated region
        $region13: #{tpu_custom_call.1} parent=11 // pred_check
          %p135 = pneg %p71
        $region14: #{tpu_custom_call.1} parent=11 // pred_check_branch
          %137 = sbr.rel (%p135) target = $region16
        $region15: #{tpu_custom_call.1} parent=11 // pred_region
          _
        $region16: #{tpu_custom_call.1} parent=11 // pred_fallthru
          _
        // Predicated region
        $region17: #{tpu_custom_call.1} parent=11 // pred_check
          %p138 = pneg %p92
        $region18: #{tpu_custom_call.1} parent=11 // pred_check_branch
          %140 = sbr.rel (%p138) target = $region20
        $region19: #{tpu_custom_call.1} parent=11 // pred_region
          _
        $region20: #{tpu_custom_call.1} parent=11 // pred_fallthru
          _
      $region12: #{tpu_custom_call.1} parent=5 // pred_fallthru
        _
      %p141 = scmp.lt.s32.totalorder %s12, 2
      // Predicated region
      $region21: #{tpu_custom_call.1} parent=5 // pred_check
        %p142 = pneg %p141
      $region22: #{tpu_custom_call.1} parent=5 // pred_check_branch
        %144 = sbr.rel (%p142) target = $region24
      $region23: #{tpu_custom_call.1} parent=5 // pred_region
        // Predicated region
        $region25: #{tpu_custom_call.1} parent=23 // pred_check
          %p145 = pneg %p44
        $region26: #{tpu_custom_call.1} parent=23 // pred_check_branch
          %147 = sbr.rel (%p145) target = $region28
        $region27: #{tpu_custom_call.1} parent=23 // pred_region
          %p148 = scmp.lt.s32.totalorder %s19, 1
          %s149 = scalar_select %p148, %s19, 1
          %s150 = smul.addr %s149, 54
          %s151 = smul.addr %s150, 4
          %s152 = scalar_lea.vmem %s0, %s151
        $region28: #{tpu_custom_call.1} parent=23 // pred_fallthru
          _
      $region24: #{tpu_custom_call.1} parent=5 // pred_fallthru
        _
      %p153 = scmp.le.s32.totalorder 1, %s12
      %p154 = scmp.lt.s32.totalorder %s12, 3
      %p155 = pnand %p153, %p154
      %p156 = pneg %p155
      // Predicated region
      $region29: #{tpu_custom_call.1} parent=5 // pred_check
        _
      $region30: #{tpu_custom_call.1} parent=5 // pred_check_branch
        %158 = sbr.rel (%p155) target = $region32
      $region31: #{tpu_custom_call.1} parent=5 // pred_region
        %s159 = ssub.s32 %s12, 1
        %p160 = scmp.lt.s32.totalorder %s21, 1
        %s161 = scalar_select %p160, %s21, 1
        %s162 = smul.addr %s161, 54
        %s163 = smul.addr %s162, 4
        %s164 = scalar_lea.vmem %s0, %s163
        %p165 = pneg %p50
        %p166 = pneg %p47
        %p167 = pneg %p71
        %p168 = pneg %p68
        %p169 = pneg %p92
        %p170 = pneg %p89
        %p171 = pneg %p120
        %p172 = pneg %p117
        %s173 = sand.u32 %s107, 1
        %s174 = scalar_lea.sflag [#allocation3], %s173
        %s175 = sand.u32 %s107, 1
        %s176 = smul.addr %s175, 128
        %s177 = scalar_lea.vmem [#allocation2], %s176
        %p178 = scmp.lt.s32.totalorder %s21, 1
        %s179 = scalar_select %p178, %s21, 1
        %s180 = smul.addr %s179, 54
        %s181 = smul.addr %s180, 4
        %s182 = scalar_lea.vmem %s0, %s181
        %s183 = smul.u32 16, %s22
        %s185 = smul.u32 %s22, 16
        %s186 = smul.u32 %s185, 3
        %s187 = smul.addr %s186, 4
        %s188 = scalar_lea.vmem %s182, %s187
        %v189 = vld [vmem:[%s188] sm:$0xf]
        %v190 = vld [vmem:[%s188 + $0x4] sm:$0xf]
        %v191 = vld [vmem:[%s188 + $0x8] sm:$0x1]
        %v192 = vld [vmem:[%s188 + $0xc] sm:$0xf]
        %v193 = vld [vmem:[%s188 + $0x10] sm:$0xf]
        %v194 = vld [vmem:[%s188 + $0x14] sm:$0x1]
        %v195 = vld [vmem:[%s188 + $0x18] sm:$0xf]
        %v196 = vld [vmem:[%s188 + $0x1c] sm:$0xf]
        %v197 = vld [vmem:[%s188 + $0x20] sm:$0x1]
        %v198 = vld [vmem:[%s188 + $0x24] sm:$0xf]
        %v199 = vld [vmem:[%s188 + $0x28] sm:$0xf]
        %v200 = vld [vmem:[%s188 + $0x2c] sm:$0x1]
        %v201 = vld [vmem:[%s188 + $0x30] sm:$0xf]
        %v202 = vld [vmem:[%s188 + $0x34] sm:$0xf]
        %v203 = vld [vmem:[%s188 + $0x38] sm:$0x1]
        %v204 = vld [vmem:[%s188 + $0x3c] sm:$0xf]
        %v205 = vld [vmem:[%s188 + $0x40] sm:$0xf]
        %v206 = vld [vmem:[%s188 + $0x44] sm:$0x1]
        %v207 = vld [vmem:[%s188 + $0x48] sm:$0xf]
        %v208 = vld [vmem:[%s188 + $0x4c] sm:$0xf]
        %v209 = vld [vmem:[%s188 + $0x50] sm:$0x1]
        %v210 = vld [vmem:[%s188 + $0x54] sm:$0xf]
        %v211 = vld [vmem:[%s188 + $0x58] sm:$0xf]
        %v212 = vld [vmem:[%s188 + $0x5c] sm:$0x1]
        %v213 = vld [vmem:[%s188 + $0x60] sm:$0xf]
        %v214 = vld [vmem:[%s188 + $0x64] sm:$0xf]
        %v215 = vld [vmem:[%s188 + $0x68] sm:$0x1]
        %v216 = vld [vmem:[%s188 + $0x6c] sm:$0xf]
        %v217 = vld [vmem:[%s188 + $0x70] sm:$0xf]
        %v218 = vld [vmem:[%s188 + $0x74] sm:$0x1]
        %v219 = vld [vmem:[%s188 + $0x78] sm:$0xf]
        %v220 = vld [vmem:[%s188 + $0x7c] sm:$0xf]
        %v221 = vld [vmem:[%s188 + $0x80] sm:$0x1]
        %v222 = vld [vmem:[%s188 + $0x84] sm:$0xf]
        %v223 = vld [vmem:[%s188 + $0x88] sm:$0xf]
        %v224 = vld [vmem:[%s188 + $0x8c] sm:$0x1]
        %v225 = vld [vmem:[%s188 + $0x90] sm:$0xf]
        %v226 = vld [vmem:[%s188 + $0x94] sm:$0xf]
        %v227 = vld [vmem:[%s188 + $0x98] sm:$0x1]
        %v228 = vld [vmem:[%s188 + $0x9c] sm:$0xf]
        %v229 = vld [vmem:[%s188 + $0xa0] sm:$0xf]
        %v230 = vld [vmem:[%s188 + $0xa4] sm:$0x1]
        %v231 = vld [vmem:[%s188 + $0xa8] sm:$0xf]
        %v232 = vld [vmem:[%s188 + $0xac] sm:$0xf]
        %v233 = vld [vmem:[%s188 + $0xb0] sm:$0x1]
        %v234 = vld [vmem:[%s188 + $0xb4] sm:$0xf]
        %v235 = vld [vmem:[%s188 + $0xb8] sm:$0xf]
        %v236 = vld [vmem:[%s188 + $0xbc] sm:$0x1]
        %s237 = sadd.s32 %s185, 1
        %s238 = smul.u32 %s237, 3
        %s239 = smul.addr %s238, 4
        %s240 = scalar_lea.vmem %s182, %s239
        %v241 = vld [vmem:[%s240] sm:$0xf]
        %v242 = vld [vmem:[%s240 + $0x4] sm:$0xf]
        %v243 = vld [vmem:[%s240 + $0x8] sm:$0x1]
        %v244 = vld [vmem:[%s240 + $0xc] sm:$0xf]
        %v245 = vld [vmem:[%s240 + $0x10] sm:$0xf]
        %v246 = vld [vmem:[%s240 + $0x14] sm:$0x1]
        %v247 = vld [vmem:[%s240 + $0x18] sm:$0xf]
        %v248 = vld [vmem:[%s240 + $0x1c] sm:$0xf]
        %v249 = vld [vmem:[%s240 + $0x20] sm:$0x1]
        %v250 = vld [vmem:[%s240 + $0x24] sm:$0xf]
        %v251 = vld [vmem:[%s240 + $0x28] sm:$0xf]
        %v252 = vld [vmem:[%s240 + $0x2c] sm:$0x1]
        %v253 = vld [vmem:[%s240 + $0x30] sm:$0xf]
        %v254 = vld [vmem:[%s240 + $0x34] sm:$0xf]
        %v255 = vld [vmem:[%s240 + $0x38] sm:$0x1]
        %v256 = vld [vmem:[%s240 + $0x3c] sm:$0xf]
        %v257 = vld [vmem:[%s240 + $0x40] sm:$0xf]
        %v258 = vld [vmem:[%s240 + $0x44] sm:$0x1]
        %v259 = vld [vmem:[%s240 + $0x48] sm:$0xf]
        %v260 = vld [vmem:[%s240 + $0x4c] sm:$0xf]
        %v261 = vld [vmem:[%s240 + $0x50] sm:$0x1]
        %v262 = vld [vmem:[%s240 + $0x54] sm:$0xf]
        %v263 = vld [vmem:[%s240 + $0x58] sm:$0xf]
        %v264 = vld [vmem:[%s240 + $0x5c] sm:$0x1]
        %v265 = vld [vmem:[%s240 + $0x60] sm:$0xf]
        %v266 = vld [vmem:[%s240 + $0x64] sm:$0xf]
        %v267 = vld [vmem:[%s240 + $0x68] sm:$0x1]
        %v268 = vld [vmem:[%s240 + $0x6c] sm:$0xf]
        %v269 = vld [vmem:[%s240 + $0x70] sm:$0xf]
        %v270 = vld [vmem:[%s240 + $0x74] sm:$0x1]
        %v271 = vld [vmem:[%s240 + $0x78] sm:$0xf]
        %v272 = vld [vmem:[%s240 + $0x7c] sm:$0xf]
        %v273 = vld [vmem:[%s240 + $0x80] sm:$0x1]
        %v274 = vld [vmem:[%s240 + $0x84] sm:$0xf]
        %v275 = vld [vmem:[%s240 + $0x88] sm:$0xf]
        %v276 = vld [vmem:[%s240 + $0x8c] sm:$0x1]
        %v277 = vld [vmem:[%s240 + $0x90] sm:$0xf]
        %v278 = vld [vmem:[%s240 + $0x94] sm:$0xf]
        %v279 = vld [vmem:[%s240 + $0x98] sm:$0x1]
        %v280 = vld [vmem:[%s240 + $0x9c] sm:$0xf]
        %v281 = vld [vmem:[%s240 + $0xa0] sm:$0xf]
        %v282 = vld [vmem:[%s240 + $0xa4] sm:$0x1]
        %v283 = vld [vmem:[%s240 + $0xa8] sm:$0xf]
        %v284 = vld [vmem:[%s240 + $0xac] sm:$0xf]
        %v285 = vld [vmem:[%s240 + $0xb0] sm:$0x1]
        %v286 = vld [vmem:[%s240 + $0xb4] sm:$0xf]
        %v287 = vld [vmem:[%s240 + $0xb8] sm:$0xf]
        %v288 = vld [vmem:[%s240 + $0xbc] sm:$0x1]
        %s289 = sadd.s32 %s185, 2
        %s290 = smul.u32 %s289, 3
        %s291 = smul.addr %s290, 4
        %s292 = scalar_lea.vmem %s182, %s291
        %v293 = vld [vmem:[%s292] sm:$0xf]
        %v294 = vld [vmem:[%s292 + $0x4] sm:$0xf]
        %v295 = vld [vmem:[%s292 + $0x8] sm:$0x1]
        %v296 = vld [vmem:[%s292 + $0xc] sm:$0xf]
        %v297 = vld [vmem:[%s292 + $0x10] sm:$0xf]
        %v298 = vld [vmem:[%s292 + $0x14] sm:$0x1]
        %v299 = vld [vmem:[%s292 + $0x18] sm:$0xf]
        %v300 = vld [vmem:[%s292 + $0x1c] sm:$0xf]
        %v301 = vld [vmem:[%s292 + $0x20] sm:$0x1]
        %v302 = vld [vmem:[%s292 + $0x24] sm:$0xf]
        %v303 = vld [vmem:[%s292 + $0x28] sm:$0xf]
        %v304 = vld [vmem:[%s292 + $0x2c] sm:$0x1]
        %v305 = vld [vmem:[%s292 + $0x30] sm:$0xf]
        %v306 = vld [vmem:[%s292 + $0x34] sm:$0xf]
        %v307 = vld [vmem:[%s292 + $0x38] sm:$0x1]
        %v308 = vld [vmem:[%s292 + $0x3c] sm:$0xf]
        %v309 = vld [vmem:[%s292 + $0x40] sm:$0xf]
        %v310 = vld [vmem:[%s292 + $0x44] sm:$0x1]
        %v311 = vld [vmem:[%s292 + $0x48] sm:$0xf]
        %v312 = vld [vmem:[%s292 + $0x4c] sm:$0xf]
        %v313 = vld [vmem:[%s292 + $0x50] sm:$0x1]
        %v314 = vld [vmem:[%s292 + $0x54] sm:$0xf]
        %v315 = vld [vmem:[%s292 + $0x58] sm:$0xf]
        %v316 = vld [vmem:[%s292 + $0x5c] sm:$0x1]
        %v317 = vld [vmem:[%s292 + $0x60] sm:$0xf]
        %v318 = vld [vmem:[%s292 + $0x64] sm:$0xf]
        %v319 = vld [vmem:[%s292 + $0x68] sm:$0x1]
        %v320 = vld [vmem:[%s292 + $0x6c] sm:$0xf]
        %v321 = vld [vmem:[%s292 + $0x70] sm:$0xf]
        %v322 = vld [vmem:[%s292 + $0x74] sm:$0x1]
        %v323 = vld [vmem:[%s292 + $0x78] sm:$0xf]
        %v324 = vld [vmem:[%s292 + $0x7c] sm:$0xf]
        %v325 = vld [vmem:[%s292 + $0x80] sm:$0x1]
        %v326 = vld [vmem:[%s292 + $0x84] sm:$0xf]
        %v327 = vld [vmem:[%s292 + $0x88] sm:$0xf]
        %v328 = vld [vmem:[%s292 + $0x8c] sm:$0x1]
        %v329 = vld [vmem:[%s292 + $0x90] sm:$0xf]
        %v330 = vld [vmem:[%s292 + $0x94] sm:$0xf]
        %v331 = vld [vmem:[%s292 + $0x98] sm:$0x1]
        %v332 = vld [vmem:[%s292 + $0x9c] sm:$0xf]
        %v333 = vld [vmem:[%s292 + $0xa0] sm:$0xf]
        %v334 = vld [vmem:[%s292 + $0xa4] sm:$0x1]
        %v335 = vld [vmem:[%s292 + $0xa8] sm:$0xf]
        %v336 = vld [vmem:[%s292 + $0xac] sm:$0xf]
        %v337 = vld [vmem:[%s292 + $0xb0] sm:$0x1]
        %v338 = vld [vmem:[%s292 + $0xb4] sm:$0xf]
        %v339 = vld [vmem:[%s292 + $0xb8] sm:$0xf]
        %v340 = vld [vmem:[%s292 + $0xbc] sm:$0x1]
        %v373 = vunpack.c.l.b16 %v189
        %v374 = vunpack.c.l.b16 %v190
        %v375 = vunpack.c.l.b16 %v192
        %v376 = vunpack.c.l.b16 %v193
        %v377 = vunpack.c.l.b16 %v195
        %v378 = vunpack.c.l.b16 %v196
        %v379 = vunpack.c.l.b16 %v198
        %v380 = vunpack.c.l.b16 %v199
        %v381 = vunpack.c.l.b16 %v201
        %v382 = vunpack.c.l.b16 %v202
        %v383 = vunpack.c.l.b16 %v204
        %v384 = vunpack.c.l.b16 %v205
        %v385 = vunpack.c.l.b16 %v207
        %v386 = vunpack.c.l.b16 %v208
        %v387 = vunpack.c.l.b16 %v210
        %v388 = vunpack.c.l.b16 %v211
        %v389 = vunpack.c.l.b16 %v213
        %v390 = vunpack.c.l.b16 %v214
        %v391 = vunpack.c.l.b16 %v216
        %v392 = vunpack.c.l.b16 %v217
        %v393 = vunpack.c.l.b16 %v219
        %v394 = vunpack.c.l.b16 %v220
        %v395 = vunpack.c.l.b16 %v222
        %v396 = vunpack.c.l.b16 %v223
        %v397 = vunpack.c.l.b16 %v225
        %v398 = vunpack.c.l.b16 %v226
        %v399 = vunpack.c.l.b16 %v228
        %v400 = vunpack.c.l.b16 %v229
        %v401 = vunpack.c.l.b16 %v231
        %v402 = vunpack.c.l.b16 %v232
        %v403 = vunpack.c.l.b16 %v234
        %v404 = vunpack.c.l.b16 %v235
        %v405 = vpack.c.b16 %v374, %v373
        %v406 = vpack.c.b16 %v376, %v375
        %v407 = vpack.c.b16 %v378, %v377
        %v408 = vpack.c.b16 %v380, %v379
        %v409 = vpack.c.b16 %v382, %v381
        %v410 = vpack.c.b16 %v384, %v383
        %v411 = vpack.c.b16 %v386, %v385
        %v412 = vpack.c.b16 %v388, %v387
        %v413 = vpack.c.b16 %v390, %v389
        %v414 = vpack.c.b16 %v392, %v391
        %v415 = vpack.c.b16 %v394, %v393
        %v416 = vpack.c.b16 %v396, %v395
        %v417 = vpack.c.b16 %v398, %v397
        %v418 = vpack.c.b16 %v400, %v399
        %v419 = vpack.c.b16 %v402, %v401
        %v420 = vpack.c.b16 %v404, %v403
        %v453 = vunpack.c.l.b16 %v191
        %v454 = vunpack.c.l.b16 %v194
        %v455 = vunpack.c.l.b16 %v197
        %v456 = vunpack.c.l.b16 %v200
        %v457 = vunpack.c.l.b16 %v203
        %v458 = vunpack.c.l.b16 %v206
        %v459 = vunpack.c.l.b16 %v209
        %v460 = vunpack.c.l.b16 %v212
        %v461 = vunpack.c.l.b16 %v215
        %v462 = vunpack.c.l.b16 %v218
        %v463 = vunpack.c.l.b16 %v221
        %v464 = vunpack.c.l.b16 %v224
        %v465 = vunpack.c.l.b16 %v227
        %v466 = vunpack.c.l.b16 %v230
        %v467 = vunpack.c.l.b16 %v233
        %v468 = vunpack.c.l.b16 %v236
        %v469 = vpack.c.b16 %v453, %v453
        %v470 = vpack.c.b16 %v454, %v454
        %v471 = vpack.c.b16 %v455, %v455
        %v472 = vpack.c.b16 %v456, %v456
        %v473 = vpack.c.b16 %v457, %v457
        %v474 = vpack.c.b16 %v458, %v458
        %v475 = vpack.c.b16 %v459, %v459
        %v476 = vpack.c.b16 %v460, %v460
        %v477 = vpack.c.b16 %v461, %v461
        %v478 = vpack.c.b16 %v462, %v462
        %v479 = vpack.c.b16 %v463, %v463
        %v480 = vpack.c.b16 %v464, %v464
        %v481 = vpack.c.b16 %v465, %v465
        %v482 = vpack.c.b16 %v466, %v466
        %v483 = vpack.c.b16 %v467, %v467
        %v484 = vpack.c.b16 %v468, %v468
        %vm485 = vsmask.f32 7424
        %v487 = vshrl.u32 %v405, 16
        %v489 = vshll.u32 %v405, 16
        %v491 = vrot.slane %v489, 1
        %v492 = vor.u32 %v487, %v491
        %v494 = vshll.u32 %v469, 16
        %v496 = vrot.slane %v494, 1
        %v497 = vsel %vm485, %v492, %v496
        %v499 = vshrl.u32 %v406, 16
        %v501 = vshll.u32 %v406, 16
        %v503 = vrot.slane %v501, 1
        %v504 = vor.u32 %v499, %v503
        %v506 = vshll.u32 %v470, 16
        %v508 = vrot.slane %v506, 1
        %v509 = vsel %vm485, %v504, %v508
        %v511 = vshrl.u32 %v407, 16
        %v513 = vshll.u32 %v407, 16
        %v515 = vrot.slane %v513, 1
        %v516 = vor.u32 %v511, %v515
        %v518 = vshll.u32 %v471, 16
        %v520 = vrot.slane %v518, 1
        %v521 = vsel %vm485, %v516, %v520
        %v523 = vshrl.u32 %v408, 16
        %v525 = vshll.u32 %v408, 16
        %v527 = vrot.slane %v525, 1
        %v528 = vor.u32 %v523, %v527
        %v530 = vshll.u32 %v472, 16
        %v532 = vrot.slane %v530, 1
        %v533 = vsel %vm485, %v528, %v532
        %v535 = vshrl.u32 %v409, 16
        %v537 = vshll.u32 %v409, 16
        %v539 = vrot.slane %v537, 1
        %v540 = vor.u32 %v535, %v539
        %v542 = vshll.u32 %v473, 16
        %v544 = vrot.slane %v542, 1
        %v545 = vsel %vm485, %v540, %v544
        %v547 = vshrl.u32 %v410, 16
        %v549 = vshll.u32 %v410, 16
        %v551 = vrot.slane %v549, 1
        %v552 = vor.u32 %v547, %v551
        %v554 = vshll.u32 %v474, 16
        %v556 = vrot.slane %v554, 1
        %v557 = vsel %vm485, %v552, %v556
        %v559 = vshrl.u32 %v411, 16
        %v561 = vshll.u32 %v411, 16
        %v563 = vrot.slane %v561, 1
        %v564 = vor.u32 %v559, %v563
        %v566 = vshll.u32 %v475, 16
        %v568 = vrot.slane %v566, 1
        %v569 = vsel %vm485, %v564, %v568
        %v571 = vshrl.u32 %v412, 16
        %v573 = vshll.u32 %v412, 16
        %v575 = vrot.slane %v573, 1
        %v576 = vor.u32 %v571, %v575
        %v578 = vshll.u32 %v476, 16
        %v580 = vrot.slane %v578, 1
        %v581 = vsel %vm485, %v576, %v580
        %v583 = vshrl.u32 %v413, 16
        %v585 = vshll.u32 %v413, 16
        %v587 = vrot.slane %v585, 1
        %v588 = vor.u32 %v583, %v587
        %v590 = vshll.u32 %v477, 16
        %v592 = vrot.slane %v590, 1
        %v593 = vsel %vm485, %v588, %v592
        %v595 = vshrl.u32 %v414, 16
        %v597 = vshll.u32 %v414, 16
        %v599 = vrot.slane %v597, 1
        %v600 = vor.u32 %v595, %v599
        %v602 = vshll.u32 %v478, 16
        %v604 = vrot.slane %v602, 1
        %v605 = vsel %vm485, %v600, %v604
        %v607 = vshrl.u32 %v415, 16
        %v609 = vshll.u32 %v415, 16
        %v611 = vrot.slane %v609, 1
        %v612 = vor.u32 %v607, %v611
        %v614 = vshll.u32 %v479, 16
        %v616 = vrot.slane %v614, 1
        %v617 = vsel %vm485, %v612, %v616
        %v619 = vshrl.u32 %v416, 16
        %v621 = vshll.u32 %v416, 16
        %v623 = vrot.slane %v621, 1
        %v624 = vor.u32 %v619, %v623
        %v626 = vshll.u32 %v480, 16
        %v628 = vrot.slane %v626, 1
        %v629 = vsel %vm485, %v624, %v628
        %v631 = vshrl.u32 %v417, 16
        %v633 = vshll.u32 %v417, 16
        %v635 = vrot.slane %v633, 1
        %v636 = vor.u32 %v631, %v635
        %v638 = vshll.u32 %v481, 16
        %v640 = vrot.slane %v638, 1
        %v641 = vsel %vm485, %v636, %v640
        %v643 = vshrl.u32 %v418, 16
        %v645 = vshll.u32 %v418, 16
        %v647 = vrot.slane %v645, 1
        %v648 = vor.u32 %v643, %v647
        %v650 = vshll.u32 %v482, 16
        %v652 = vrot.slane %v650, 1
        %v653 = vsel %vm485, %v648, %v652
        %v655 = vshrl.u32 %v419, 16
        %v657 = vshll.u32 %v419, 16
        %v659 = vrot.slane %v657, 1
        %v660 = vor.u32 %v655, %v659
        %v662 = vshll.u32 %v483, 16
        %v664 = vrot.slane %v662, 1
        %v665 = vsel %vm485, %v660, %v664
        %v667 = vshrl.u32 %v420, 16
        %v669 = vshll.u32 %v420, 16
        %v671 = vrot.slane %v669, 1
        %v672 = vor.u32 %v667, %v671
        %v674 = vshll.u32 %v484, 16
        %v676 = vrot.slane %v674, 1
        %v677 = vsel %vm485, %v672, %v676
        %vm694 = vcmask 1046528
        %v695 = vrot.slane %v405, 1
        %v696 = vrot.slane %v469, 1
        %v697 = vsel %vm694, %v695, %v696
        %v698 = vrot.slane %v406, 1
        %v699 = vrot.slane %v470, 1
        %v700 = vsel %vm694, %v698, %v699
        %v701 = vrot.slane %v407, 1
        %v702 = vrot.slane %v471, 1
        %v703 = vsel %vm694, %v701, %v702
        %v704 = vrot.slane %v408, 1
        %v705 = vrot.slane %v472, 1
        %v706 = vsel %vm694, %v704, %v705
        %v707 = vrot.slane %v409, 1
        %v708 = vrot.slane %v473, 1
        %v709 = vsel %vm694, %v707, %v708
        %v710 = vrot.slane %v410, 1
        %v711 = vrot.slane %v474, 1
        %v712 = vsel %vm694, %v710, %v711
        %v713 = vrot.slane %v411, 1
        %v714 = vrot.slane %v475, 1
        %v715 = vsel %vm694, %v713, %v714
        %v716 = vrot.slane %v412, 1
        %v717 = vrot.slane %v476, 1
        %v718 = vsel %vm694, %v716, %v717
        %v719 = vrot.slane %v413, 1
        %v720 = vrot.slane %v477, 1
        %v721 = vsel %vm694, %v719, %v720
        %v722 = vrot.slane %v414, 1
        %v723 = vrot.slane %v478, 1
        %v724 = vsel %vm694, %v722, %v723
        %v725 = vrot.slane %v415, 1
        %v726 = vrot.slane %v479, 1
        %v727 = vsel %vm694, %v725, %v726
        %v728 = vrot.slane %v416, 1
        %v729 = vrot.slane %v480, 1
        %v730 = vsel %vm694, %v728, %v729
        %v731 = vrot.slane %v417, 1
        %v732 = vrot.slane %v481, 1
        %v733 = vsel %vm694, %v731, %v732
        %v734 = vrot.slane %v418, 1
        %v735 = vrot.slane %v482, 1
        %v736 = vsel %vm694, %v734, %v735
        %v737 = vrot.slane %v419, 1
        %v738 = vrot.slane %v483, 1
        %v739 = vsel %vm694, %v737, %v738
        %v740 = vrot.slane %v420, 1
        %v741 = vrot.slane %v484, 1
        %v742 = vsel %vm694, %v740, %v741
        %v791 = vunpack.c.l.b16 %v241
        %v792 = vunpack.c.l.b16 %v242
        %v793 = vunpack.c.l.b16 %v244
        %v794 = vunpack.c.l.b16 %v245
        %v795 = vunpack.c.l.b16 %v247
        %v796 = vunpack.c.l.b16 %v248
        %v797 = vunpack.c.l.b16 %v250
        %v798 = vunpack.c.l.b16 %v251
        %v799 = vunpack.c.l.b16 %v253
        %v800 = vunpack.c.l.b16 %v254
        %v801 = vunpack.c.l.b16 %v256
        %v802 = vunpack.c.l.b16 %v257
        %v803 = vunpack.c.l.b16 %v259
        %v804 = vunpack.c.l.b16 %v260
        %v805 = vunpack.c.l.b16 %v262
        %v806 = vunpack.c.l.b16 %v263
        %v807 = vunpack.c.l.b16 %v265
        %v808 = vunpack.c.l.b16 %v266
        %v809 = vunpack.c.l.b16 %v268
        %v810 = vunpack.c.l.b16 %v269
        %v811 = vunpack.c.l.b16 %v271
        %v812 = vunpack.c.l.b16 %v272
        %v813 = vunpack.c.l.b16 %v274
        %v814 = vunpack.c.l.b16 %v275
        %v815 = vunpack.c.l.b16 %v277
        %v816 = vunpack.c.l.b16 %v278
        %v817 = vunpack.c.l.b16 %v280
        %v818 = vunpack.c.l.b16 %v281
        %v819 = vunpack.c.l.b16 %v283
        %v820 = vunpack.c.l.b16 %v284
        %v821 = vunpack.c.l.b16 %v286
        %v822 = vunpack.c.l.b16 %v287
        %v823 = vpack.c.b16 %v792, %v791
        %v824 = vpack.c.b16 %v794, %v793
        %v825 = vpack.c.b16 %v796, %v795
        %v826 = vpack.c.b16 %v798, %v797
        %v827 = vpack.c.b16 %v800, %v799
        %v828 = vpack.c.b16 %v802, %v801
        %v829 = vpack.c.b16 %v804, %v803
        %v830 = vpack.c.b16 %v806, %v805
        %v831 = vpack.c.b16 %v808, %v807
        %v832 = vpack.c.b16 %v810, %v809
        %v833 = vpack.c.b16 %v812, %v811
        %v834 = vpack.c.b16 %v814, %v813
        %v835 = vpack.c.b16 %v816, %v815
        %v836 = vpack.c.b16 %v818, %v817
        %v837 = vpack.c.b16 %v820, %v819
        %v838 = vpack.c.b16 %v822, %v821
        %v871 = vunpack.c.l.b16 %v243
        %v872 = vunpack.c.l.b16 %v246
        %v873 = vunpack.c.l.b16 %v249
        %v874 = vunpack.c.l.b16 %v252
        %v875 = vunpack.c.l.b16 %v255
        %v876 = vunpack.c.l.b16 %v258
        %v877 = vunpack.c.l.b16 %v261
        %v878 = vunpack.c.l.b16 %v264
        %v879 = vunpack.c.l.b16 %v267
        %v880 = vunpack.c.l.b16 %v270
        %v881 = vunpack.c.l.b16 %v273
        %v882 = vunpack.c.l.b16 %v276
        %v883 = vunpack.c.l.b16 %v279
        %v884 = vunpack.c.l.b16 %v282
        %v885 = vunpack.c.l.b16 %v285
        %v886 = vunpack.c.l.b16 %v288
        %v887 = vpack.c.b16 %v871, %v871
        %v888 = vpack.c.b16 %v872, %v872
        %v889 = vpack.c.b16 %v873, %v873
        %v890 = vpack.c.b16 %v874, %v874
        %v891 = vpack.c.b16 %v875, %v875
        %v892 = vpack.c.b16 %v876, %v876
        %v893 = vpack.c.b16 %v877, %v877
        %v894 = vpack.c.b16 %v878, %v878
        %v895 = vpack.c.b16 %v879, %v879
        %v896 = vpack.c.b16 %v880, %v880
        %v897 = vpack.c.b16 %v881, %v881
        %v898 = vpack.c.b16 %v882, %v882
        %v899 = vpack.c.b16 %v883, %v883
        %v900 = vpack.c.b16 %v884, %v884
        %v901 = vpack.c.b16 %v885, %v885
        %v902 = vpack.c.b16 %v886, %v886
        %v904 = vshrl.u32 %v823, 16
        %v906 = vshll.u32 %v823, 16
        %v908 = vrot.slane %v906, 1
        %v909 = vor.u32 %v904, %v908
        %v911 = vshll.u32 %v887, 16
        %v913 = vrot.slane %v911, 1
        %v914 = vsel %vm485, %v909, %v913
        %v916 = vshrl.u32 %v824, 16
        %v918 = vshll.u32 %v824, 16
        %v920 = vrot.slane %v918, 1
        %v921 = vor.u32 %v916, %v920
        %v923 = vshll.u32 %v888, 16
        %v925 = vrot.slane %v923, 1
        %v926 = vsel %vm485, %v921, %v925
        %v928 = vshrl.u32 %v825, 16
        %v930 = vshll.u32 %v825, 16
        %v932 = vrot.slane %v930, 1
        %v933 = vor.u32 %v928, %v932
        %v935 = vshll.u32 %v889, 16
        %v937 = vrot.slane %v935, 1
        %v938 = vsel %vm485, %v933, %v937
        %v940 = vshrl.u32 %v826, 16
        %v942 = vshll.u32 %v826, 16
        %v944 = vrot.slane %v942, 1
        %v945 = vor.u32 %v940, %v944
        %v947 = vshll.u32 %v890, 16
        %v949 = vrot.slane %v947, 1
        %v950 = vsel %vm485, %v945, %v949
        %v952 = vshrl.u32 %v827, 16
        %v954 = vshll.u32 %v827, 16
        %v956 = vrot.slane %v954, 1
        %v957 = vor.u32 %v952, %v956
        %v959 = vshll.u32 %v891, 16
        %v961 = vrot.slane %v959, 1
        %v962 = vsel %vm485, %v957, %v961
        %v964 = vshrl.u32 %v828, 16
        %v966 = vshll.u32 %v828, 16
        %v968 = vrot.slane %v966, 1
        %v969 = vor.u32 %v964, %v968
        %v971 = vshll.u32 %v892, 16
        %v973 = vrot.slane %v971, 1
        %v974 = vsel %vm485, %v969, %v973
        %v976 = vshrl.u32 %v829, 16
        %v978 = vshll.u32 %v829, 16
        %v980 = vrot.slane %v978, 1
        %v981 = vor.u32 %v976, %v980
        %v983 = vshll.u32 %v893, 16
        %v985 = vrot.slane %v983, 1
        %v986 = vsel %vm485, %v981, %v985
        %v988 = vshrl.u32 %v830, 16
        %v990 = vshll.u32 %v830, 16
        %v992 = vrot.slane %v990, 1
        %v993 = vor.u32 %v988, %v992
        %v995 = vshll.u32 %v894, 16
        %v997 = vrot.slane %v995, 1
        %v998 = vsel %vm485, %v993, %v997
        %v1000 = vshrl.u32 %v831, 16
        %v1002 = vshll.u32 %v831, 16
        %v1004 = vrot.slane %v1002, 1
        %v1005 = vor.u32 %v1000, %v1004
        %v1007 = vshll.u32 %v895, 16
        %v1009 = vrot.slane %v1007, 1
        %v1010 = vsel %vm485, %v1005, %v1009
        %v1012 = vshrl.u32 %v832, 16
        %v1014 = vshll.u32 %v832, 16
        %v1016 = vrot.slane %v1014, 1
        %v1017 = vor.u32 %v1012, %v1016
        %v1019 = vshll.u32 %v896, 16
        %v1021 = vrot.slane %v1019, 1
        %v1022 = vsel %vm485, %v1017, %v1021
        %v1024 = vshrl.u32 %v833, 16
        %v1026 = vshll.u32 %v833, 16
        %v1028 = vrot.slane %v1026, 1
        %v1029 = vor.u32 %v1024, %v1028
        %v1031 = vshll.u32 %v897, 16
        %v1033 = vrot.slane %v1031, 1
        %v1034 = vsel %vm485, %v1029, %v1033
        %v1036 = vshrl.u32 %v834, 16
        %v1038 = vshll.u32 %v834, 16
        %v1040 = vrot.slane %v1038, 1
        %v1041 = vor.u32 %v1036, %v1040
        %v1043 = vshll.u32 %v898, 16
        %v1045 = vrot.slane %v1043, 1
        %v1046 = vsel %vm485, %v1041, %v1045
        %v1048 = vshrl.u32 %v835, 16
        %v1050 = vshll.u32 %v835, 16
        %v1052 = vrot.slane %v1050, 1
        %v1053 = vor.u32 %v1048, %v1052
        %v1055 = vshll.u32 %v899, 16
        %v1057 = vrot.slane %v1055, 1
        %v1058 = vsel %vm485, %v1053, %v1057
        %v1060 = vshrl.u32 %v836, 16
        %v1062 = vshll.u32 %v836, 16
        %v1064 = vrot.slane %v1062, 1
        %v1065 = vor.u32 %v1060, %v1064
        %v1067 = vshll.u32 %v900, 16
        %v1069 = vrot.slane %v1067, 1
        %v1070 = vsel %vm485, %v1065, %v1069
        %v1072 = vshrl.u32 %v837, 16
        %v1074 = vshll.u32 %v837, 16
        %v1076 = vrot.slane %v1074, 1
        %v1077 = vor.u32 %v1072, %v1076
        %v1079 = vshll.u32 %v901, 16
        %v1081 = vrot.slane %v1079, 1
        %v1082 = vsel %vm485, %v1077, %v1081
        %v1084 = vshrl.u32 %v838, 16
        %v1086 = vshll.u32 %v838, 16
        %v1088 = vrot.slane %v1086, 1
        %v1089 = vor.u32 %v1084, %v1088
        %v1091 = vshll.u32 %v902, 16
        %v1093 = vrot.slane %v1091, 1
        %v1094 = vsel %vm485, %v1089, %v1093
        %v1111 = vrot.slane %v823, 1
        %v1112 = vrot.slane %v887, 1
        %v1113 = vsel %vm694, %v1111, %v1112
        %v1114 = vrot.slane %v824, 1
        %v1115 = vrot.slane %v888, 1
        %v1116 = vsel %vm694, %v1114, %v1115
        %v1117 = vrot.slane %v825, 1
        %v1118 = vrot.slane %v889, 1
        %v1119 = vsel %vm694, %v1117, %v1118
        %v1120 = vrot.slane %v826, 1
        %v1121 = vrot.slane %v890, 1
        %v1122 = vsel %vm694, %v1120, %v1121
        %v1123 = vrot.slane %v827, 1
        %v1124 = vrot.slane %v891, 1
        %v1125 = vsel %vm694, %v1123, %v1124
        %v1126 = vrot.slane %v828, 1
        %v1127 = vrot.slane %v892, 1
        %v1128 = vsel %vm694, %v1126, %v1127
        %v1129 = vrot.slane %v829, 1
        %v1130 = vrot.slane %v893, 1
        %v1131 = vsel %vm694, %v1129, %v1130
        %v1132 = vrot.slane %v830, 1
        %v1133 = vrot.slane %v894, 1
        %v1134 = vsel %vm694, %v1132, %v1133
        %v1135 = vrot.slane %v831, 1
        %v1136 = vrot.slane %v895, 1
        %v1137 = vsel %vm694, %v1135, %v1136
        %v1138 = vrot.slane %v832, 1
        %v1139 = vrot.slane %v896, 1
        %v1140 = vsel %vm694, %v1138, %v1139
        %v1141 = vrot.slane %v833, 1
        %v1142 = vrot.slane %v897, 1
        %v1143 = vsel %vm694, %v1141, %v1142
        %v1144 = vrot.slane %v834, 1
        %v1145 = vrot.slane %v898, 1
        %v1146 = vsel %vm694, %v1144, %v1145
        %v1147 = vrot.slane %v835, 1
        %v1148 = vrot.slane %v899, 1
        %v1149 = vsel %vm694, %v1147, %v1148
        %v1150 = vrot.slane %v836, 1
        %v1151 = vrot.slane %v900, 1
        %v1152 = vsel %vm694, %v1150, %v1151
        %v1153 = vrot.slane %v837, 1
        %v1154 = vrot.slane %v901, 1
        %v1155 = vsel %vm694, %v1153, %v1154
        %v1156 = vrot.slane %v838, 1
        %v1157 = vrot.slane %v902, 1
        %v1158 = vsel %vm694, %v1156, %v1157
        %v1207 = vunpack.c.l.b16 %v293
        %v1208 = vunpack.c.l.b16 %v294
        %v1209 = vunpack.c.l.b16 %v296
        %v1210 = vunpack.c.l.b16 %v297
        %v1211 = vunpack.c.l.b16 %v299
        %v1212 = vunpack.c.l.b16 %v300
        %v1213 = vunpack.c.l.b16 %v302
        %v1214 = vunpack.c.l.b16 %v303
        %v1215 = vunpack.c.l.b16 %v305
        %v1216 = vunpack.c.l.b16 %v306
        %v1217 = vunpack.c.l.b16 %v308
        %v1218 = vunpack.c.l.b16 %v309
        %v1219 = vunpack.c.l.b16 %v311
        %v1220 = vunpack.c.l.b16 %v312
        %v1221 = vunpack.c.l.b16 %v314
        %v1222 = vunpack.c.l.b16 %v315
        %v1223 = vunpack.c.l.b16 %v317
        %v1224 = vunpack.c.l.b16 %v318
        %v1225 = vunpack.c.l.b16 %v320
        %v1226 = vunpack.c.l.b16 %v321
        %v1227 = vunpack.c.l.b16 %v323
        %v1228 = vunpack.c.l.b16 %v324
        %v1229 = vunpack.c.l.b16 %v326
        %v1230 = vunpack.c.l.b16 %v327
        %v1231 = vunpack.c.l.b16 %v329
        %v1232 = vunpack.c.l.b16 %v330
        %v1233 = vunpack.c.l.b16 %v332
        %v1234 = vunpack.c.l.b16 %v333
        %v1235 = vunpack.c.l.b16 %v335
        %v1236 = vunpack.c.l.b16 %v336
        %v1237 = vunpack.c.l.b16 %v338
        %v1238 = vunpack.c.l.b16 %v339
        %v1239 = vpack.c.b16 %v1208, %v1207
        %v1240 = vpack.c.b16 %v1210, %v1209
        %v1241 = vpack.c.b16 %v1212, %v1211
        %v1242 = vpack.c.b16 %v1214, %v1213
        %v1243 = vpack.c.b16 %v1216, %v1215
        %v1244 = vpack.c.b16 %v1218, %v1217
        %v1245 = vpack.c.b16 %v1220, %v1219
        %v1246 = vpack.c.b16 %v1222, %v1221
        %v1247 = vpack.c.b16 %v1224, %v1223
        %v1248 = vpack.c.b16 %v1226, %v1225
        %v1249 = vpack.c.b16 %v1228, %v1227
        %v1250 = vpack.c.b16 %v1230, %v1229
        %v1251 = vpack.c.b16 %v1232, %v1231
        %v1252 = vpack.c.b16 %v1234, %v1233
        %v1253 = vpack.c.b16 %v1236, %v1235
        %v1254 = vpack.c.b16 %v1238, %v1237
        %v1287 = vunpack.c.l.b16 %v295
        %v1288 = vunpack.c.l.b16 %v298
        %v1289 = vunpack.c.l.b16 %v301
        %v1290 = vunpack.c.l.b16 %v304
        %v1291 = vunpack.c.l.b16 %v307
        %v1292 = vunpack.c.l.b16 %v310
        %v1293 = vunpack.c.l.b16 %v313
        %v1294 = vunpack.c.l.b16 %v316
        %v1295 = vunpack.c.l.b16 %v319
        %v1296 = vunpack.c.l.b16 %v322
        %v1297 = vunpack.c.l.b16 %v325
        %v1298 = vunpack.c.l.b16 %v328
        %v1299 = vunpack.c.l.b16 %v331
        %v1300 = vunpack.c.l.b16 %v334
        %v1301 = vunpack.c.l.b16 %v337
        %v1302 = vunpack.c.l.b16 %v340
        %v1303 = vpack.c.b16 %v1287, %v1287
        %v1304 = vpack.c.b16 %v1288, %v1288
        %v1305 = vpack.c.b16 %v1289, %v1289
        %v1306 = vpack.c.b16 %v1290, %v1290
        %v1307 = vpack.c.b16 %v1291, %v1291
        %v1308 = vpack.c.b16 %v1292, %v1292
        %v1309 = vpack.c.b16 %v1293, %v1293
        %v1310 = vpack.c.b16 %v1294, %v1294
        %v1311 = vpack.c.b16 %v1295, %v1295
        %v1312 = vpack.c.b16 %v1296, %v1296
        %v1313 = vpack.c.b16 %v1297, %v1297
        %v1314 = vpack.c.b16 %v1298, %v1298
        %v1315 = vpack.c.b16 %v1299, %v1299
        %v1316 = vpack.c.b16 %v1300, %v1300
        %v1317 = vpack.c.b16 %v1301, %v1301
        %v1318 = vpack.c.b16 %v1302, %v1302
        %v1320 = vshrl.u32 %v1239, 16
        %v1322 = vshll.u32 %v1239, 16
        %v1324 = vrot.slane %v1322, 1
        %v1325 = vor.u32 %v1320, %v1324
        %v1327 = vshll.u32 %v1303, 16
        %v1329 = vrot.slane %v1327, 1
        %v1330 = vsel %vm485, %v1325, %v1329
        %v1332 = vshrl.u32 %v1240, 16
        %v1334 = vshll.u32 %v1240, 16
        %v1336 = vrot.slane %v1334, 1
        %v1337 = vor.u32 %v1332, %v1336
        %v1339 = vshll.u32 %v1304, 16
        %v1341 = vrot.slane %v1339, 1
        %v1342 = vsel %vm485, %v1337, %v1341
        %v1344 = vshrl.u32 %v1241, 16
        %v1346 = vshll.u32 %v1241, 16
        %v1348 = vrot.slane %v1346, 1
        %v1349 = vor.u32 %v1344, %v1348
        %v1351 = vshll.u32 %v1305, 16
        %v1353 = vrot.slane %v1351, 1
        %v1354 = vsel %vm485, %v1349, %v1353
        %v1356 = vshrl.u32 %v1242, 16
        %v1358 = vshll.u32 %v1242, 16
        %v1360 = vrot.slane %v1358, 1
        %v1361 = vor.u32 %v1356, %v1360
        %v1363 = vshll.u32 %v1306, 16
        %v1365 = vrot.slane %v1363, 1
        %v1366 = vsel %vm485, %v1361, %v1365
        %v1368 = vshrl.u32 %v1243, 16
        %v1370 = vshll.u32 %v1243, 16
        %v1372 = vrot.slane %v1370, 1
        %v1373 = vor.u32 %v1368, %v1372
        %v1375 = vshll.u32 %v1307, 16
        %v1377 = vrot.slane %v1375, 1
        %v1378 = vsel %vm485, %v1373, %v1377
        %v1380 = vshrl.u32 %v1244, 16
        %v1382 = vshll.u32 %v1244, 16
        %v1384 = vrot.slane %v1382, 1
        %v1385 = vor.u32 %v1380, %v1384
        %v1387 = vshll.u32 %v1308, 16
        %v1389 = vrot.slane %v1387, 1
        %v1390 = vsel %vm485, %v1385, %v1389
        %v1392 = vshrl.u32 %v1245, 16
        %v1394 = vshll.u32 %v1245, 16
        %v1396 = vrot.slane %v1394, 1
        %v1397 = vor.u32 %v1392, %v1396
        %v1399 = vshll.u32 %v1309, 16
        %v1401 = vrot.slane %v1399, 1
        %v1402 = vsel %vm485, %v1397, %v1401
        %v1404 = vshrl.u32 %v1246, 16
        %v1406 = vshll.u32 %v1246, 16
        %v1408 = vrot.slane %v1406, 1
        %v1409 = vor.u32 %v1404, %v1408
        %v1411 = vshll.u32 %v1310, 16
        %v1413 = vrot.slane %v1411, 1
        %v1414 = vsel %vm485, %v1409, %v1413
        %v1416 = vshrl.u32 %v1247, 16
        %v1418 = vshll.u32 %v1247, 16
        %v1420 = vrot.slane %v1418, 1
        %v1421 = vor.u32 %v1416, %v1420
        %v1423 = vshll.u32 %v1311, 16
        %v1425 = vrot.slane %v1423, 1
        %v1426 = vsel %vm485, %v1421, %v1425
        %v1428 = vshrl.u32 %v1248, 16
        %v1430 = vshll.u32 %v1248, 16
        %v1432 = vrot.slane %v1430, 1
        %v1433 = vor.u32 %v1428, %v1432
        %v1435 = vshll.u32 %v1312, 16
        %v1437 = vrot.slane %v1435, 1
        %v1438 = vsel %vm485, %v1433, %v1437
        %v1440 = vshrl.u32 %v1249, 16
        %v1442 = vshll.u32 %v1249, 16
        %v1444 = vrot.slane %v1442, 1
        %v1445 = vor.u32 %v1440, %v1444
        %v1447 = vshll.u32 %v1313, 16
        %v1449 = vrot.slane %v1447, 1
        %v1450 = vsel %vm485, %v1445, %v1449
        %v1452 = vshrl.u32 %v1250, 16
        %v1454 = vshll.u32 %v1250, 16
        %v1456 = vrot.slane %v1454, 1
        %v1457 = vor.u32 %v1452, %v1456
        %v1459 = vshll.u32 %v1314, 16
        %v1461 = vrot.slane %v1459, 1
        %v1462 = vsel %vm485, %v1457, %v1461
        %v1464 = vshrl.u32 %v1251, 16
        %v1466 = vshll.u32 %v1251, 16
        %v1468 = vrot.slane %v1466, 1
        %v1469 = vor.u32 %v1464, %v1468
        %v1471 = vshll.u32 %v1315, 16
        %v1473 = vrot.slane %v1471, 1
        %v1474 = vsel %vm485, %v1469, %v1473
        %v1476 = vshrl.u32 %v1252, 16
        %v1478 = vshll.u32 %v1252, 16
        %v1480 = vrot.slane %v1478, 1
        %v1481 = vor.u32 %v1476, %v1480
        %v1483 = vshll.u32 %v1316, 16
        %v1485 = vrot.slane %v1483, 1
        %v1486 = vsel %vm485, %v1481, %v1485
        %v1488 = vshrl.u32 %v1253, 16
        %v1490 = vshll.u32 %v1253, 16
        %v1492 = vrot.slane %v1490, 1
        %v1493 = vor.u32 %v1488, %v1492
        %v1495 = vshll.u32 %v1317, 16
        %v1497 = vrot.slane %v1495, 1
        %v1498 = vsel %vm485, %v1493, %v1497
        %v1500 = vshrl.u32 %v1254, 16
        %v1502 = vshll.u32 %v1254, 16
        %v1504 = vrot.slane %v1502, 1
        %v1505 = vor.u32 %v1500, %v1504
        %v1507 = vshll.u32 %v1318, 16
        %v1509 = vrot.slane %v1507, 1
        %v1510 = vsel %vm485, %v1505, %v1509
        %v1527 = vrot.slane %v1239, 1
        %v1528 = vrot.slane %v1303, 1
        %v1529 = vsel %vm694, %v1527, %v1528
        %v1530 = vrot.slane %v1240, 1
        %v1531 = vrot.slane %v1304, 1
        %v1532 = vsel %vm694, %v1530, %v1531
        %v1533 = vrot.slane %v1241, 1
        %v1534 = vrot.slane %v1305, 1
        %v1535 = vsel %vm694, %v1533, %v1534
        %v1536 = vrot.slane %v1242, 1
        %v1537 = vrot.slane %v1306, 1
        %v1538 = vsel %vm694, %v1536, %v1537
        %v1539 = vrot.slane %v1243, 1
        %v1540 = vrot.slane %v1307, 1
        %v1541 = vsel %vm694, %v1539, %v1540
        %v1542 = vrot.slane %v1244, 1
        %v1543 = vrot.slane %v1308, 1
        %v1544 = vsel %vm694, %v1542, %v1543
        %v1545 = vrot.slane %v1245, 1
        %v1546 = vrot.slane %v1309, 1
        %v1547 = vsel %vm694, %v1545, %v1546
        %v1548 = vrot.slane %v1246, 1
        %v1549 = vrot.slane %v1310, 1
        %v1550 = vsel %vm694, %v1548, %v1549
        %v1551 = vrot.slane %v1247, 1
        %v1552 = vrot.slane %v1311, 1
        %v1553 = vsel %vm694, %v1551, %v1552
        %v1554 = vrot.slane %v1248, 1
        %v1555 = vrot.slane %v1312, 1
        %v1556 = vsel %vm694, %v1554, %v1555
        %v1557 = vrot.slane %v1249, 1
        %v1558 = vrot.slane %v1313, 1
        %v1559 = vsel %vm694, %v1557, %v1558
        %v1560 = vrot.slane %v1250, 1
        %v1561 = vrot.slane %v1314, 1
        %v1562 = vsel %vm694, %v1560, %v1561
        %v1563 = vrot.slane %v1251, 1
        %v1564 = vrot.slane %v1315, 1
        %v1565 = vsel %vm694, %v1563, %v1564
        %v1566 = vrot.slane %v1252, 1
        %v1567 = vrot.slane %v1316, 1
        %v1568 = vsel %vm694, %v1566, %v1567
        %v1569 = vrot.slane %v1253, 1
        %v1570 = vrot.slane %v1317, 1
        %v1571 = vsel %vm694, %v1569, %v1570
        %v1572 = vrot.slane %v1254, 1
        %v1573 = vrot.slane %v1318, 1
        %v1574 = vsel %vm694, %v1572, %v1573
        %v1591 = vld [vmem:[%s1] sm:$0xf]
        %v1592 = vld [vmem:[%s1 + $0x4] sm:$0xf]
        %v1593 = vld [vmem:[%s1 + $0x8] sm:$0xf]
        %v1594 = vld [vmem:[%s1 + $0xc] sm:$0xf]
        %v1595 = vld [vmem:[%s1 + $0x10] sm:$0xf]
        %v1596 = vld [vmem:[%s1 + $0x14] sm:$0xf]
        %v1597 = vld [vmem:[%s1 + $0x18] sm:$0xf]
        %v1598 = vld [vmem:[%s1 + $0x1c] sm:$0xf]
        %v1599 = vld [vmem:[%s1 + $0x20] sm:$0xf]
        %v1600 = vld [vmem:[%s1 + $0x24] sm:$0xf]
        %v1601 = vld [vmem:[%s1 + $0x28] sm:$0xf]
        %v1602 = vld [vmem:[%s1 + $0x2c] sm:$0xf]
        %v1603 = vld [vmem:[%s1 + $0x30] sm:$0xf]
        %v1604 = vld [vmem:[%s1 + $0x34] sm:$0xf]
        %v1605 = vld [vmem:[%s1 + $0x38] sm:$0xf]
        %v1606 = vld [vmem:[%s1 + $0x3c] sm:$0xf]
        %v1607 = vld [vmem:[%s1 + $0x40] sm:$0xf]
        %v1608 = vld [vmem:[%s1 + $0x44] sm:$0xf]
        %v1609 = vld [vmem:[%s1 + $0x48] sm:$0xf]
        %v1610 = vld [vmem:[%s1 + $0x4c] sm:$0xf]
        %v1611 = vld [vmem:[%s1 + $0x50] sm:$0xf]
        %v1612 = vld [vmem:[%s1 + $0x54] sm:$0xf]
        %v1613 = vld [vmem:[%s1 + $0x58] sm:$0xf]
        %v1614 = vld [vmem:[%s1 + $0x5c] sm:$0xf]
        %v1615 = vld [vmem:[%s1 + $0x60] sm:$0xf]
        %v1616 = vld [vmem:[%s1 + $0x64] sm:$0xf]
        %v1617 = vld [vmem:[%s1 + $0x68] sm:$0xf]
        %v1618 = vld [vmem:[%s1 + $0x6c] sm:$0xf]
        %v1619 = vld [vmem:[%s1 + $0x70] sm:$0xf]
        %v1620 = vld [vmem:[%s1 + $0x74] sm:$0xf]
        %v1621 = vld [vmem:[%s1 + $0x78] sm:$0xf]
        %v1622 = vld [vmem:[%s1 + $0x7c] sm:$0xf]
        %v1623 = vld [vmem:[%s1 + $0x80] sm:$0xf]
        %v1624 = vld [vmem:[%s1 + $0x84] sm:$0xf]
        %v1625 = vld [vmem:[%s1 + $0x88] sm:$0xf]
        %v1626 = vld [vmem:[%s1 + $0x8c] sm:$0xf]
        %v1627 = vld [vmem:[%s1 + $0x90] sm:$0xf]
        %v1628 = vld [vmem:[%s1 + $0x94] sm:$0xf]
        %v1629 = vld [vmem:[%s1 + $0x98] sm:$0xf]
        %v1630 = vld [vmem:[%s1 + $0x9c] sm:$0xf]
        %v1631 = vld [vmem:[%s1 + $0xa0] sm:$0xf]
        %v1632 = vld [vmem:[%s1 + $0xa4] sm:$0xf]
        %v1633 = vld [vmem:[%s1 + $0xa8] sm:$0xf]
        %v1634 = vld [vmem:[%s1 + $0xac] sm:$0xf]
        %v1635 = vld [vmem:[%s1 + $0xb0] sm:$0xf]
        %v1636 = vld [vmem:[%s1 + $0xb4] sm:$0xf]
        %v1637 = vld [vmem:[%s1 + $0xb8] sm:$0xf]
        %v1638 = vld [vmem:[%s1 + $0xbc] sm:$0xf]
        %v1639 = vld [vmem:[%s1 + $0xc0] sm:$0xf]
        %v1640 = vld [vmem:[%s1 + $0xc4] sm:$0xf]
        %v1641 = vld [vmem:[%s1 + $0xc8] sm:$0xf]
        %v1642 = vld [vmem:[%s1 + $0xcc] sm:$0xf]
        %v1643 = vld [vmem:[%s1 + $0xd0] sm:$0xf]
        %v1644 = vld [vmem:[%s1 + $0xd4] sm:$0xf]
        %v1645 = vld [vmem:[%s1 + $0xd8] sm:$0xf]
        %v1646 = vld [vmem:[%s1 + $0xdc] sm:$0xf]
        %v1647 = vld [vmem:[%s1 + $0xe0] sm:$0xf]
        %v1648 = vld [vmem:[%s1 + $0xe4] sm:$0xf]
        %v1649 = vld [vmem:[%s1 + $0xe8] sm:$0xf]
        %v1650 = vld [vmem:[%s1 + $0xec] sm:$0xf]
        %v1651 = vld [vmem:[%s1 + $0xf0] sm:$0xf]
        %v1652 = vld [vmem:[%s1 + $0xf4] sm:$0xf]
        %v1653 = vld [vmem:[%s1 + $0xf8] sm:$0xf]
        %v1654 = vld [vmem:[%s1 + $0xfc] sm:$0xf]
        %v1655 = vld [vmem:[%s1 + $0x100] sm:$0xf]
        %v1656 = vld [vmem:[%s1 + $0x104] sm:$0xf]
        %v1657 = vld [vmem:[%s1 + $0x108] sm:$0xf]
        %v1658 = vld [vmem:[%s1 + $0x10c] sm:$0xf]
        %v1659 = vld [vmem:[%s1 + $0x110] sm:$0xf]
        %v1660 = vld [vmem:[%s1 + $0x114] sm:$0xf]
        %v1661 = vld [vmem:[%s1 + $0x118] sm:$0xf]
        %v1662 = vld [vmem:[%s1 + $0x11c] sm:$0xf]
        %v1663 = vld [vmem:[%s1 + $0x120] sm:$0xf]
        %v1664 = vld [vmem:[%s1 + $0x124] sm:$0xf]
        %v1665 = vld [vmem:[%s1 + $0x128] sm:$0xf]
        %v1666 = vld [vmem:[%s1 + $0x12c] sm:$0xf]
        %v1667 = vld [vmem:[%s1 + $0x130] sm:$0xf]
        %v1668 = vld [vmem:[%s1 + $0x134] sm:$0xf]
        %v1669 = vld [vmem:[%s1 + $0x138] sm:$0xf]
        %v1670 = vld [vmem:[%s1 + $0x13c] sm:$0xf]
        %v1671 = vld [vmem:[%s1 + $0x140] sm:$0xf]
        %v1672 = vld [vmem:[%s1 + $0x144] sm:$0xf]
        %v1673 = vld [vmem:[%s1 + $0x148] sm:$0xf]
        %v1674 = vld [vmem:[%s1 + $0x14c] sm:$0xf]
        %v1675 = vld [vmem:[%s1 + $0x150] sm:$0xf]
        %v1676 = vld [vmem:[%s1 + $0x154] sm:$0xf]
        %v1677 = vld [vmem:[%s1 + $0x158] sm:$0xf]
        %v1678 = vld [vmem:[%s1 + $0x15c] sm:$0xf]
        %v1679 = vld [vmem:[%s1 + $0x160] sm:$0xf]
        %v1680 = vld [vmem:[%s1 + $0x164] sm:$0xf]
        %v1681 = vld [vmem:[%s1 + $0x168] sm:$0xf]
        %v1682 = vld [vmem:[%s1 + $0x16c] sm:$0xf]
        %v1683 = vld [vmem:[%s1 + $0x170] sm:$0xf]
        %v1684 = vld [vmem:[%s1 + $0x174] sm:$0xf]
        %v1685 = vld [vmem:[%s1 + $0x178] sm:$0xf]
        %v1686 = vld [vmem:[%s1 + $0x17c] sm:$0xf]
        %v1687 = vld [vmem:[%s1 + $0x180] sm:$0xf]
        %v1688 = vld [vmem:[%s1 + $0x184] sm:$0xf]
        %v1689 = vld [vmem:[%s1 + $0x188] sm:$0xf]
        %v1690 = vld [vmem:[%s1 + $0x18c] sm:$0xf]
        %v1691 = vld [vmem:[%s1 + $0x190] sm:$0xf]
        %v1692 = vld [vmem:[%s1 + $0x194] sm:$0xf]
        %v1693 = vld [vmem:[%s1 + $0x198] sm:$0xf]
        %v1694 = vld [vmem:[%s1 + $0x19c] sm:$0xf]
        %v1695 = vld [vmem:[%s1 + $0x1a0] sm:$0xf]
        %v1696 = vld [vmem:[%s1 + $0x1a4] sm:$0xf]
        %v1697 = vld [vmem:[%s1 + $0x1a8] sm:$0xf]
        %v1698 = vld [vmem:[%s1 + $0x1ac] sm:$0xf]
        %v1699 = vld [vmem:[%s1 + $0x1b0] sm:$0xf]
        %v1700 = vld [vmem:[%s1 + $0x1b4] sm:$0xf]
        %v1701 = vld [vmem:[%s1 + $0x1b8] sm:$0xf]
        %v1702 = vld [vmem:[%s1 + $0x1bc] sm:$0xf]
        %v1703 = vld [vmem:[%s1 + $0x1c0] sm:$0xf]
        %v1704 = vld [vmem:[%s1 + $0x1c4] sm:$0xf]
        %v1705 = vld [vmem:[%s1 + $0x1c8] sm:$0xf]
        %v1706 = vld [vmem:[%s1 + $0x1cc] sm:$0xf]
        %v1707 = vld [vmem:[%s1 + $0x1d0] sm:$0xf]
        %v1708 = vld [vmem:[%s1 + $0x1d4] sm:$0xf]
        %v1709 = vld [vmem:[%s1 + $0x1d8] sm:$0xf]
        %v1710 = vld [vmem:[%s1 + $0x1dc] sm:$0xf]
        %v1711 = vld [vmem:[%s1 + $0x1e0] sm:$0xf]
        %v1712 = vld [vmem:[%s1 + $0x1e4] sm:$0xf]
        %v1713 = vld [vmem:[%s1 + $0x1e8] sm:$0xf]
        %v1714 = vld [vmem:[%s1 + $0x1ec] sm:$0xf]
        %v1715 = vld [vmem:[%s1 + $0x1f0] sm:$0xf]
        %v1716 = vld [vmem:[%s1 + $0x1f4] sm:$0xf]
        %v1717 = vld [vmem:[%s1 + $0x1f8] sm:$0xf]
        %v1718 = vld [vmem:[%s1 + $0x1fc] sm:$0xf]
        %v1719 = vld [vmem:[%s1 + $0x200] sm:$0xf]
        %v1720 = vld [vmem:[%s1 + $0x204] sm:$0xf]
        %v1721 = vld [vmem:[%s1 + $0x208] sm:$0xf]
        %v1722 = vld [vmem:[%s1 + $0x20c] sm:$0xf]
        %v1723 = vld [vmem:[%s1 + $0x210] sm:$0xf]
        %v1724 = vld [vmem:[%s1 + $0x214] sm:$0xf]
        %v1725 = vld [vmem:[%s1 + $0x218] sm:$0xf]
        %v1726 = vld [vmem:[%s1 + $0x21c] sm:$0xf]
        %v1727 = vld [vmem:[%s1 + $0x220] sm:$0xf]
        %v1728 = vld [vmem:[%s1 + $0x224] sm:$0xf]
        %v1729 = vld [vmem:[%s1 + $0x228] sm:$0xf]
        %v1730 = vld [vmem:[%s1 + $0x22c] sm:$0xf]
        %v1731 = vld [vmem:[%s1 + $0x230] sm:$0xf]
        %v1732 = vld [vmem:[%s1 + $0x234] sm:$0xf]
        %v1733 = vld [vmem:[%s1 + $0x238] sm:$0xf]
        %v1734 = vld [vmem:[%s1 + $0x23c] sm:$0xf]
        %v1735 = vld [vmem:[%s2] sm:$0x1]
        %v1737 = vlaneseq
        %v1738 = vshrl.u32 %v1737, 7
        %v1739 = vsub.s32 0, %v1738
        %v1740 = vrot.slane %v1735, %v1739
        %v1886 = vunpack.c.l.b16 %v1591
        %v1887 = vunpack.c.l.b16 %v1592
        %v1888 = vunpack.c.l.b16 %v1593
        %v1889 = vunpack.c.l.b16 %v1594
        %v1890 = vunpack.c.l.b16 %v1595
        %v1891 = vunpack.c.l.b16 %v1596
        %v1892 = vunpack.c.l.b16 %v1597
        %v1893 = vunpack.c.l.b16 %v1598
        %v1894 = vunpack.c.l.b16 %v1599
        %v1895 = vunpack.c.l.b16 %v1600
        %v1896 = vunpack.c.l.b16 %v1601
        %v1897 = vunpack.c.l.b16 %v1602
        %v1898 = vunpack.c.l.b16 %v1603
        %v1899 = vunpack.c.l.b16 %v1604
        %v1900 = vunpack.c.l.b16 %v1605
        %v1901 = vunpack.c.l.b16 %v1606
        %v1902 = vunpack.c.l.b16 %v1607
        %v1903 = vunpack.c.l.b16 %v1608
        %v1904 = vunpack.c.l.b16 %v1609
        %v1905 = vunpack.c.l.b16 %v1610
        %v1906 = vunpack.c.l.b16 %v1611
        %v1907 = vunpack.c.l.b16 %v1612
        %v1908 = vunpack.c.l.b16 %v1613
        %v1909 = vunpack.c.l.b16 %v1614
        %v1910 = vunpack.c.l.b16 %v1615
        %v1911 = vunpack.c.l.b16 %v1616
        %v1912 = vunpack.c.l.b16 %v1617
        %v1913 = vunpack.c.l.b16 %v1618
        %v1914 = vunpack.c.l.b16 %v1619
        %v1915 = vunpack.c.l.b16 %v1620
        %v1916 = vunpack.c.l.b16 %v1621
        %v1917 = vunpack.c.l.b16 %v1622
        %v1918 = vunpack.c.l.b16 %v1623
        %v1919 = vunpack.c.l.b16 %v1624
        %v1920 = vunpack.c.l.b16 %v1625
        %v1921 = vunpack.c.l.b16 %v1626
        %v1922 = vunpack.c.l.b16 %v1627
        %v1923 = vunpack.c.l.b16 %v1628
        %v1924 = vunpack.c.l.b16 %v1629
        %v1925 = vunpack.c.l.b16 %v1630
        %v1926 = vunpack.c.l.b16 %v1631
        %v1927 = vunpack.c.l.b16 %v1632
        %v1928 = vunpack.c.l.b16 %v1633
        %v1929 = vunpack.c.l.b16 %v1634
        %v1930 = vunpack.c.l.b16 %v1635
        %v1931 = vunpack.c.l.b16 %v1636
        %v1932 = vunpack.c.l.b16 %v1637
        %v1933 = vunpack.c.l.b16 %v1638
        %v1934 = vunpack.c.l.b16 %v1639
        %v1935 = vunpack.c.l.b16 %v1640
        %v1936 = vunpack.c.l.b16 %v1641
        %v1937 = vunpack.c.l.b16 %v1642
        %v1938 = vunpack.c.l.b16 %v1643
        %v1939 = vunpack.c.l.b16 %v1644
        %v1940 = vunpack.c.l.b16 %v1645
        %v1941 = vunpack.c.l.b16 %v1646
        %v1942 = vunpack.c.l.b16 %v1647
        %v1943 = vunpack.c.l.b16 %v1648
        %v1944 = vunpack.c.l.b16 %v1649
        %v1945 = vunpack.c.l.b16 %v1650
        %v1946 = vunpack.c.l.b16 %v1651
        %v1947 = vunpack.c.l.b16 %v1652
        %v1948 = vunpack.c.l.b16 %v1653
        %v1949 = vunpack.c.l.b16 %v1654
        %v1950 = vunpack.c.l.b16 %v1655
        %v1951 = vunpack.c.l.b16 %v1656
        %v1952 = vunpack.c.l.b16 %v1657
        %v1953 = vunpack.c.l.b16 %v1658
        %v1954 = vunpack.c.l.b16 %v1659
        %v1955 = vunpack.c.l.b16 %v1660
        %v1956 = vunpack.c.l.b16 %v1661
        %v1957 = vunpack.c.l.b16 %v1662
        %v1958 = vunpack.c.l.b16 %v1663
        %v1959 = vunpack.c.l.b16 %v1664
        %v1960 = vunpack.c.l.b16 %v1665
        %v1961 = vunpack.c.l.b16 %v1666
        %v1962 = vunpack.c.l.b16 %v1667
        %v1963 = vunpack.c.l.b16 %v1668
        %v1964 = vunpack.c.l.b16 %v1669
        %v1965 = vunpack.c.l.b16 %v1670
        %v1966 = vunpack.c.l.b16 %v1671
        %v1967 = vunpack.c.l.b16 %v1672
        %v1968 = vunpack.c.l.b16 %v1673
        %v1969 = vunpack.c.l.b16 %v1674
        %v1970 = vunpack.c.l.b16 %v1675
        %v1971 = vunpack.c.l.b16 %v1676
        %v1972 = vunpack.c.l.b16 %v1677
        %v1973 = vunpack.c.l.b16 %v1678
        %v1974 = vunpack.c.l.b16 %v1679
        %v1975 = vunpack.c.l.b16 %v1680
        %v1976 = vunpack.c.l.b16 %v1681
        %v1977 = vunpack.c.l.b16 %v1682
        %v1978 = vunpack.c.l.b16 %v1683
        %v1979 = vunpack.c.l.b16 %v1684
        %v1980 = vunpack.c.l.b16 %v1685
        %v1981 = vunpack.c.l.b16 %v1686
        %v1982 = vunpack.c.l.b16 %v1687
        %v1983 = vunpack.c.l.b16 %v1688
        %v1984 = vunpack.c.l.b16 %v1689
        %v1985 = vunpack.c.l.b16 %v1690
        %v1986 = vunpack.c.l.b16 %v1691
        %v1987 = vunpack.c.l.b16 %v1692
        %v1988 = vunpack.c.l.b16 %v1693
        %v1989 = vunpack.c.l.b16 %v1694
        %v1990 = vunpack.c.l.b16 %v1695
        %v1991 = vunpack.c.l.b16 %v1696
        %v1992 = vunpack.c.l.b16 %v1697
        %v1993 = vunpack.c.l.b16 %v1698
        %v1994 = vunpack.c.l.b16 %v1699
        %v1995 = vunpack.c.l.b16 %v1700
        %v1996 = vunpack.c.l.b16 %v1701
        %v1997 = vunpack.c.l.b16 %v1702
        %v1998 = vunpack.c.l.b16 %v1703
        %v1999 = vunpack.c.l.b16 %v1704
        %v2000 = vunpack.c.l.b16 %v1705
        %v2001 = vunpack.c.l.b16 %v1706
        %v2002 = vunpack.c.l.b16 %v1707
        %v2003 = vunpack.c.l.b16 %v1708
        %v2004 = vunpack.c.l.b16 %v1709
        %v2005 = vunpack.c.l.b16 %v1710
        %v2006 = vunpack.c.l.b16 %v1711
        %v2007 = vunpack.c.l.b16 %v1712
        %v2008 = vunpack.c.l.b16 %v1713
        %v2009 = vunpack.c.l.b16 %v1714
        %v2010 = vunpack.c.l.b16 %v1715
        %v2011 = vunpack.c.l.b16 %v1716
        %v2012 = vunpack.c.l.b16 %v1717
        %v2013 = vunpack.c.l.b16 %v1718
        %v2014 = vunpack.c.l.b16 %v1719
        %v2015 = vunpack.c.l.b16 %v1720
        %v2016 = vunpack.c.l.b16 %v1721
        %v2017 = vunpack.c.l.b16 %v1722
        %v2018 = vunpack.c.l.b16 %v1723
        %v2019 = vunpack.c.l.b16 %v1724
        %v2020 = vunpack.c.l.b16 %v1725
        %v2021 = vunpack.c.l.b16 %v1726
        %v2022 = vunpack.c.l.b16 %v1727
        %v2023 = vunpack.c.l.b16 %v1728
        %v2024 = vunpack.c.l.b16 %v1729
        %v2025 = vunpack.c.l.b16 %v1730
        %v2026 = vunpack.c.l.b16 %v1731
        %v2027 = vunpack.c.l.b16 %v1732
        %v2028 = vunpack.c.l.b16 %v1733
        %v2029 = vunpack.c.l.b16 %v1734
        %v2030 = vpack.c.b16 %v1887, %v1886
        %v2031 = vpack.c.b16 %v1889, %v1888
        %v2032 = vpack.c.b16 %v1891, %v1890
        %v2033 = vpack.c.b16 %v1893, %v1892
        %v2034 = vpack.c.b16 %v1895, %v1894
        %v2035 = vpack.c.b16 %v1897, %v1896
        %v2036 = vpack.c.b16 %v1899, %v1898
        %v2037 = vpack.c.b16 %v1901, %v1900
        %v2038 = vpack.c.b16 %v1903, %v1902
        %v2039 = vpack.c.b16 %v1905, %v1904
        %v2040 = vpack.c.b16 %v1907, %v1906
        %v2041 = vpack.c.b16 %v1909, %v1908
        %v2042 = vpack.c.b16 %v1911, %v1910
        %v2043 = vpack.c.b16 %v1913, %v1912
        %v2044 = vpack.c.b16 %v1915, %v1914
        %v2045 = vpack.c.b16 %v1917, %v1916
        %v2046 = vpack.c.b16 %v1919, %v1918
        %v2047 = vpack.c.b16 %v1921, %v1920
        %v2048 = vpack.c.b16 %v1923, %v1922
        %v2049 = vpack.c.b16 %v1925, %v1924
        %v2050 = vpack.c.b16 %v1927, %v1926
        %v2051 = vpack.c.b16 %v1929, %v1928
        %v2052 = vpack.c.b16 %v1931, %v1930
        %v2053 = vpack.c.b16 %v1933, %v1932
        %v2054 = vpack.c.b16 %v1935, %v1934
        %v2055 = vpack.c.b16 %v1937, %v1936
        %v2056 = vpack.c.b16 %v1939, %v1938
        %v2057 = vpack.c.b16 %v1941, %v1940
        %v2058 = vpack.c.b16 %v1943, %v1942
        %v2059 = vpack.c.b16 %v1945, %v1944
        %v2060 = vpack.c.b16 %v1947, %v1946
        %v2061 = vpack.c.b16 %v1949, %v1948
        %v2062 = vpack.c.b16 %v1951, %v1950
        %v2063 = vpack.c.b16 %v1953, %v1952
        %v2064 = vpack.c.b16 %v1955, %v1954
        %v2065 = vpack.c.b16 %v1957, %v1956
        %v2066 = vpack.c.b16 %v1959, %v1958
        %v2067 = vpack.c.b16 %v1961, %v1960
        %v2068 = vpack.c.b16 %v1963, %v1962
        %v2069 = vpack.c.b16 %v1965, %v1964
        %v2070 = vpack.c.b16 %v1967, %v1966
        %v2071 = vpack.c.b16 %v1969, %v1968
        %v2072 = vpack.c.b16 %v1971, %v1970
        %v2073 = vpack.c.b16 %v1973, %v1972
        %v2074 = vpack.c.b16 %v1975, %v1974
        %v2075 = vpack.c.b16 %v1977, %v1976
        %v2076 = vpack.c.b16 %v1979, %v1978
        %v2077 = vpack.c.b16 %v1981, %v1980
        %v2078 = vpack.c.b16 %v1983, %v1982
        %v2079 = vpack.c.b16 %v1985, %v1984
        %v2080 = vpack.c.b16 %v1987, %v1986
        %v2081 = vpack.c.b16 %v1989, %v1988
        %v2082 = vpack.c.b16 %v1991, %v1990
        %v2083 = vpack.c.b16 %v1993, %v1992
        %v2084 = vpack.c.b16 %v1995, %v1994
        %v2085 = vpack.c.b16 %v1997, %v1996
        %v2086 = vpack.c.b16 %v1999, %v1998
        %v2087 = vpack.c.b16 %v2001, %v2000
        %v2088 = vpack.c.b16 %v2003, %v2002
        %v2089 = vpack.c.b16 %v2005, %v2004
        %v2090 = vpack.c.b16 %v2007, %v2006
        %v2091 = vpack.c.b16 %v2009, %v2008
        %v2092 = vpack.c.b16 %v2011, %v2010
        %v2093 = vpack.c.b16 %v2013, %v2012
        %v2094 = vpack.c.b16 %v2015, %v2014
        %v2095 = vpack.c.b16 %v2017, %v2016
        %v2096 = vpack.c.b16 %v2019, %v2018
        %v2097 = vpack.c.b16 %v2021, %v2020
        %v2098 = vpack.c.b16 %v2023, %v2022
        %v2099 = vpack.c.b16 %v2025, %v2024
        %v2100 = vpack.c.b16 %v2027, %v2026
        %v2101 = vpack.c.b16 %v2029, %v2028
        %2174 = vmatprep.subr.bf16.mxu0 0
        %2175 = vmatpush1.bf16.msra.mxu0 %v2030
        %2176 = vmatprep.subr.bf16.mxu0 0
        %2177 = vmatpush1.bf16.msra.mxu0 %v2031
        %2178 = vmatprep.subr.bf16.mxu0 0
        %2179 = vmatpush1.bf16.msra.mxu0 %v2032
        %2180 = vmatprep.subr.bf16.mxu0 0
        %2181 = vmatpush1.bf16.msra.mxu0 %v2033
        %2182 = vmatprep.subr.bf16.mxu0 0
        %2183 = vmatpush1.bf16.msra.mxu0 %v2034
        %2184 = vmatprep.subr.bf16.mxu0 0
        %2185 = vmatpush1.bf16.msra.mxu0 %v2035
        %2186 = vmatprep.subr.bf16.mxu0 0
        %2187 = vmatpush1.bf16.msra.mxu0 %v2036
        %2188 = vmatprep.subr.bf16.mxu0 0
        %2189 = vmatpush1.bf16.msra.mxu0 %v2037
        %2190 = vmatprep.subr.bf16.mxu0 0
        %2191 = vmatpush1.bf16.msra.mxu0 %v2038
        %2192 = vmatprep.subr.bf16.mxu0 0
        %2193 = vmatpush1.bf16.msra.mxu0 %v2039
        %2194 = vmatprep.subr.bf16.mxu0 0
        %2195 = vmatpush1.bf16.msra.mxu0 %v2040
        %2196 = vmatprep.subr.bf16.mxu0 0
        %2197 = vmatpush1.bf16.msra.mxu0 %v2041
        %2198 = vmatprep.subr.bf16.mxu0 0
        %2199 = vmatpush1.bf16.msra.mxu0 %v2042
        %2200 = vmatprep.subr.bf16.mxu0 0
        %2201 = vmatpush1.bf16.msra.mxu0 %v2043
        %2202 = vmatprep.subr.bf16.mxu0 0
        %2203 = vmatpush1.bf16.msra.mxu0 %v2044
        %2204 = vmatprep.subr.bf16.mxu0 0
        %2205 = vmatpush1.bf16.msra.mxu0 %v2045
        %2206 = vmatprep.mubr.bf16.mxu0 %v497
        %2207 = vmatmul.mubr.bf16.gmra.mrb[0].mxu0 %v405
        %v2208 = vpop.f32.mrb[0].mxu0
        %v2209 = vadd.f32 %v1740, %v2208
        %v2210 = vpop.f32.mrb[0].mxu0
        %v2211 = vpop.f32.mrb[0].mxu0
        %v2212 = vadd.f32 %v1740, %v2211
        %v2213 = vpop.f32.mrb[0].mxu0
        %2214 = vmatprep.mubr.bf16.mxu0 %v509
        %2215 = vmatmul.mubr.bf16.gmra.mrb[0].mxu0 %v406
        %v2216 = vpop.f32.mrb[0].mxu0
        %v2217 = vadd.f32 %v1740, %v2216
        %v2218 = vpop.f32.mrb[0].mxu0
        %v2219 = vpop.f32.mrb[0].mxu0
        %v2220 = vadd.f32 %v1740, %v2219
        %v2221 = vpop.f32.mrb[0].mxu0
        %2222 = vmatprep.mubr.bf16.mxu0 %v521
        %2223 = vmatmul.mubr.bf16.gmra.mrb[0].mxu0 %v407
        %v2224 = vpop.f32.mrb[0].mxu0
        %v2225 = vadd.f32 %v1740, %v2224
        %v2226 = vpop.f32.mrb[0].mxu0
        %v2227 = vpop.f32.mrb[0].mxu0
        %v2228 = vadd.f32 %v1740, %v2227
        %v2229 = vpop.f32.mrb[0].mxu0
        %2230 = vmatprep.mubr.bf16.mxu0 %v533
        %2231 = vmatmul.mubr.bf16.gmra.mrb[0].mxu0 %v408
        %v2232 = vpop.f32.mrb[0].mxu0
        %v2233 = vadd.f32 %v1740, %v2232
        %v2234 = vpop.f32.mrb[0].mxu0
        %v2235 = vpop.f32.mrb[0].mxu0
        %v2236 = vadd.f32 %v1740, %v2235
        %v2237 = vpop.f32.mrb[0].mxu0
        %2238 = vmatprep.mubr.bf16.mxu0 %v545
        %2239 = vmatmul.mubr.bf16.gmra.mrb[0].mxu0 %v409
        %v2240 = vpop.f32.mrb[0].mxu0
        %v2241 = vadd.f32 %v1740, %v2240
        %v2242 = vpop.f32.mrb[0].mxu0
        %v2243 = vpop.f32.mrb[0].mxu0
        %v2244 = vadd.f32 %v1740, %v2243
        %v2245 = vpop.f32.mrb[0].mxu0
        %2246 = vmatprep.mubr.bf16.mxu0 %v557
        %2247 = vmatmul.mubr.bf16.gmra.mrb[0].mxu0 %v410
        %v2248 = vpop.f32.mrb[0].mxu0
        %v2249 = vadd.f32 %v1740, %v2248
        %v2250 = vpop.f32.mrb[0].mxu0
        %v2251 = vpop.f32.mrb[0].mxu0
        %v2252 = vadd.f32 %v1740, %v2251
        %v2253 = vpop.f32.mrb[0].mxu0
        %2254 = vmatprep.mubr.bf16.mxu0 %v569
        %2255 = vmatmul.mubr.bf16.gmra.mrb[0].mxu0 %v411
        %v2256 = vpop.f32.mrb[0].mxu0
        %v2257 = vadd.f32 %v1740, %v2256
        %v2258 = vpop.f32.mrb[0].mxu0
        %v2259 = vpop.f32.mrb[0].mxu0
        %v2260 = vadd.f32 %v1740, %v2259
        %v2261 = vpop.f32.mrb[0].mxu0
        %2262 = vmatprep.mubr.bf16.mxu0 %v581
        %2263 = vmatmul.mubr.bf16.gmra.mrb[0].mxu0 %v412
        %v2264 = vpop.f32.mrb[0].mxu0
        %v2265 = vadd.f32 %v1740, %v2264
        %v2266 = vpop.f32.mrb[0].mxu0
        %v2267 = vpop.f32.mrb[0].mxu0
        %v2268 = vadd.f32 %v1740, %v2267
        %v2269 = vpop.f32.mrb[0].mxu0
        %2270 = vmatprep.mubr.bf16.mxu0 %v593
        %2271 = vmatmul.mubr.bf16.gmra.mrb[0].mxu0 %v413
        %v2272 = vpop.f32.mrb[0].mxu0
        %v2273 = vadd.f32 %v1740, %v2272
        %v2274 = vpop.f32.mrb[0].mxu0
        %v2275 = vpop.f32.mrb[0].mxu0
        %v2276 = vadd.f32 %v1740, %v2275
        %v2277 = vpop.f32.mrb[0].mxu0
        %2278 = vmatprep.mubr.bf16.mxu0 %v605
        %2279 = vmatmul.mubr.bf16.gmra.mrb[0].mxu0 %v414
        %v2280 = vpop.f32.mrb[0].mxu0
        %v2281 = vadd.f32 %v1740, %v2280
        %v2282 = vpop.f32.mrb[0].mxu0
        %v2283 = vpop.f32.mrb[0].mxu0
        %v2284 = vadd.f32 %v1740, %v2283
        %v2285 = vpop.f32.mrb[0].mxu0
        %2286 = vmatprep.mubr.bf16.mxu0 %v617
        %2287 = vmatmul.mubr.bf16.gmra.mrb[0].mxu0 %v415
        %v2288 = vpop.f32.mrb[0].mxu0
        %v2289 = vadd.f32 %v1740, %v2288
        %v2290 = vpop.f32.mrb[0].mxu0
        %v2291 = vpop.f32.mrb[0].mxu0
        %v2292 = vadd.f32 %v1740, %v2291
        %v2293 = vpop.f32.mrb[0].mxu0
        %2294 = vmatprep.mubr.bf16.mxu0 %v629
        %2295 = vmatmul.mubr.bf16.gmra.mrb[0].mxu0 %v416
        %v2296 = vpop.f32.mrb[0].mxu0
        %v2297 = vadd.f32 %v1740, %v2296
        %v2298 = vpop.f32.mrb[0].mxu0
        %v2299 = vpop.f32.mrb[0].mxu0
        %v2300 = vadd.f32 %v1740, %v2299
        %v2301 = vpop.f32.mrb[0].mxu0
        %2302 = vmatprep.mubr.bf16.mxu0 %v641
        %2303 = vmatmul.mubr.bf16.gmra.mrb[0].mxu0 %v417
        %v2304 = vpop.f32.mrb[0].mxu0
        %v2305 = vadd.f32 %v1740, %v2304
        %v2306 = vpop.f32.mrb[0].mxu0
        %v2307 = vpop.f32.mrb[0].mxu0
        %v2308 = vadd.f32 %v1740, %v2307
        %v2309 = vpop.f32.mrb[0].mxu0
        %2310 = vmatprep.mubr.bf16.mxu0 %v653
        %2311 = vmatmul.mubr.bf16.gmra.mrb[0].mxu0 %v418
        %v2312 = vpop.f32.mrb[0].mxu0
        %v2313 = vadd.f32 %v1740, %v2312
        %v2314 = vpop.f32.mrb[0].mxu0
        %v2315 = vpop.f32.mrb[0].mxu0
        %v2316 = vadd.f32 %v1740, %v2315
        %v2317 = vpop.f32.mrb[0].mxu0
        %2318 = vmatprep.mubr.bf16.mxu0 %v665
        %2319 = vmatmul.mubr.bf16.gmra.mrb[0].mxu0 %v419
        %v2320 = vpop.f32.mrb[0].mxu0
        %v2321 = vadd.f32 %v1740, %v2320
        %v2322 = vpop.f32.mrb[0].mxu0
        %v2323 = vpop.f32.mrb[0].mxu0
        %v2324 = vadd.f32 %v1740, %v2323
        %v2325 = vpop.f32.mrb[0].mxu0
        %2326 = vmatprep.mubr.bf16.mxu0 %v677
        %2327 = vmatmul.mubr.bf16.gmra.mrb[0].mxu0 %v420
        %v2328 = vpop.f32.mrb[0].mxu0
        %v2329 = vadd.f32 %v1740, %v2328
        %v2330 = vpop.f32.mrb[0].mxu0
        %v2331 = vpop.f32.mrb[0].mxu0
        %v2332 = vadd.f32 %v1740, %v2331
        %v2333 = vpop.f32.mrb[0].mxu0
        %2334 = vdwg.mxu0
        %2335 = vmatprep.subr.bf16.mxu0 0
        %2336 = vmatpush1.bf16.msra.mxu0 %v2046
        %2337 = vmatprep.subr.bf16.mxu0 0
        %2338 = vmatpush1.bf16.msra.mxu0 %v2047
        %2339 = vmatprep.subr.bf16.mxu0 0
        %2340 = vmatpush1.bf16.msra.mxu0 %v2048
        %2341 = vmatprep.subr.bf16.mxu0 0
        %2342 = vmatpush1.bf16.msra.mxu0 %v2049
        %2343 = vmatprep.subr.bf16.mxu0 0
        %2344 = vmatpush1.bf16.msra.mxu0 %v2050
        %2345 = vmatprep.subr.bf16.mxu0 0
        %2346 = vmatpush1.bf16.msra.mxu0 %v2051
        %2347 = vmatprep.subr.bf16.mxu0 0
        %2348 = vmatpush1.bf16.msra.mxu0 %v2052
        %2349 = vmatprep.subr.bf16.mxu0 0
        %2350 = vmatpush1.bf16.msra.mxu0 %v2053
        %2351 = vmatprep.subr.bf16.mxu0 0
        %2352 = vmatpush1.bf16.msra.mxu0 %v2054
        %2353 = vmatprep.subr.bf16.mxu0 0
        %2354 = vmatpush1.bf16.msra.mxu0 %v2055
        %2355 = vmatprep.subr.bf16.mxu0 0
        %2356 = vmatpush1.bf16.msra.mxu0 %v2056
        %2357 = vmatprep.subr.bf16.mxu0 0
        %2358 = vmatpush1.bf16.msra.mxu0 %v2057
        %2359 = vmatprep.subr.bf16.mxu0 0
        %2360 = vmatpush1.bf16.msra.mxu0 %v2058
        %2361 = vmatprep.subr.bf16.mxu0 0
        %2362 = vmatpush1.bf16.msra.mxu0 %v2059
        %2363 = vmatprep.subr.bf16.mxu0 0
        %2364 = vmatpush1.bf16.msra.mxu0 %v2060
        %2365 = vmatprep.subr.bf16.mxu0 0
        %2366 = vmatpush1.bf16.msra.mxu0 %v2061
        %2367 = vmatprep.mubr.bf16.mxu0 %v823
        %2368 = vmatmul.mubr.bf16.gmra.mrb[0].mxu0 %v697
        %v2369 = vpop.f32.mrb[0].mxu0
        %v2370 = vadd.f32 %v2209, %v2369
        %v2371 = vpop.f32.mrb[0].mxu0
        %v2372 = vpop.f32.mrb[0].mxu0
        %v2373 = vadd.f32 %v2212, %v2372
        %v2374 = vpop.f32.mrb[0].mxu0
        %2375 = vmatprep.mubr.bf16.mxu0 %v824
        %2376 = vmatmul.mubr.bf16.gmra.mrb[0].mxu0 %v700
        %v2377 = vpop.f32.mrb[0].mxu0
        %v2378 = vadd.f32 %v2217, %v2377
        %v2379 = vpop.f32.mrb[0].mxu0
        %v2380 = vpop.f32.mrb[0].mxu0
        %v2381 = vadd.f32 %v2220, %v2380
        %v2382 = vpop.f32.mrb[0].mxu0
        %2383 = vmatprep.mubr.bf16.mxu0 %v825
        %2384 = vmatmul.mubr.bf16.gmra.mrb[0].mxu0 %v703
        %v2385 = vpop.f32.mrb[0].mxu0
        %v2386 = vadd.f32 %v2225, %v2385
        %v2387 = vpop.f32.mrb[0].mxu0
        %v2388 = vpop.f32.mrb[0].mxu0
        %v2389 = vadd.f32 %v2228, %v2388
        %v2390 = vpop.f32.mrb[0].mxu0
        %2391 = vmatprep.mubr.bf16.mxu0 %v826
        %2392 = vmatmul.mubr.bf16.gmra.mrb[0].mxu0 %v706
        %v2393 = vpop.f32.mrb[0].mxu0
        %v2394 = vadd.f32 %v2233, %v2393
        %v2395 = vpop.f32.mrb[0].mxu0
        %v2396 = vpop.f32.mrb[0].mxu0
        %v2397 = vadd.f32 %v2236, %v2396
        %v2398 = vpop.f32.mrb[0].mxu0
        %2399 = vmatprep.mubr.bf16.mxu0 %v827
        %2400 = vmatmul.mubr.bf16.gmra.mrb[0].mxu0 %v709
        %v2401 = vpop.f32.mrb[0].mxu0
        %v2402 = vadd.f32 %v2241, %v2401
        %v2403 = vpop.f32.mrb[0].mxu0
        %v2404 = vpop.f32.mrb[0].mxu0
        %v2405 = vadd.f32 %v2244, %v2404
        %v2406 = vpop.f32.mrb[0].mxu0
        %2407 = vmatprep.mubr.bf16.mxu0 %v828
        %2408 = vmatmul.mubr.bf16.gmra.mrb[0].mxu0 %v712
        %v2409 = vpop.f32.mrb[0].mxu0
        %v2410 = vadd.f32 %v2249, %v2409
        %v2411 = vpop.f32.mrb[0].mxu0
        %v2412 = vpop.f32.mrb[0].mxu0
        %v2413 = vadd.f32 %v2252, %v2412
        %v2414 = vpop.f32.mrb[0].mxu0
        %2415 = vmatprep.mubr.bf16.mxu0 %v829
        %2416 = vmatmul.mubr.bf16.gmra.mrb[0].mxu0 %v715
        %v2417 = vpop.f32.mrb[0].mxu0
        %v2418 = vadd.f32 %v2257, %v2417
        %v2419 = vpop.f32.mrb[0].mxu0
        %v2420 = vpop.f32.mrb[0].mxu0
        %v2421 = vadd.f32 %v2260, %v2420
        %v2422 = vpop.f32.mrb[0].mxu0
        %2423 = vmatprep.mubr.bf16.mxu0 %v830
        %2424 = vmatmul.mubr.bf16.gmra.mrb[0].mxu0 %v718
        %v2425 = vpop.f32.mrb[0].mxu0
        %v2426 = vadd.f32 %v2265, %v2425
        %v2427 = vpop.f32.mrb[0].mxu0
        %v2428 = vpop.f32.mrb[0].mxu0
        %v2429 = vadd.f32 %v2268, %v2428
        %v2430 = vpop.f32.mrb[0].mxu0
        %2431 = vmatprep.mubr.bf16.mxu0 %v831
        %2432 = vmatmul.mubr.bf16.gmra.mrb[0].mxu0 %v721
        %v2433 = vpop.f32.mrb[0].mxu0
        %v2434 = vadd.f32 %v2273, %v2433
        %v2435 = vpop.f32.mrb[0].mxu0
        %v2436 = vpop.f32.mrb[0].mxu0
        %v2437 = vadd.f32 %v2276, %v2436
        %v2438 = vpop.f32.mrb[0].mxu0
        %2439 = vmatprep.mubr.bf16.mxu0 %v832
        %2440 = vmatmul.mubr.bf16.gmra.mrb[0].mxu0 %v724
        %v2441 = vpop.f32.mrb[0].mxu0
        %v2442 = vadd.f32 %v2281, %v2441
        %v2443 = vpop.f32.mrb[0].mxu0
        %v2444 = vpop.f32.mrb[0].mxu0
        %v2445 = vadd.f32 %v2284, %v2444
        %v2446 = vpop.f32.mrb[0].mxu0
        %2447 = vmatprep.mubr.bf16.mxu0 %v833
        %2448 = vmatmul.mubr.bf16.gmra.mrb[0].mxu0 %v727
        %v2449 = vpop.f32.mrb[0].mxu0
        %v2450 = vadd.f32 %v2289, %v2449
        %v2451 = vpop.f32.mrb[0].mxu0
        %v2452 = vpop.f32.mrb[0].mxu0
        %v2453 = vadd.f32 %v2292, %v2452
        %v2454 = vpop.f32.mrb[0].mxu0
        %2455 = vmatprep.mubr.bf16.mxu0 %v834
        %2456 = vmatmul.mubr.bf16.gmra.mrb[0].mxu0 %v730
        %v2457 = vpop.f32.mrb[0].mxu0
        %v2458 = vadd.f32 %v2297, %v2457
        %v2459 = vpop.f32.mrb[0].mxu0
        %v2460 = vpop.f32.mrb[0].mxu0
        %v2461 = vadd.f32 %v2300, %v2460
        %v2462 = vpop.f32.mrb[0].mxu0
        %2463 = vmatprep.mubr.bf16.mxu0 %v835
        %2464 = vmatmul.mubr.bf16.gmra.mrb[0].mxu0 %v733
        %v2465 = vpop.f32.mrb[0].mxu0
        %v2466 = vadd.f32 %v2305, %v2465
        %v2467 = vpop.f32.mrb[0].mxu0
        %v2468 = vpop.f32.mrb[0].mxu0
        %v2469 = vadd.f32 %v2308, %v2468
        %v2470 = vpop.f32.mrb[0].mxu0
        %2471 = vmatprep.mubr.bf16.mxu0 %v836
        %2472 = vmatmul.mubr.bf16.gmra.mrb[0].mxu0 %v736
        %v2473 = vpop.f32.mrb[0].mxu0
        %v2474 = vadd.f32 %v2313, %v2473
        %v2475 = vpop.f32.mrb[0].mxu0
        %v2476 = vpop.f32.mrb[0].mxu0
        %v2477 = vadd.f32 %v2316, %v2476
        %v2478 = vpop.f32.mrb[0].mxu0
        %2479 = vmatprep.mubr.bf16.mxu0 %v837
        %2480 = vmatmul.mubr.bf16.gmra.mrb[0].mxu0 %v739
        %v2481 = vpop.f32.mrb[0].mxu0
        %v2482 = vadd.f32 %v2321, %v2481
        %v2483 = vpop.f32.mrb[0].mxu0
        %v2484 = vpop.f32.mrb[0].mxu0
        %v2485 = vadd.f32 %v2324, %v2484
        %v2486 = vpop.f32.mrb[0].mxu0
        %2487 = vmatprep.mubr.bf16.mxu0 %v838
        %2488 = vmatmul.mubr.bf16.gmra.mrb[0].mxu0 %v742
        %v2489 = vpop.f32.mrb[0].mxu0
        %v2490 = vadd.f32 %v2329, %v2489
        %v2491 = vpop.f32.mrb[0].mxu0
        %v2492 = vpop.f32.mrb[0].mxu0
        %v2493 = vadd.f32 %v2332, %v2492
        %v2494 = vpop.f32.mrb[0].mxu0
        %2495 = vdwg.mxu0
        %2496 = vmatprep.subr.bf16.mxu0 0
        %2497 = vmatpush1.bf16.msra.mxu0 %v2062
        %2498 = vmatprep.subr.bf16.mxu0 0
        %2499 = vmatpush1.bf16.msra.mxu0 %v2063
        %2500 = vmatprep.subr.bf16.mxu0 0
        %2501 = vmatpush1.bf16.msra.mxu0 %v2064
        %2502 = vmatprep.subr.bf16.mxu0 0
        %2503 = vmatpush1.bf16.msra.mxu0 %v2065
        %2504 = vmatprep.subr.bf16.mxu0 0
        %2505 = vmatpush1.bf16.msra.mxu0 %v2066
        %2506 = vmatprep.subr.bf16.mxu0 0
        %2507 = vmatpush1.bf16.msra.mxu0 %v2067
        %2508 = vmatprep.subr.bf16.mxu0 0
        %2509 = vmatpush1.bf16.msra.mxu0 %v2068
        %2510 = vmatprep.subr.bf16.mxu0 0
        %2511 = vmatpush1.bf16.msra.mxu0 %v2069
        %2512 = vmatprep.subr.bf16.mxu0 0
        %2513 = vmatpush1.bf16.msra.mxu0 %v2070
        %2514 = vmatprep.subr.bf16.mxu0 0
        %2515 = vmatpush1.bf16.msra.mxu0 %v2071
        %2516 = vmatprep.subr.bf16.mxu0 0
        %2517 = vmatpush1.bf16.msra.mxu0 %v2072
        %2518 = vmatprep.subr.bf16.mxu0 0
        %2519 = vmatpush1.bf16.msra.mxu0 %v2073
        %2520 = vmatprep.subr.bf16.mxu0 0
        %2521 = vmatpush1.bf16.msra.mxu0 %v2074
        %2522 = vmatprep.subr.bf16.mxu0 0
        %2523 = vmatpush1.bf16.msra.mxu0 %v2075
        %2524 = vmatprep.subr.bf16.mxu0 0
        %2525 = vmatpush1.bf16.msra.mxu0 %v2076
        %2526 = vmatprep.subr.bf16.mxu0 0
        %2527 = vmatpush1.bf16.msra.mxu0 %v2077
        %2528 = vmatprep.mubr.bf16.mxu0 %v1113
        %2529 = vmatmul.mubr.bf16.gmra.mrb[0].mxu0 %v914
        %v2530 = vpop.f32.mrb[0].mxu0
        %v2531 = vadd.f32 %v2370, %v2530
        %v2532 = vpop.f32.mrb[0].mxu0
        %v2533 = vpop.f32.mrb[0].mxu0
        %v2534 = vadd.f32 %v2373, %v2533
        %v2535 = vpop.f32.mrb[0].mxu0
        %2536 = vmatprep.mubr.bf16.mxu0 %v1116
        %2537 = vmatmul.mubr.bf16.gmra.mrb[0].mxu0 %v926
        %v2538 = vpop.f32.mrb[0].mxu0
        %v2539 = vadd.f32 %v2378, %v2538
        %v2540 = vpop.f32.mrb[0].mxu0
        %v2541 = vpop.f32.mrb[0].mxu0
        %v2542 = vadd.f32 %v2381, %v2541
        %v2543 = vpop.f32.mrb[0].mxu0
        %2544 = vmatprep.mubr.bf16.mxu0 %v1119
        %2545 = vmatmul.mubr.bf16.gmra.mrb[0].mxu0 %v938
        %v2546 = vpop.f32.mrb[0].mxu0
        %v2547 = vadd.f32 %v2386, %v2546
        %v2548 = vpop.f32.mrb[0].mxu0
        %v2549 = vpop.f32.mrb[0].mxu0
        %v2550 = vadd.f32 %v2389, %v2549
        %v2551 = vpop.f32.mrb[0].mxu0
        %2552 = vmatprep.mubr.bf16.mxu0 %v1122
        %2553 = vmatmul.mubr.bf16.gmra.mrb[0].mxu0 %v950
        %v2554 = vpop.f32.mrb[0].mxu0
        %v2555 = vadd.f32 %v2394, %v2554
        %v2556 = vpop.f32.mrb[0].mxu0
        %v2557 = vpop.f32.mrb[0].mxu0
        %v2558 = vadd.f32 %v2397, %v2557
        %v2559 = vpop.f32.mrb[0].mxu0
        %2560 = vmatprep.mubr.bf16.mxu0 %v1125
        %2561 = vmatmul.mubr.bf16.gmra.mrb[0].mxu0 %v962
        %v2562 = vpop.f32.mrb[0].mxu0
        %v2563 = vadd.f32 %v2402, %v2562
        %v2564 = vpop.f32.mrb[0].mxu0
        %v2565 = vpop.f32.mrb[0].mxu0
        %v2566 = vadd.f32 %v2405, %v2565
        %v2567 = vpop.f32.mrb[0].mxu0
        %2568 = vmatprep.mubr.bf16.mxu0 %v1128
        %2569 = vmatmul.mubr.bf16.gmra.mrb[0].mxu0 %v974
        %v2570 = vpop.f32.mrb[0].mxu0
        %v2571 = vadd.f32 %v2410, %v2570
        %v2572 = vpop.f32.mrb[0].mxu0
        %v2573 = vpop.f32.mrb[0].mxu0
        %v2574 = vadd.f32 %v2413, %v2573
        %v2575 = vpop.f32.mrb[0].mxu0
        %2576 = vmatprep.mubr.bf16.mxu0 %v1131
        %2577 = vmatmul.mubr.bf16.gmra.mrb[0].mxu0 %v986
        %v2578 = vpop.f32.mrb[0].mxu0
        %v2579 = vadd.f32 %v2418, %v2578
        %v2580 = vpop.f32.mrb[0].mxu0
        %v2581 = vpop.f32.mrb[0].mxu0
        %v2582 = vadd.f32 %v2421, %v2581
        %v2583 = vpop.f32.mrb[0].mxu0
        %2584 = vmatprep.mubr.bf16.mxu0 %v1134
        %2585 = vmatmul.mubr.bf16.gmra.mrb[0].mxu0 %v998
        %v2586 = vpop.f32.mrb[0].mxu0
        %v2587 = vadd.f32 %v2426, %v2586
        %v2588 = vpop.f32.mrb[0].mxu0
        %v2589 = vpop.f32.mrb[0].mxu0
        %v2590 = vadd.f32 %v2429, %v2589
        %v2591 = vpop.f32.mrb[0].mxu0
        %2592 = vmatprep.mubr.bf16.mxu0 %v1137
        %2593 = vmatmul.mubr.bf16.gmra.mrb[0].mxu0 %v1010
        %v2594 = vpop.f32.mrb[0].mxu0
        %v2595 = vadd.f32 %v2434, %v2594
        %v2596 = vpop.f32.mrb[0].mxu0
        %v2597 = vpop.f32.mrb[0].mxu0
        %v2598 = vadd.f32 %v2437, %v2597
        %v2599 = vpop.f32.mrb[0].mxu0
        %2600 = vmatprep.mubr.bf16.mxu0 %v1140
        %2601 = vmatmul.mubr.bf16.gmra.mrb[0].mxu0 %v1022
        %v2602 = vpop.f32.mrb[0].mxu0
        %v2603 = vadd.f32 %v2442, %v2602
        %v2604 = vpop.f32.mrb[0].mxu0
        %v2605 = vpop.f32.mrb[0].mxu0
        %v2606 = vadd.f32 %v2445, %v2605
        %v2607 = vpop.f32.mrb[0].mxu0
        %2608 = vmatprep.mubr.bf16.mxu0 %v1143
        %2609 = vmatmul.mubr.bf16.gmra.mrb[0].mxu0 %v1034
        %v2610 = vpop.f32.mrb[0].mxu0
        %v2611 = vadd.f32 %v2450, %v2610
        %v2612 = vpop.f32.mrb[0].mxu0
        %v2613 = vpop.f32.mrb[0].mxu0
        %v2614 = vadd.f32 %v2453, %v2613
        %v2615 = vpop.f32.mrb[0].mxu0
        %2616 = vmatprep.mubr.bf16.mxu0 %v1146
        %2617 = vmatmul.mubr.bf16.gmra.mrb[0].mxu0 %v1046
        %v2618 = vpop.f32.mrb[0].mxu0
        %v2619 = vadd.f32 %v2458, %v2618
        %v2620 = vpop.f32.mrb[0].mxu0
        %v2621 = vpop.f32.mrb[0].mxu0
        %v2622 = vadd.f32 %v2461, %v2621
        %v2623 = vpop.f32.mrb[0].mxu0
        %2624 = vmatprep.mubr.bf16.mxu0 %v1149
        %2625 = vmatmul.mubr.bf16.gmra.mrb[0].mxu0 %v1058
        %v2626 = vpop.f32.mrb[0].mxu0
        %v2627 = vadd.f32 %v2466, %v2626
        %v2628 = vpop.f32.mrb[0].mxu0
        %v2629 = vpop.f32.mrb[0].mxu0
        %v2630 = vadd.f32 %v2469, %v2629
        %v2631 = vpop.f32.mrb[0].mxu0
        %2632 = vmatprep.mubr.bf16.mxu0 %v1152
        %2633 = vmatmul.mubr.bf16.gmra.mrb[0].mxu0 %v1070
        %v2634 = vpop.f32.mrb[0].mxu0
        %v2635 = vadd.f32 %v2474, %v2634
        %v2636 = vpop.f32.mrb[0].mxu0
        %v2637 = vpop.f32.mrb[0].mxu0
        %v2638 = vadd.f32 %v2477, %v2637
        %v2639 = vpop.f32.mrb[0].mxu0
        %2640 = vmatprep.mubr.bf16.mxu0 %v1155
        %2641 = vmatmul.mubr.bf16.gmra.mrb[0].mxu0 %v1082
        %v2642 = vpop.f32.mrb[0].mxu0
        %v2643 = vadd.f32 %v2482, %v2642
        %v2644 = vpop.f32.mrb[0].mxu0
        %v2645 = vpop.f32.mrb[0].mxu0
        %v2646 = vadd.f32 %v2485, %v2645
        %v2647 = vpop.f32.mrb[0].mxu0
        %2648 = vmatprep.mubr.bf16.mxu0 %v1158
        %2649 = vmatmul.mubr.bf16.gmra.mrb[0].mxu0 %v1094
        %v2650 = vpop.f32.mrb[0].mxu0
        %v2651 = vadd.f32 %v2490, %v2650
        %v2652 = vpop.f32.mrb[0].mxu0
        %v2653 = vpop.f32.mrb[0].mxu0
        %v2654 = vadd.f32 %v2493, %v2653
        %v2655 = vpop.f32.mrb[0].mxu0
        %2656 = vdwg.mxu0
        %2657 = vmatprep.subr.bf16.mxu0 0
        %2658 = vmatpush1.bf16.msra.mxu0 %v2078
        %2659 = vmatprep.subr.bf16.mxu0 0
        %2660 = vmatpush1.bf16.msra.mxu0 %v2079
        %2661 = vmatprep.subr.bf16.mxu0 0
        %2662 = vmatpush1.bf16.msra.mxu0 %v2080
        %2663 = vmatprep.subr.bf16.mxu0 0
        %2664 = vmatpush1.bf16.msra.mxu0 %v2081
        %2665 = vmatprep.subr.bf16.mxu0 0
        %2666 = vmatpush1.bf16.msra.mxu0 %v2082
        %2667 = vmatprep.subr.bf16.mxu0 0
        %2668 = vmatpush1.bf16.msra.mxu0 %v2083
        %2669 = vmatprep.subr.bf16.mxu0 0
        %2670 = vmatpush1.bf16.msra.mxu0 %v2084
        %2671 = vmatprep.subr.bf16.mxu0 0
        %2672 = vmatpush1.bf16.msra.mxu0 %v2085
        %2673 = vmatprep.subr.bf16.mxu0 0
        %2674 = vmatpush1.bf16.msra.mxu0 %v2086
        %2675 = vmatprep.subr.bf16.mxu0 0
        %2676 = vmatpush1.bf16.msra.mxu0 %v2087
        %2677 = vmatprep.subr.bf16.mxu0 0
        %2678 = vmatpush1.bf16.msra.mxu0 %v2088
        %2679 = vmatprep.subr.bf16.mxu0 0
        %2680 = vmatpush1.bf16.msra.mxu0 %v2089
        %2681 = vmatprep.subr.bf16.mxu0 0
        %2682 = vmatpush1.bf16.msra.mxu0 %v2090
        %2683 = vmatprep.subr.bf16.mxu0 0
        %2684 = vmatpush1.bf16.msra.mxu0 %v2091
        %2685 = vmatprep.subr.bf16.mxu0 0
        %2686 = vmatpush1.bf16.msra.mxu0 %v2092
        %2687 = vmatprep.subr.bf16.mxu0 0
        %2688 = vmatpush1.bf16.msra.mxu0 %v2093
        %2689 = vmatprep.mubr.bf16.mxu0 %v1330
        %2690 = vmatmul.mubr.bf16.gmra.mrb[0].mxu0 %v1239
        %v2691 = vpop.f32.mrb[0].mxu0
        %v2692 = vadd.f32 %v2531, %v2691
        %v2693 = vpop.f32.mrb[0].mxu0
        %v2694 = vpop.f32.mrb[0].mxu0
        %v2695 = vadd.f32 %v2534, %v2694
        %v2696 = vpop.f32.mrb[0].mxu0
        %2697 = vmatprep.mubr.bf16.mxu0 %v1342
        %2698 = vmatmul.mubr.bf16.gmra.mrb[0].mxu0 %v1240
        %v2699 = vpop.f32.mrb[0].mxu0
        %v2700 = vadd.f32 %v2539, %v2699
        %v2701 = vpop.f32.mrb[0].mxu0
        %v2702 = vpop.f32.mrb[0].mxu0
        %v2703 = vadd.f32 %v2542, %v2702
        %v2704 = vpop.f32.mrb[0].mxu0
        %2705 = vmatprep.mubr.bf16.mxu0 %v1354
        %2706 = vmatmul.mubr.bf16.gmra.mrb[0].mxu0 %v1241
        %v2707 = vpop.f32.mrb[0].mxu0
        %v2708 = vadd.f32 %v2547, %v2707
        %v2709 = vpop.f32.mrb[0].mxu0
        %v2710 = vpop.f32.mrb[0].mxu0
        %v2711 = vadd.f32 %v2550, %v2710
        %v2712 = vpop.f32.mrb[0].mxu0
        %2713 = vmatprep.mubr.bf16.mxu0 %v1366
        %2714 = vmatmul.mubr.bf16.gmra.mrb[0].mxu0 %v1242
        %v2715 = vpop.f32.mrb[0].mxu0
        %v2716 = vadd.f32 %v2555, %v2715
        %v2717 = vpop.f32.mrb[0].mxu0
        %v2718 = vpop.f32.mrb[0].mxu0
        %v2719 = vadd.f32 %v2558, %v2718
        %v2720 = vpop.f32.mrb[0].mxu0
        %2721 = vmatprep.mubr.bf16.mxu0 %v1378
        %2722 = vmatmul.mubr.bf16.gmra.mrb[0].mxu0 %v1243
        %v2723 = vpop.f32.mrb[0].mxu0
        %v2724 = vadd.f32 %v2563, %v2723
        %v2725 = vpop.f32.mrb[0].mxu0
        %v2726 = vpop.f32.mrb[0].mxu0
        %v2727 = vadd.f32 %v2566, %v2726
        %v2728 = vpop.f32.mrb[0].mxu0
        %2729 = vmatprep.mubr.bf16.mxu0 %v1390
        %2730 = vmatmul.mubr.bf16.gmra.mrb[0].mxu0 %v1244
        %v2731 = vpop.f32.mrb[0].mxu0
        %v2732 = vadd.f32 %v2571, %v2731
        %v2733 = vpop.f32.mrb[0].mxu0
        %v2734 = vpop.f32.mrb[0].mxu0
        %v2735 = vadd.f32 %v2574, %v2734
        %v2736 = vpop.f32.mrb[0].mxu0
        %2737 = vmatprep.mubr.bf16.mxu0 %v1402
        %2738 = vmatmul.mubr.bf16.gmra.mrb[0].mxu0 %v1245
        %v2739 = vpop.f32.mrb[0].mxu0
        %v2740 = vadd.f32 %v2579, %v2739
        %v2741 = vpop.f32.mrb[0].mxu0
        %v2742 = vpop.f32.mrb[0].mxu0
        %v2743 = vadd.f32 %v2582, %v2742
        %v2744 = vpop.f32.mrb[0].mxu0
        %2745 = vmatprep.mubr.bf16.mxu0 %v1414
        %2746 = vmatmul.mubr.bf16.gmra.mrb[0].mxu0 %v1246
        %v2747 = vpop.f32.mrb[0].mxu0
        %v2748 = vadd.f32 %v2587, %v2747
        %v2749 = vpop.f32.mrb[0].mxu0
        %v2750 = vpop.f32.mrb[0].mxu0
        %v2751 = vadd.f32 %v2590, %v2750
        %v2752 = vpop.f32.mrb[0].mxu0
        %2753 = vmatprep.mubr.bf16.mxu0 %v1426
        %2754 = vmatmul.mubr.bf16.gmra.mrb[0].mxu0 %v1247
        %v2755 = vpop.f32.mrb[0].mxu0
        %v2756 = vadd.f32 %v2595, %v2755
        %v2757 = vpop.f32.mrb[0].mxu0
        %v2758 = vpop.f32.mrb[0].mxu0
        %v2759 = vadd.f32 %v2598, %v2758
        %v2760 = vpop.f32.mrb[0].mxu0
        %2761 = vmatprep.mubr.bf16.mxu0 %v1438
        %2762 = vmatmul.mubr.bf16.gmra.mrb[0].mxu0 %v1248
        %v2763 = vpop.f32.mrb[0].mxu0
        %v2764 = vadd.f32 %v2603, %v2763
        %v2765 = vpop.f32.mrb[0].mxu0
        %v2766 = vpop.f32.mrb[0].mxu0
        %v2767 = vadd.f32 %v2606, %v2766
        %v2768 = vpop.f32.mrb[0].mxu0
        %2769 = vmatprep.mubr.bf16.mxu0 %v1450
        %2770 = vmatmul.mubr.bf16.gmra.mrb[0].mxu0 %v1249
        %v2771 = vpop.f32.mrb[0].mxu0
        %v2772 = vadd.f32 %v2611, %v2771
        %v2773 = vpop.f32.mrb[0].mxu0
        %v2774 = vpop.f32.mrb[0].mxu0
        %v2775 = vadd.f32 %v2614, %v2774
        %v2776 = vpop.f32.mrb[0].mxu0
        %2777 = vmatprep.mubr.bf16.mxu0 %v1462
        %2778 = vmatmul.mubr.bf16.gmra.mrb[0].mxu0 %v1250
        %v2779 = vpop.f32.mrb[0].mxu0
        %v2780 = vadd.f32 %v2619, %v2779
        %v2781 = vpop.f32.mrb[0].mxu0
        %v2782 = vpop.f32.mrb[0].mxu0
        %v2783 = vadd.f32 %v2622, %v2782
        %v2784 = vpop.f32.mrb[0].mxu0
        %2785 = vmatprep.mubr.bf16.mxu0 %v1474
        %2786 = vmatmul.mubr.bf16.gmra.mrb[0].mxu0 %v1251
        %v2787 = vpop.f32.mrb[0].mxu0
        %v2788 = vadd.f32 %v2627, %v2787
        %v2789 = vpop.f32.mrb[0].mxu0
        %v2790 = vpop.f32.mrb[0].mxu0
        %v2791 = vadd.f32 %v2630, %v2790
        %v2792 = vpop.f32.mrb[0].mxu0
        %2793 = vmatprep.mubr.bf16.mxu0 %v1486
        %2794 = vmatmul.mubr.bf16.gmra.mrb[0].mxu0 %v1252
        %v2795 = vpop.f32.mrb[0].mxu0
        %v2796 = vadd.f32 %v2635, %v2795
        %v2797 = vpop.f32.mrb[0].mxu0
        %v2798 = vpop.f32.mrb[0].mxu0
        %v2799 = vadd.f32 %v2638, %v2798
        %v2800 = vpop.f32.mrb[0].mxu0
        %2801 = vmatprep.mubr.bf16.mxu0 %v1498
        %2802 = vmatmul.mubr.bf16.gmra.mrb[0].mxu0 %v1253
        %v2803 = vpop.f32.mrb[0].mxu0
        %v2804 = vadd.f32 %v2643, %v2803
        %v2805 = vpop.f32.mrb[0].mxu0
        %v2806 = vpop.f32.mrb[0].mxu0
        %v2807 = vadd.f32 %v2646, %v2806
        %v2808 = vpop.f32.mrb[0].mxu0
        %2809 = vmatprep.mubr.bf16.mxu0 %v1510
        %2810 = vmatmul.mubr.bf16.gmra.mrb[0].mxu0 %v1254
        %v2811 = vpop.f32.mrb[0].mxu0
        %v2812 = vadd.f32 %v2651, %v2811
        %v2813 = vpop.f32.mrb[0].mxu0
        %v2814 = vpop.f32.mrb[0].mxu0
        %v2815 = vadd.f32 %v2654, %v2814
        %v2816 = vpop.f32.mrb[0].mxu0
        %2817 = vdwg.mxu0
        %2818 = vmatprep.subr.bf16.mxu0 0
        %2819 = vmatpush1.bf16.msra.mxu0 %v2094
        %2820 = vmatprep.subr.bf16.mxu0 0
        %2821 = vmatpush1.bf16.msra.mxu0 %v2095
        %2822 = vmatprep.subr.bf16.mxu0 0
        %2823 = vmatpush1.bf16.msra.mxu0 %v2096
        %2824 = vmatprep.subr.bf16.mxu0 0
        %2825 = vmatpush1.bf16.msra.mxu0 %v2097
        %2826 = vmatprep.subr.bf16.mxu0 0
        %2827 = vmatpush1.bf16.msra.mxu0 %v2098
        %2828 = vmatprep.subr.bf16.mxu0 0
        %2829 = vmatpush1.bf16.msra.mxu0 %v2099
        %2830 = vmatprep.subr.bf16.mxu0 0
        %2831 = vmatpush1.bf16.msra.mxu0 %v2100
        %2832 = vmatprep.subr.bf16.mxu0 0
        %2833 = vmatpush1.bf16.msra.mxu0 %v2101
        %2834 = vmatprep.subr.bf16.mxu0 0
        %2835 = vmatpush1.bf16.msra.mxu0 0
        %2836 = vmatprep.subr.bf16.mxu0 0
        %2837 = vmatpush1.bf16.msra.mxu0 0
        %2838 = vmatprep.subr.bf16.mxu0 0
        %2839 = vmatpush1.bf16.msra.mxu0 0
        %2840 = vmatprep.subr.bf16.mxu0 0
        %2841 = vmatpush1.bf16.msra.mxu0 0
        %2842 = vmatprep.subr.bf16.mxu0 0
        %2843 = vmatpush1.bf16.msra.mxu0 0
        %2844 = vmatprep.subr.bf16.mxu0 0
        %2845 = vmatpush1.bf16.msra.mxu0 0
        %2846 = vmatprep.subr.bf16.mxu0 0
        %2847 = vmatpush1.bf16.msra.mxu0 0
        %2848 = vmatprep.subr.bf16.mxu0 0
        %2849 = vmatpush1.bf16.msra.mxu0 0
        %2850 = vmatprep.mubr.bf16.mxu0 0
        %2851 = vmatmul.mubr.bf16.gmra.mrb[0].mxu0 %v1529
        %v2852 = vpop.f32.mrb[0].mxu0
        %v2853 = vadd.f32 %v2692, %v2852
        %v2854 = vpop.f32.mrb[0].mxu0
        %v2855 = vpop.f32.mrb[0].mxu0
        %v2856 = vadd.f32 %v2695, %v2855
        %v2857 = vpop.f32.mrb[0].mxu0
        %2858 = vmatprep.mubr.bf16.mxu0 0
        %2859 = vmatmul.mubr.bf16.gmra.mrb[0].mxu0 %v1532
        %v2860 = vpop.f32.mrb[0].mxu0
        %v2861 = vadd.f32 %v2700, %v2860
        %v2862 = vpop.f32.mrb[0].mxu0
        %v2863 = vpop.f32.mrb[0].mxu0
        %v2864 = vadd.f32 %v2703, %v2863
        %v2865 = vpop.f32.mrb[0].mxu0
        %2866 = vmatprep.mubr.bf16.mxu0 0
        %2867 = vmatmul.mubr.bf16.gmra.mrb[0].mxu0 %v1535
        %v2868 = vpop.f32.mrb[0].mxu0
        %v2869 = vadd.f32 %v2708, %v2868
        %v2870 = vpop.f32.mrb[0].mxu0
        %v2871 = vpop.f32.mrb[0].mxu0
        %v2872 = vadd.f32 %v2711, %v2871
        %v2873 = vpop.f32.mrb[0].mxu0
        %2874 = vmatprep.mubr.bf16.mxu0 0
        %2875 = vmatmul.mubr.bf16.gmra.mrb[0].mxu0 %v1538
        %v2876 = vpop.f32.mrb[0].mxu0
        %v2877 = vadd.f32 %v2716, %v2876
        %v2878 = vpop.f32.mrb[0].mxu0
        %v2879 = vpop.f32.mrb[0].mxu0
        %v2880 = vadd.f32 %v2719, %v2879
        %v2881 = vpop.f32.mrb[0].mxu0
        %2882 = vmatprep.mubr.bf16.mxu0 0
        %2883 = vmatmul.mubr.bf16.gmra.mrb[0].mxu0 %v1541
        %v2884 = vpop.f32.mrb[0].mxu0
        %v2885 = vadd.f32 %v2724, %v2884
        %v2886 = vpop.f32.mrb[0].mxu0
        %v2887 = vpop.f32.mrb[0].mxu0
        %v2888 = vadd.f32 %v2727, %v2887
        %v2889 = vpop.f32.mrb[0].mxu0
        %2890 = vmatprep.mubr.bf16.mxu0 0
        %2891 = vmatmul.mubr.bf16.gmra.mrb[0].mxu0 %v1544
        %v2892 = vpop.f32.mrb[0].mxu0
        %v2893 = vadd.f32 %v2732, %v2892
        %v2894 = vpop.f32.mrb[0].mxu0
        %v2895 = vpop.f32.mrb[0].mxu0
        %v2896 = vadd.f32 %v2735, %v2895
        %v2897 = vpop.f32.mrb[0].mxu0
        %2898 = vmatprep.mubr.bf16.mxu0 0
        %2899 = vmatmul.mubr.bf16.gmra.mrb[0].mxu0 %v1547
        %v2900 = vpop.f32.mrb[0].mxu0
        %v2901 = vadd.f32 %v2740, %v2900
        %v2902 = vpop.f32.mrb[0].mxu0
        %v2903 = vpop.f32.mrb[0].mxu0
        %v2904 = vadd.f32 %v2743, %v2903
        %v2905 = vpop.f32.mrb[0].mxu0
        %2906 = vmatprep.mubr.bf16.mxu0 0
        %2907 = vmatmul.mubr.bf16.gmra.mrb[0].mxu0 %v1550
        %v2908 = vpop.f32.mrb[0].mxu0
        %v2909 = vadd.f32 %v2748, %v2908
        %v2910 = vpop.f32.mrb[0].mxu0
        %v2911 = vpop.f32.mrb[0].mxu0
        %v2912 = vadd.f32 %v2751, %v2911
        %v2913 = vpop.f32.mrb[0].mxu0
        %2914 = vmatprep.mubr.bf16.mxu0 0
        %2915 = vmatmul.mubr.bf16.gmra.mrb[0].mxu0 %v1553
        %v2916 = vpop.f32.mrb[0].mxu0
        %v2917 = vadd.f32 %v2756, %v2916
        %v2918 = vpop.f32.mrb[0].mxu0
        %v2919 = vpop.f32.mrb[0].mxu0
        %v2920 = vadd.f32 %v2759, %v2919
        %v2921 = vpop.f32.mrb[0].mxu0
        %2922 = vmatprep.mubr.bf16.mxu0 0
        %2923 = vmatmul.mubr.bf16.gmra.mrb[0].mxu0 %v1556
        %v2924 = vpop.f32.mrb[0].mxu0
        %v2925 = vadd.f32 %v2764, %v2924
        %v2926 = vpop.f32.mrb[0].mxu0
        %v2927 = vpop.f32.mrb[0].mxu0
        %v2928 = vadd.f32 %v2767, %v2927
        %v2929 = vpop.f32.mrb[0].mxu0
        %2930 = vmatprep.mubr.bf16.mxu0 0
        %2931 = vmatmul.mubr.bf16.gmra.mrb[0].mxu0 %v1559
        %v2932 = vpop.f32.mrb[0].mxu0
        %v2933 = vadd.f32 %v2772, %v2932
        %v2934 = vpop.f32.mrb[0].mxu0
        %v2935 = vpop.f32.mrb[0].mxu0
        %v2936 = vadd.f32 %v2775, %v2935
        %v2937 = vpop.f32.mrb[0].mxu0
        %2938 = vmatprep.mubr.bf16.mxu0 0
        %2939 = vmatmul.mubr.bf16.gmra.mrb[0].mxu0 %v1562
        %v2940 = vpop.f32.mrb[0].mxu0
        %v2941 = vadd.f32 %v2780, %v2940
        %v2942 = vpop.f32.mrb[0].mxu0
        %v2943 = vpop.f32.mrb[0].mxu0
        %v2944 = vadd.f32 %v2783, %v2943
        %v2945 = vpop.f32.mrb[0].mxu0
        %2946 = vmatprep.mubr.bf16.mxu0 0
        %2947 = vmatmul.mubr.bf16.gmra.mrb[0].mxu0 %v1565
        %v2948 = vpop.f32.mrb[0].mxu0
        %v2949 = vadd.f32 %v2788, %v2948
        %v2950 = vpop.f32.mrb[0].mxu0
        %v2951 = vpop.f32.mrb[0].mxu0
        %v2952 = vadd.f32 %v2791, %v2951
        %v2953 = vpop.f32.mrb[0].mxu0
        %2954 = vmatprep.mubr.bf16.mxu0 0
        %2955 = vmatmul.mubr.bf16.gmra.mrb[0].mxu0 %v1568
        %v2956 = vpop.f32.mrb[0].mxu0
        %v2957 = vadd.f32 %v2796, %v2956
        %v2958 = vpop.f32.mrb[0].mxu0
        %v2959 = vpop.f32.mrb[0].mxu0
        %v2960 = vadd.f32 %v2799, %v2959
        %v2961 = vpop.f32.mrb[0].mxu0
        %2962 = vmatprep.mubr.bf16.mxu0 0
        %2963 = vmatmul.mubr.bf16.gmra.mrb[0].mxu0 %v1571
        %v2964 = vpop.f32.mrb[0].mxu0
        %v2965 = vadd.f32 %v2804, %v2964
        %v2966 = vpop.f32.mrb[0].mxu0
        %v2967 = vpop.f32.mrb[0].mxu0
        %v2968 = vadd.f32 %v2807, %v2967
        %v2969 = vpop.f32.mrb[0].mxu0
        %2970 = vmatprep.mubr.bf16.mxu0 0
        %2971 = vmatmul.mubr.bf16.gmra.mrb[0].mxu0 %v1574
        %v2972 = vpop.f32.mrb[0].mxu0
        %v2973 = vadd.f32 %v2812, %v2972
        %v2974 = vpop.f32.mrb[0].mxu0
        %v2975 = vpop.f32.mrb[0].mxu0
        %v2976 = vadd.f32 %v2815, %v2975
        %v2977 = vpop.f32.mrb[0].mxu0
        %2978 = vdwg.mxu0
        %v2979 = vmax.f32 %v2853, 0.0
        %v2980 = vmax.f32 %v2856, 0.0
        %v2981 = vmax.f32 %v2861, 0.0
        %v2982 = vmax.f32 %v2864, 0.0
        %v2983 = vmax.f32 %v2869, 0.0
        %v2984 = vmax.f32 %v2872, 0.0
        %v2985 = vmax.f32 %v2877, 0.0
        %v2986 = vmax.f32 %v2880, 0.0
        %v2987 = vmax.f32 %v2885, 0.0
        %v2988 = vmax.f32 %v2888, 0.0
        %v2989 = vmax.f32 %v2893, 0.0
        %v2990 = vmax.f32 %v2896, 0.0
        %v2991 = vmax.f32 %v2901, 0.0
        %v2992 = vmax.f32 %v2904, 0.0
        %v2993 = vmax.f32 %v2909, 0.0
        %v2994 = vmax.f32 %v2912, 0.0
        %v2995 = vmax.f32 %v2917, 0.0
        %v2996 = vmax.f32 %v2920, 0.0
        %v2997 = vmax.f32 %v2925, 0.0
        %v2998 = vmax.f32 %v2928, 0.0
        %v2999 = vmax.f32 %v2933, 0.0
        %v3000 = vmax.f32 %v2936, 0.0
        %v3001 = vmax.f32 %v2941, 0.0
        %v3002 = vmax.f32 %v2944, 0.0
        %v3003 = vmax.f32 %v2949, 0.0
        %v3004 = vmax.f32 %v2952, 0.0
        %v3005 = vmax.f32 %v2957, 0.0
        %v3006 = vmax.f32 %v2960, 0.0
        %v3007 = vmax.f32 %v2965, 0.0
        %v3008 = vmax.f32 %v2968, 0.0
        %v3009 = vmax.f32 %v2973, 0.0
        %v3010 = vmax.f32 %v2976, 0.0
        %v3011 = vpack.c.bf16 %v2980, %v2979
        %v3012 = vpack.c.bf16 %v2982, %v2981
        %v3013 = vpack.c.bf16 %v2984, %v2983
        %v3014 = vpack.c.bf16 %v2986, %v2985
        %v3015 = vpack.c.bf16 %v2988, %v2987
        %v3016 = vpack.c.bf16 %v2990, %v2989
        %v3017 = vpack.c.bf16 %v2992, %v2991
        %v3018 = vpack.c.bf16 %v2994, %v2993
        %v3019 = vpack.c.bf16 %v2996, %v2995
        %v3020 = vpack.c.bf16 %v2998, %v2997
        %v3021 = vpack.c.bf16 %v3000, %v2999
        %v3022 = vpack.c.bf16 %v3002, %v3001
        %v3023 = vpack.c.bf16 %v3004, %v3003
        %v3024 = vpack.c.bf16 %v3006, %v3005
        %v3025 = vpack.c.bf16 %v3008, %v3007
        %v3026 = vpack.c.bf16 %v3010, %v3009
        %v3043 = vunpack.c.l.b16 %v3011
        %v3044 = vunpack.c.h.b16 %v3011
        %v3045 = vunpack.c.l.b16 %v3012
        %v3046 = vunpack.c.h.b16 %v3012
        %v3047 = vunpack.c.l.b16 %v3013
        %v3048 = vunpack.c.h.b16 %v3013
        %v3049 = vunpack.c.l.b16 %v3014
        %v3050 = vunpack.c.h.b16 %v3014
        %v3051 = vunpack.c.l.b16 %v3015
        %v3052 = vunpack.c.h.b16 %v3015
        %v3053 = vunpack.c.l.b16 %v3016
        %v3054 = vunpack.c.h.b16 %v3016
        %v3055 = vunpack.c.l.b16 %v3017
        %v3056 = vunpack.c.h.b16 %v3017
        %v3057 = vunpack.c.l.b16 %v3018
        %v3058 = vunpack.c.h.b16 %v3018
        %v3059 = vunpack.c.l.b16 %v3019
        %v3060 = vunpack.c.h.b16 %v3019
        %v3061 = vunpack.c.l.b16 %v3020
        %v3062 = vunpack.c.h.b16 %v3020
        %v3063 = vunpack.c.l.b16 %v3021
        %v3064 = vunpack.c.h.b16 %v3021
        %v3065 = vunpack.c.l.b16 %v3022
        %v3066 = vunpack.c.h.b16 %v3022
        %v3067 = vunpack.c.l.b16 %v3023
        %v3068 = vunpack.c.h.b16 %v3023
        %v3069 = vunpack.c.l.b16 %v3024
        %v3070 = vunpack.c.h.b16 %v3024
        %v3071 = vunpack.c.l.b16 %v3025
        %v3072 = vunpack.c.h.b16 %v3025
        %v3073 = vunpack.c.l.b16 %v3026
        %v3074 = vunpack.c.h.b16 %v3026
        %v3075 = vpack.c.b16 %v3043, %v3043
        %v3076 = vpack.c.b16 %v3044, %v3044
        %v3077 = vpack.c.b16 %v3045, %v3045
        %v3078 = vpack.c.b16 %v3046, %v3046
        %v3079 = vpack.c.b16 %v3047, %v3047
        %v3080 = vpack.c.b16 %v3048, %v3048
        %v3081 = vpack.c.b16 %v3049, %v3049
        %v3082 = vpack.c.b16 %v3050, %v3050
        %v3083 = vpack.c.b16 %v3051, %v3051
        %v3084 = vpack.c.b16 %v3052, %v3052
        %v3085 = vpack.c.b16 %v3053, %v3053
        %v3086 = vpack.c.b16 %v3054, %v3054
        %v3087 = vpack.c.b16 %v3055, %v3055
        %v3088 = vpack.c.b16 %v3056, %v3056
        %v3089 = vpack.c.b16 %v3057, %v3057
        %v3090 = vpack.c.b16 %v3058, %v3058
        %v3091 = vpack.c.b16 %v3059, %v3059
        %v3092 = vpack.c.b16 %v3060, %v3060
        %v3093 = vpack.c.b16 %v3061, %v3061
        %v3094 = vpack.c.b16 %v3062, %v3062
        %v3095 = vpack.c.b16 %v3063, %v3063
        %v3096 = vpack.c.b16 %v3064, %v3064
        %v3097 = vpack.c.b16 %v3065, %v3065
        %v3098 = vpack.c.b16 %v3066, %v3066
        %v3099 = vpack.c.b16 %v3067, %v3067
        %v3100 = vpack.c.b16 %v3068, %v3068
        %v3101 = vpack.c.b16 %v3069, %v3069
        %v3102 = vpack.c.b16 %v3070, %v3070
        %v3103 = vpack.c.b16 %v3071, %v3071
        %v3104 = vpack.c.b16 %v3072, %v3072
        %v3105 = vpack.c.b16 %v3073, %v3073
        %v3106 = vpack.c.b16 %v3074, %v3074
        %3139 = vst [vmem:[%s177] sm:$0xf] %v3075
        %3140 = vst [vmem:[%s177 + $0x4] sm:$0xf] %v3076
        %3141 = vst [vmem:[%s177 + $0x8] sm:$0xf] %v3077
        %3142 = vst [vmem:[%s177 + $0xc] sm:$0xf] %v3078
        %3143 = vst [vmem:[%s177 + $0x10] sm:$0xf] %v3079
        %3144 = vst [vmem:[%s177 + $0x14] sm:$0xf] %v3080
        %3145 = vst [vmem:[%s177 + $0x18] sm:$0xf] %v3081
        %3146 = vst [vmem:[%s177 + $0x1c] sm:$0xf] %v3082
        %3147 = vst [vmem:[%s177 + $0x20] sm:$0xf] %v3083
        %3148 = vst [vmem:[%s177 + $0x24] sm:$0xf] %v3084
        %3149 = vst [vmem:[%s177 + $0x28] sm:$0xf] %v3085
        %3150 = vst [vmem:[%s177 + $0x2c] sm:$0xf] %v3086
        %3151 = vst [vmem:[%s177 + $0x30] sm:$0xf] %v3087
        %3152 = vst [vmem:[%s177 + $0x34] sm:$0xf] %v3088
        %3153 = vst [vmem:[%s177 + $0x38] sm:$0xf] %v3089
        %3154 = vst [vmem:[%s177 + $0x3c] sm:$0xf] %v3090
        %3155 = vst [vmem:[%s177 + $0x40] sm:$0xf] %v3091
        %3156 = vst [vmem:[%s177 + $0x44] sm:$0xf] %v3092
        %3157 = vst [vmem:[%s177 + $0x48] sm:$0xf] %v3093
        %3158 = vst [vmem:[%s177 + $0x4c] sm:$0xf] %v3094
        %3159 = vst [vmem:[%s177 + $0x50] sm:$0xf] %v3095
        %3160 = vst [vmem:[%s177 + $0x54] sm:$0xf] %v3096
        %3161 = vst [vmem:[%s177 + $0x58] sm:$0xf] %v3097
        %3162 = vst [vmem:[%s177 + $0x5c] sm:$0xf] %v3098
        %3163 = vst [vmem:[%s177 + $0x60] sm:$0xf] %v3099
        %3164 = vst [vmem:[%s177 + $0x64] sm:$0xf] %v3100
        %3165 = vst [vmem:[%s177 + $0x68] sm:$0xf] %v3101
        %3166 = vst [vmem:[%s177 + $0x6c] sm:$0xf] %v3102
        %3167 = vst [vmem:[%s177 + $0x70] sm:$0xf] %v3103
        %3168 = vst [vmem:[%s177 + $0x74] sm:$0xf] %v3104
        %3169 = vst [vmem:[%s177 + $0x78] sm:$0xf] %v3105
        %3170 = vst [vmem:[%s177 + $0x7c] sm:$0xf] %v3106
        %s3171 = sand.u32 %s107, 1
        %s3172 = scalar_lea.sflag [#allocation3], %s3171
        %s3173 = sand.u32 %s107, 1
        %s3174 = smul.addr %s3173, 128
        %s3175 = scalar_lea.vmem [#allocation2], %s3174
        // Predicated region
        $region33: #{tpu_custom_call.1} parent=31 // pred_check
          %p3176 = pneg %p117
        $region34: #{tpu_custom_call.1} parent=31 // pred_check_branch
          %3178 = sbr.rel (%p3176) target = $region36
        $region35: #{tpu_custom_call.1} parent=31 // pred_region
          %s3179 = smul.u32 16, %s22
          %s3181 = ssub.s32 2048, 2048
          %3182 = vsyncadd %s3172, %s3181
          %s3183 = smul.addr %s3179, 2
          %s3184 = smul.addr %s21, 32
          %s3185 = sadd.s32 %s3183, %s3184
          %s3186 = smul.addr %s3185, 64
          %s3187 = scalar_lea.hbm %s3, %s3186
          %s3188 = sshll.u32 %s3175, 4
          %s3189 = int_to_ptr.vmem [resolvable:$true] %s3188
          %3194 = dma.vmem_to_hbm [thread:$0]  %s3189, 2048, %s3187, %s3172, 64, 64, 4
        $region36: #{tpu_custom_call.1} parent=31 // pred_fallthru
          _
      $region32: #{tpu_custom_call.1} parent=5 // pred_fallthru
        _
      %p3195 = scmp.le.s32.totalorder 2, %s12
      // Predicated region
      $region37: #{tpu_custom_call.1} parent=5 // pred_check
        %p3196 = pneg %p3195
      $region38: #{tpu_custom_call.1} parent=5 // pred_check_branch
        %3198 = sbr.rel (%p3196) target = $region40
      $region39: #{tpu_custom_call.1} parent=5 // pred_region
        %s3199 = ssub.s32 %s12, 2
        // Predicated region
        $region41: #{tpu_custom_call.1} parent=39 // pred_check
          %p3200 = pneg %p123
        $region42: #{tpu_custom_call.1} parent=39 // pred_check_branch
          %3202 = sbr.rel (%p3200) target = $region44
        $region43: #{tpu_custom_call.1} parent=39 // pred_region
          %s3203 = sand.u32 %s108, 1
          %s3204 = scalar_lea.sflag [#allocation3], %s3203
          %s3205 = sand.u32 %s108, 1
          %s3206 = smul.addr %s3205, 128
          %s3207 = scalar_lea.vmem [#allocation2], %s3206
          %3208 = dma.done %s3204, 2048
        $region44: #{tpu_custom_call.1} parent=39 // pred_fallthru
          _
      $region40: #{tpu_custom_call.1} parent=5 // pred_fallthru
        _
    $region6: #{tpu_custom_call.1} parent=1 // loop_footer
      %s16 = sadd.s32 1, %s12
    $region7: #{tpu_custom_call.1} parent=1 // loop_footer_branch
      %11 = sbr.rel target = $region3
    $region8: #{tpu_custom_call.1} parent=1 // loop_exit
      _
    %3209 = vsyncpa [#allocation3], 1
    %s3210 = scalar_lea.sflag [#allocation3], 1
    %3211 = vsyncpa %s3210, 1

// kernel: tpu_custom_call.1
$region0: #{tpu_custom_call.1}
  #allocation0 [shape = 'u32[]', space=smem, size = 0x4, offset = 0x4, fixed_abs, tag = 'smem constant byte address 0x4 - core index']
  #allocation1 [shape = 'u32[144,128]{1,0:T(1,128)}', space=vmem, size = 0x12000, scoped, tag = 'internal scratch']
  %s0 = inlined_call_operand.vmem [shape: bf16[2,18,18,128], index: 0, kind: input, shape index: {}]
  %s1 = inlined_call_operand.vmem [shape: bf16[1152,128], index: 1, kind: input, shape index: {}]
  %s2 = inlined_call_operand.vmem [shape: f32[1,128], index: 2, kind: input, shape index: {}]
  %s3 = inlined_call_operand.hbm [shape: bf16[2,16,16,128], index: 3, kind: output, shape index: {}]
  %s4 = sld [smem:[#allocation0]]
  $region45: #{tpu_custom_call.1} parent=0
    _
  %s6 = ssub.s32 1, %s4
  %s7 = scalar_select 0, %s6, %s4
  $region1: #{tpu_custom_call.1} parent=0
    #allocation2 [shape = 'u8[131072]{0}', space=vmem, size = 0x20000, scoped, tag = 'output window, operand 0']
    #allocation3 [shape = 's32[2]{0}', space=sflag, size = 0x8, scoped, tag = 'scoped memory for tpu_custom_call.1']
    %8 = vsyncpa [#allocation3], 0
    %s9 = scalar_lea.sflag [#allocation3], 1
    %10 = vsyncpa %s9, 0
    loop: start=0, step=1, limit=4
    $region2: #{tpu_custom_call.1} parent=1 // loop_pre_header
      _
    $region3: #{tpu_custom_call.1} parent=1 // loop_header
      %s12 = sphi 0, %s16
      %p13 = scmp.ge.s32.totalorder %s12, 4
      %s19 = sphi 0, %s31
      %s20 = sphi 0, %s27
      %s21 = sphi 0, %s19
      %s22 = sphi 0, %s20
      %s23 = sphi 0, %s21
      %s24 = sphi 0, %s22
      %s34 = sphi 0, %s36
      %s37 = sphi 0, %s34
      %s38 = sphi 0, %s37
      %s54 = sphi 0, %s38
      %s58 = sphi 0, %s58
      %s60 = sphi 0, %s58
      %s61 = sphi 0, %s60
      %s75 = sphi 0, %s61
      %s79 = sphi 0, %s79
      %s81 = sphi 0, %s79
      %s82 = sphi 0, %s81
      %s96 = sphi 0, %s82
      %s104 = sphi 0, %s106
      %s107 = sphi 0, %s104
      %s108 = sphi 0, %s107
      %s124 = sphi 0, %s108
    $region4: #{tpu_custom_call.1} parent=1 // loop_header_branch
      %15 = sbr.rel (%p13) target = $region8
    $region5: #{tpu_custom_call.1} parent=1 // loop_body
      %s17 = ssub.s32 %s12, 1
      %s18 = ssub.s32 %s12, 2
      %s25 = sadd.s32 1, %s20
      %p26 = scmp.ge.s32.totalorder %s25, 1
      %s27 = scalar_select %p26, 0, %s25
      %s28 = sadd.s32 1, %s19
      %s29 = scalar_select %p26, %s28, %s19
      %p30 = scmp.ge.s32.totalorder %s29, 2
      %s31 = scalar_select %p30, 0, %s29
      %s32 = ssub.s32 %s19, %s31
      %p33 = scmp.eq.s32.totalorder %s32, 0
      %s35 = sadd.s32 %s34, 1
      %s36 = scalar_select %p33, %s34, %s35
      %p39 = pneg %p33
      %p40 = scmp.eq.s32.totalorder %s12, 1
      %p41 = por %p39, %p40
      %p42 = scmp.ne.s32.totalorder %s34, %s37
      %p43 = scmp.eq.s32.totalorder %s12, 0
      %p44 = por %p42, %p43
      %p45 = scmp.ne.s32.totalorder %s34, %s37
      %p46 = scmp.eq.s32.totalorder %s17, 1
      %p47 = por %p45, %p46
      %p48 = scmp.ne.s32.totalorder %s37, %s38
      %p49 = scmp.eq.s32.totalorder %s17, 0
      %p50 = por %p48, %p49
      %p51 = scmp.ne.s32.totalorder %s37, %s38
      %p52 = scmp.eq.s32.totalorder %s18, 1
      %p53 = por %p51, %p52
      %p55 = scmp.ne.s32.totalorder %s38, %s54
      %p56 = scmp.eq.s32.totalorder %s18, 0
      %p57 = por %p55, %p56
      %s59 = sadd.s32 %s58, 1
      %p62 = scmp.eq.s32.totalorder %s12, 1
      %p63 = scmp.ne.s32.totalorder %s58, %s60
      %p64 = scmp.eq.s32.totalorder %s12, 0
      %p65 = por %p63, %p64
      %p66 = scmp.ne.s32.totalorder %s58, %s60
      %p67 = scmp.eq.s32.totalorder %s17, 1
      %p68 = por %p66, %p67
      %p69 = scmp.ne.s32.totalorder %s60, %s61
      %p70 = scmp.eq.s32.totalorder %s17, 0
      %p71 = por %p69, %p70
      %p72 = scmp.ne.s32.totalorder %s60, %s61
      %p73 = scmp.eq.s32.totalorder %s18, 1
      %p74 = por %p72, %p73
      %p76 = scmp.ne.s32.totalorder %s61, %s75
      %p77 = scmp.eq.s32.totalorder %s18, 0
      %p78 = por %p76, %p77
      %s80 = sadd.s32 %s79, 1
      %p83 = scmp.eq.s32.totalorder %s12, 1
      %p84 = scmp.ne.s32.totalorder %s79, %s81
      %p85 = scmp.eq.s32.totalorder %s12, 0
      %p86 = por %p84, %p85
      %p87 = scmp.ne.s32.totalorder %s79, %s81
      %p88 = scmp.eq.s32.totalorder %s17, 1
      %p89 = por %p87, %p88
      %p90 = scmp.ne.s32.totalorder %s81, %s82
      %p91 = scmp.eq.s32.totalorder %s17, 0
      %p92 = por %p90, %p91
      %p93 = scmp.ne.s32.totalorder %s81, %s82
      %p94 = scmp.eq.s32.totalorder %s18, 1
      %p95 = por %p93, %p94
      %p97 = scmp.ne.s32.totalorder %s82, %s96
      %p98 = scmp.eq.s32.totalorder %s18, 0
      %p99 = por %p97, %p98
      %s100 = ssub.s32 %s19, %s31
      %s101 = ssub.s32 %s20, %s27
      %s102 = sor.u32 %s100, %s101
      %p103 = scmp.eq.s32.totalorder %s102, 0
      %s105 = sadd.s32 %s104, 1
      %s106 = scalar_select %p103, %s104, %s105
      %p109 = pneg %p103
      %p110 = scmp.eq.s32.totalorder %s12, 1
      %p111 = por %p109, %p110
      %p112 = scmp.ne.s32.totalorder %s104, %s107
      %p113 = scmp.eq.s32.totalorder %s12, 0
      %p114 = por %p112, %p113
      %p115 = scmp.ne.s32.totalorder %s104, %s107
      %p116 = scmp.eq.s32.totalorder %s17, 1
      %p117 = por %p115, %p116
      %p118 = scmp.ne.s32.totalorder %s107, %s108
      %p119 = scmp.eq.s32.totalorder %s17, 0
      %p120 = por %p118, %p119
      %p121 = scmp.ne.s32.totalorder %s107, %s108
      %p122 = scmp.eq.s32.totalorder %s18, 1
      %p123 = por %p121, %p122
      %p125 = scmp.ne.s32.totalorder %s108, %s124
      %p126 = scmp.eq.s32.totalorder %s18, 0
      %p127 = por %p125, %p126
      %p128 = scmp.le.s32.totalorder 1, %s12
      %p129 = scmp.lt.s32.totalorder %s12, 3
      %p130 = pnand %p128, %p129
      %p131 = pneg %p130
      // Predicated region
      $region9: #{tpu_custom_call.1} parent=5 // pred_check
        _
      $region10: #{tpu_custom_call.1} parent=5 // pred_check_branch
        %133 = sbr.rel (%p130) target = $region12
      $region11: #{tpu_custom_call.1} parent=5 // pred_region
        %s134 = ssub.s32 %s12, 1
        // Predicated region
        $region13: #{tpu_custom_call.1} parent=11 // pred_check
          %p135 = pneg %p71
        $region14: #{tpu_custom_call.1} parent=11 // pred_check_branch
          %137 = sbr.rel (%p135) target = $region16
        $region15: #{tpu_custom_call.1} parent=11 // pred_region
          _
        $region16: #{tpu_custom_call.1} parent=11 // pred_fallthru
          _
        // Predicated region
        $region17: #{tpu_custom_call.1} parent=11 // pred_check
          %p138 = pneg %p92
        $region18: #{tpu_custom_call.1} parent=11 // pred_check_branch
          %140 = sbr.rel (%p138) target = $region20
        $region19: #{tpu_custom_call.1} parent=11 // pred_region
          _
        $region20: #{tpu_custom_call.1} parent=11 // pred_fallthru
          _
      $region12: #{tpu_custom_call.1} parent=5 // pred_fallthru
        _
      %p141 = scmp.lt.s32.totalorder %s12, 2
      // Predicated region
      $region21: #{tpu_custom_call.1} parent=5 // pred_check
        %p142 = pneg %p141
      $region22: #{tpu_custom_call.1} parent=5 // pred_check_branch
        %144 = sbr.rel (%p142) target = $region24
      $region23: #{tpu_custom_call.1} parent=5 // pred_region
        // Predicated region
        $region25: #{tpu_custom_call.1} parent=23 // pred_check
          %p145 = pneg %p44
        $region26: #{tpu_custom_call.1} parent=23 // pred_check_branch
          %147 = sbr.rel (%p145) target = $region28
        $region27: #{tpu_custom_call.1} parent=23 // pred_region
          %p148 = scmp.lt.s32.totalorder %s19, 1
          %s149 = scalar_select %p148, %s19, 1
          %s150 = smul.addr %s149, 54
          %s151 = smul.addr %s150, 4
          %s152 = scalar_lea.vmem %s0, %s151
        $region28: #{tpu_custom_call.1} parent=23 // pred_fallthru
          _
      $region24: #{tpu_custom_call.1} parent=5 // pred_fallthru
        _
      %p153 = scmp.le.s32.totalorder 1, %s12
      %p154 = scmp.lt.s32.totalorder %s12, 3
      %p155 = pnand %p153, %p154
      %p156 = pneg %p155
      // Predicated region
      $region29: #{tpu_custom_call.1} parent=5 // pred_check
        _
      $region30: #{tpu_custom_call.1} parent=5 // pred_check_branch
        %158 = sbr.rel (%p155) target = $region32
      $region31: #{tpu_custom_call.1} parent=5 // pred_region
        %s159 = ssub.s32 %s12, 1
        %p160 = scmp.lt.s32.totalorder %s21, 1
        %s161 = scalar_select %p160, %s21, 1
        %s162 = smul.addr %s161, 54
        %s163 = smul.addr %s162, 4
        %s164 = scalar_lea.vmem %s0, %s163
        %p165 = pneg %p50
        %p166 = pneg %p47
        %p167 = pneg %p71
        %p168 = pneg %p68
        %p169 = pneg %p92
        %p170 = pneg %p89
        %p171 = pneg %p120
        %p172 = pneg %p117
        %s173 = sand.u32 %s107, 1
        %s174 = scalar_lea.sflag [#allocation3], %s173
        %s175 = sand.u32 %s107, 1
        %s176 = smul.addr %s175, 128
        %s177 = scalar_lea.vmem [#allocation2], %s176
        %p178 = scmp.lt.s32.totalorder %s21, 1
        %s179 = scalar_select %p178, %s21, 1
        %s180 = smul.addr %s179, 54
        %s181 = smul.addr %s180, 4
        %s182 = scalar_lea.vmem %s0, %s181
        %s183 = smul.u32 16, %s22
        %s185 = smul.u32 %s22, 16
        %s186 = smul.u32 %s185, 3
        %s187 = smul.addr %s186, 4
        %s188 = scalar_lea.vmem %s182, %s187
        %v189 = vld [vmem:[%s188] sm:$0xf]
        %v190 = vld [vmem:[%s188 + $0x4] sm:$0xf]
        %v191 = vld [vmem:[%s188 + $0x8] sm:$0x1]
        %v192 = vld [vmem:[%s188 + $0xc] sm:$0xf]
        %v193 = vld [vmem:[%s188 + $0x10] sm:$0xf]
        %v194 = vld [vmem:[%s188 + $0x14] sm:$0x1]
        %v195 = vld [vmem:[%s188 + $0x18] sm:$0xf]
        %v196 = vld [vmem:[%s188 + $0x1c] sm:$0xf]
        %v197 = vld [vmem:[%s188 + $0x20] sm:$0x1]
        %v198 = vld [vmem:[%s188 + $0x24] sm:$0xf]
        %v199 = vld [vmem:[%s188 + $0x28] sm:$0xf]
        %v200 = vld [vmem:[%s188 + $0x2c] sm:$0x1]
        %v201 = vld [vmem:[%s188 + $0x30] sm:$0xf]
        %v202 = vld [vmem:[%s188 + $0x34] sm:$0xf]
        %v203 = vld [vmem:[%s188 + $0x38] sm:$0x1]
        %v204 = vld [vmem:[%s188 + $0x3c] sm:$0xf]
        %v205 = vld [vmem:[%s188 + $0x40] sm:$0xf]
        %v206 = vld [vmem:[%s188 + $0x44] sm:$0x1]
        %v207 = vld [vmem:[%s188 + $0x48] sm:$0xf]
        %v208 = vld [vmem:[%s188 + $0x4c] sm:$0xf]
        %v209 = vld [vmem:[%s188 + $0x50] sm:$0x1]
        %v210 = vld [vmem:[%s188 + $0x54] sm:$0xf]
        %v211 = vld [vmem:[%s188 + $0x58] sm:$0xf]
        %v212 = vld [vmem:[%s188 + $0x5c] sm:$0x1]
        %v213 = vld [vmem:[%s188 + $0x60] sm:$0xf]
        %v214 = vld [vmem:[%s188 + $0x64] sm:$0xf]
        %v215 = vld [vmem:[%s188 + $0x68] sm:$0x1]
        %v216 = vld [vmem:[%s188 + $0x6c] sm:$0xf]
        %v217 = vld [vmem:[%s188 + $0x70] sm:$0xf]
        %v218 = vld [vmem:[%s188 + $0x74] sm:$0x1]
        %v219 = vld [vmem:[%s188 + $0x78] sm:$0xf]
        %v220 = vld [vmem:[%s188 + $0x7c] sm:$0xf]
        %v221 = vld [vmem:[%s188 + $0x80] sm:$0x1]
        %v222 = vld [vmem:[%s188 + $0x84] sm:$0xf]
        %v223 = vld [vmem:[%s188 + $0x88] sm:$0xf]
        %v224 = vld [vmem:[%s188 + $0x8c] sm:$0x1]
        %v225 = vld [vmem:[%s188 + $0x90] sm:$0xf]
        %v226 = vld [vmem:[%s188 + $0x94] sm:$0xf]
        %v227 = vld [vmem:[%s188 + $0x98] sm:$0x1]
        %v228 = vld [vmem:[%s188 + $0x9c] sm:$0xf]
        %v229 = vld [vmem:[%s188 + $0xa0] sm:$0xf]
        %v230 = vld [vmem:[%s188 + $0xa4] sm:$0x1]
        %v231 = vld [vmem:[%s188 + $0xa8] sm:$0xf]
        %v232 = vld [vmem:[%s188 + $0xac] sm:$0xf]
        %v233 = vld [vmem:[%s188 + $0xb0] sm:$0x1]
        %v234 = vld [vmem:[%s188 + $0xb4] sm:$0xf]
        %v235 = vld [vmem:[%s188 + $0xb8] sm:$0xf]
        %v236 = vld [vmem:[%s188 + $0xbc] sm:$0x1]
        %s237 = sadd.s32 %s185, 1
        %s238 = smul.u32 %s237, 3
        %s239 = smul.addr %s238, 4
        %s240 = scalar_lea.vmem %s182, %s239
        %v241 = vld [vmem:[%s240] sm:$0xf]
        %v242 = vld [vmem:[%s240 + $0x4] sm:$0xf]
        %v243 = vld [vmem:[%s240 + $0x8] sm:$0x1]
        %v244 = vld [vmem:[%s240 + $0xc] sm:$0xf]
        %v245 = vld [vmem:[%s240 + $0x10] sm:$0xf]
        %v246 = vld [vmem:[%s240 + $0x14] sm:$0x1]
        %v247 = vld [vmem:[%s240 + $0x18] sm:$0xf]
        %v248 = vld [vmem:[%s240 + $0x1c] sm:$0xf]
        %v249 = vld [vmem:[%s240 + $0x20] sm:$0x1]
        %v250 = vld [vmem:[%s240 + $0x24] sm:$0xf]
        %v251 = vld [vmem:[%s240 + $0x28] sm:$0xf]
        %v252 = vld [vmem:[%s240 + $0x2c] sm:$0x1]
        %v253 = vld [vmem:[%s240 + $0x30] sm:$0xf]
        %v254 = vld [vmem:[%s240 + $0x34] sm:$0xf]
        %v255 = vld [vmem:[%s240 + $0x38] sm:$0x1]
        %v256 = vld [vmem:[%s240 + $0x3c] sm:$0xf]
        %v257 = vld [vmem:[%s240 + $0x40] sm:$0xf]
        %v258 = vld [vmem:[%s240 + $0x44] sm:$0x1]
        %v259 = vld [vmem:[%s240 + $0x48] sm:$0xf]
        %v260 = vld [vmem:[%s240 + $0x4c] sm:$0xf]
        %v261 = vld [vmem:[%s240 + $0x50] sm:$0x1]
        %v262 = vld [vmem:[%s240 + $0x54] sm:$0xf]
        %v263 = vld [vmem:[%s240 + $0x58] sm:$0xf]
        %v264 = vld [vmem:[%s240 + $0x5c] sm:$0x1]
        %v265 = vld [vmem:[%s240 + $0x60] sm:$0xf]
        %v266 = vld [vmem:[%s240 + $0x64] sm:$0xf]
        %v267 = vld [vmem:[%s240 + $0x68] sm:$0x1]
        %v268 = vld [vmem:[%s240 + $0x6c] sm:$0xf]
        %v269 = vld [vmem:[%s240 + $0x70] sm:$0xf]
        %v270 = vld [vmem:[%s240 + $0x74] sm:$0x1]
        %v271 = vld [vmem:[%s240 + $0x78] sm:$0xf]
        %v272 = vld [vmem:[%s240 + $0x7c] sm:$0xf]
        %v273 = vld [vmem:[%s240 + $0x80] sm:$0x1]
        %v274 = vld [vmem:[%s240 + $0x84] sm:$0xf]
        %v275 = vld [vmem:[%s240 + $0x88] sm:$0xf]
        %v276 = vld [vmem:[%s240 + $0x8c] sm:$0x1]
        %v277 = vld [vmem:[%s240 + $0x90] sm:$0xf]
        %v278 = vld [vmem:[%s240 + $0x94] sm:$0xf]
        %v279 = vld [vmem:[%s240 + $0x98] sm:$0x1]
        %v280 = vld [vmem:[%s240 + $0x9c] sm:$0xf]
        %v281 = vld [vmem:[%s240 + $0xa0] sm:$0xf]
        %v282 = vld [vmem:[%s240 + $0xa4] sm:$0x1]
        %v283 = vld [vmem:[%s240 + $0xa8] sm:$0xf]
        %v284 = vld [vmem:[%s240 + $0xac] sm:$0xf]
        %v285 = vld [vmem:[%s240 + $0xb0] sm:$0x1]
        %v286 = vld [vmem:[%s240 + $0xb4] sm:$0xf]
        %v287 = vld [vmem:[%s240 + $0xb8] sm:$0xf]
        %v288 = vld [vmem:[%s240 + $0xbc] sm:$0x1]
        %s289 = sadd.s32 %s185, 2
        %s290 = smul.u32 %s289, 3
        %s291 = smul.addr %s290, 4
        %s292 = scalar_lea.vmem %s182, %s291
        %v293 = vld [vmem:[%s292] sm:$0xf]
        %v294 = vld [vmem:[%s292 + $0x4] sm:$0xf]
        %v295 = vld [vmem:[%s292 + $0x8] sm:$0x1]
        %v296 = vld [vmem:[%s292 + $0xc] sm:$0xf]
        %v297 = vld [vmem:[%s292 + $0x10] sm:$0xf]
        %v298 = vld [vmem:[%s292 + $0x14] sm:$0x1]
        %v299 = vld [vmem:[%s292 + $0x18] sm:$0xf]
        %v300 = vld [vmem:[%s292 + $0x1c] sm:$0xf]
        %v301 = vld [vmem:[%s292 + $0x20] sm:$0x1]
        %v302 = vld [vmem:[%s292 + $0x24] sm:$0xf]
        %v303 = vld [vmem:[%s292 + $0x28] sm:$0xf]
        %v304 = vld [vmem:[%s292 + $0x2c] sm:$0x1]
        %v305 = vld [vmem:[%s292 + $0x30] sm:$0xf]
        %v306 = vld [vmem:[%s292 + $0x34] sm:$0xf]
        %v307 = vld [vmem:[%s292 + $0x38] sm:$0x1]
        %v308 = vld [vmem:[%s292 + $0x3c] sm:$0xf]
        %v309 = vld [vmem:[%s292 + $0x40] sm:$0xf]
        %v310 = vld [vmem:[%s292 + $0x44] sm:$0x1]
        %v311 = vld [vmem:[%s292 + $0x48] sm:$0xf]
        %v312 = vld [vmem:[%s292 + $0x4c] sm:$0xf]
        %v313 = vld [vmem:[%s292 + $0x50] sm:$0x1]
        %v314 = vld [vmem:[%s292 + $0x54] sm:$0xf]
        %v315 = vld [vmem:[%s292 + $0x58] sm:$0xf]
        %v316 = vld [vmem:[%s292 + $0x5c] sm:$0x1]
        %v317 = vld [vmem:[%s292 + $0x60] sm:$0xf]
        %v318 = vld [vmem:[%s292 + $0x64] sm:$0xf]
        %v319 = vld [vmem:[%s292 + $0x68] sm:$0x1]
        %v320 = vld [vmem:[%s292 + $0x6c] sm:$0xf]
        %v321 = vld [vmem:[%s292 + $0x70] sm:$0xf]
        %v322 = vld [vmem:[%s292 + $0x74] sm:$0x1]
        %v323 = vld [vmem:[%s292 + $0x78] sm:$0xf]
        %v324 = vld [vmem:[%s292 + $0x7c] sm:$0xf]
        %v325 = vld [vmem:[%s292 + $0x80] sm:$0x1]
        %v326 = vld [vmem:[%s292 + $0x84] sm:$0xf]
        %v327 = vld [vmem:[%s292 + $0x88] sm:$0xf]
        %v328 = vld [vmem:[%s292 + $0x8c] sm:$0x1]
        %v329 = vld [vmem:[%s292 + $0x90] sm:$0xf]
        %v330 = vld [vmem:[%s292 + $0x94] sm:$0xf]
        %v331 = vld [vmem:[%s292 + $0x98] sm:$0x1]
        %v332 = vld [vmem:[%s292 + $0x9c] sm:$0xf]
        %v333 = vld [vmem:[%s292 + $0xa0] sm:$0xf]
        %v334 = vld [vmem:[%s292 + $0xa4] sm:$0x1]
        %v335 = vld [vmem:[%s292 + $0xa8] sm:$0xf]
        %v336 = vld [vmem:[%s292 + $0xac] sm:$0xf]
        %v337 = vld [vmem:[%s292 + $0xb0] sm:$0x1]
        %v338 = vld [vmem:[%s292 + $0xb4] sm:$0xf]
        %v339 = vld [vmem:[%s292 + $0xb8] sm:$0xf]
        %v340 = vld [vmem:[%s292 + $0xbc] sm:$0x1]
        %v373 = vunpack.c.l.b16 %v189
        %v374 = vunpack.c.l.b16 %v190
        %v375 = vunpack.c.l.b16 %v192
        %v376 = vunpack.c.l.b16 %v193
        %v377 = vunpack.c.l.b16 %v195
        %v378 = vunpack.c.l.b16 %v196
        %v379 = vunpack.c.l.b16 %v198
        %v380 = vunpack.c.l.b16 %v199
        %v381 = vunpack.c.l.b16 %v201
        %v382 = vunpack.c.l.b16 %v202
        %v383 = vunpack.c.l.b16 %v204
        %v384 = vunpack.c.l.b16 %v205
        %v385 = vunpack.c.l.b16 %v207
        %v386 = vunpack.c.l.b16 %v208
        %v387 = vunpack.c.l.b16 %v210
        %v388 = vunpack.c.l.b16 %v211
        %v389 = vunpack.c.l.b16 %v213
        %v390 = vunpack.c.l.b16 %v214
        %v391 = vunpack.c.l.b16 %v216
        %v392 = vunpack.c.l.b16 %v217
        %v393 = vunpack.c.l.b16 %v219
        %v394 = vunpack.c.l.b16 %v220
        %v395 = vunpack.c.l.b16 %v222
        %v396 = vunpack.c.l.b16 %v223
        %v397 = vunpack.c.l.b16 %v225
        %v398 = vunpack.c.l.b16 %v226
        %v399 = vunpack.c.l.b16 %v228
        %v400 = vunpack.c.l.b16 %v229
        %v401 = vunpack.c.l.b16 %v231
        %v402 = vunpack.c.l.b16 %v232
        %v403 = vunpack.c.l.b16 %v234
        %v404 = vunpack.c.l.b16 %v235
        %v405 = vpack.c.b16 %v374, %v373
        %v406 = vpack.c.b16 %v376, %v375
        %v407 = vpack.c.b16 %v378, %v377
        %v408 = vpack.c.b16 %v380, %v379
        %v409 = vpack.c.b16 %v382, %v381
        %v410 = vpack.c.b16 %v384, %v383
        %v411 = vpack.c.b16 %v386, %v385
        %v412 = vpack.c.b16 %v388, %v387
        %v413 = vpack.c.b16 %v390, %v389
        %v414 = vpack.c.b16 %v392, %v391
        %v415 = vpack.c.b16 %v394, %v393
        %v416 = vpack.c.b16 %v396, %v395
        %v417 = vpack.c.b16 %v398, %v397
        %v418 = vpack.c.b16 %v400, %v399
        %v419 = vpack.c.b16 %v402, %v401
        %v420 = vpack.c.b16 %v404, %v403
        %v453 = vunpack.c.l.b16 %v191
        %v454 = vunpack.c.l.b16 %v194
        %v455 = vunpack.c.l.b16 %v197
        %v456 = vunpack.c.l.b16 %v200
        %v457 = vunpack.c.l.b16 %v203
        %v458 = vunpack.c.l.b16 %v206
        %v459 = vunpack.c.l.b16 %v209
        %v460 = vunpack.c.l.b16 %v212
        %v461 = vunpack.c.l.b16 %v215
        %v462 = vunpack.c.l.b16 %v218
        %v463 = vunpack.c.l.b16 %v221
        %v464 = vunpack.c.l.b16 %v224
        %v465 = vunpack.c.l.b16 %v227
        %v466 = vunpack.c.l.b16 %v230
        %v467 = vunpack.c.l.b16 %v233
        %v468 = vunpack.c.l.b16 %v236
        %v469 = vpack.c.b16 %v453, %v453
        %v470 = vpack.c.b16 %v454, %v454
        %v471 = vpack.c.b16 %v455, %v455
        %v472 = vpack.c.b16 %v456, %v456
        %v473 = vpack.c.b16 %v457, %v457
        %v474 = vpack.c.b16 %v458, %v458
        %v475 = vpack.c.b16 %v459, %v459
        %v476 = vpack.c.b16 %v460, %v460
        %v477 = vpack.c.b16 %v461, %v461
        %v478 = vpack.c.b16 %v462, %v462
        %v479 = vpack.c.b16 %v463, %v463
        %v480 = vpack.c.b16 %v464, %v464
        %v481 = vpack.c.b16 %v465, %v465
        %v482 = vpack.c.b16 %v466, %v466
        %v483 = vpack.c.b16 %v467, %v467
        %v484 = vpack.c.b16 %v468, %v468
        %vm485 = vsmask.f32 7424
        %v487 = vshrl.u32 %v405, 16
        %v489 = vshll.u32 %v405, 16
        %v491 = vrot.slane %v489, 1
        %v492 = vor.u32 %v487, %v491
        %v494 = vshll.u32 %v469, 16
        %v496 = vrot.slane %v494, 1
        %v497 = vsel %vm485, %v492, %v496
        %v499 = vshrl.u32 %v406, 16
        %v501 = vshll.u32 %v406, 16
        %v503 = vrot.slane %v501, 1
        %v504 = vor.u32 %v499, %v503
        %v506 = vshll.u32 %v470, 16
        %v508 = vrot.slane %v506, 1
        %v509 = vsel %vm485, %v504, %v508
        %v511 = vshrl.u32 %v407, 16
        %v513 = vshll.u32 %v407, 16
        %v515 = vrot.slane %v513, 1
        %v516 = vor.u32 %v511, %v515
        %v518 = vshll.u32 %v471, 16
        %v520 = vrot.slane %v518, 1
        %v521 = vsel %vm485, %v516, %v520
        %v523 = vshrl.u32 %v408, 16
        %v525 = vshll.u32 %v408, 16
        %v527 = vrot.slane %v525, 1
        %v528 = vor.u32 %v523, %v527
        %v530 = vshll.u32 %v472, 16
        %v532 = vrot.slane %v530, 1
        %v533 = vsel %vm485, %v528, %v532
        %v535 = vshrl.u32 %v409, 16
        %v537 = vshll.u32 %v409, 16
        %v539 = vrot.slane %v537, 1
        %v540 = vor.u32 %v535, %v539
        %v542 = vshll.u32 %v473, 16
        %v544 = vrot.slane %v542, 1
        %v545 = vsel %vm485, %v540, %v544
        %v547 = vshrl.u32 %v410, 16
        %v549 = vshll.u32 %v410, 16
        %v551 = vrot.slane %v549, 1
        %v552 = vor.u32 %v547, %v551
        %v554 = vshll.u32 %v474, 16
        %v556 = vrot.slane %v554, 1
        %v557 = vsel %vm485, %v552, %v556
        %v559 = vshrl.u32 %v411, 16
        %v561 = vshll.u32 %v411, 16
        %v563 = vrot.slane %v561, 1
        %v564 = vor.u32 %v559, %v563
        %v566 = vshll.u32 %v475, 16
        %v568 = vrot.slane %v566, 1
        %v569 = vsel %vm485, %v564, %v568
        %v571 = vshrl.u32 %v412, 16
        %v573 = vshll.u32 %v412, 16
        %v575 = vrot.slane %v573, 1
        %v576 = vor.u32 %v571, %v575
        %v578 = vshll.u32 %v476, 16
        %v580 = vrot.slane %v578, 1
        %v581 = vsel %vm485, %v576, %v580
        %v583 = vshrl.u32 %v413, 16
        %v585 = vshll.u32 %v413, 16
        %v587 = vrot.slane %v585, 1
        %v588 = vor.u32 %v583, %v587
        %v590 = vshll.u32 %v477, 16
        %v592 = vrot.slane %v590, 1
        %v593 = vsel %vm485, %v588, %v592
        %v595 = vshrl.u32 %v414, 16
        %v597 = vshll.u32 %v414, 16
        %v599 = vrot.slane %v597, 1
        %v600 = vor.u32 %v595, %v599
        %v602 = vshll.u32 %v478, 16
        %v604 = vrot.slane %v602, 1
        %v605 = vsel %vm485, %v600, %v604
        %v607 = vshrl.u32 %v415, 16
        %v609 = vshll.u32 %v415, 16
        %v611 = vrot.slane %v609, 1
        %v612 = vor.u32 %v607, %v611
        %v614 = vshll.u32 %v479, 16
        %v616 = vrot.slane %v614, 1
        %v617 = vsel %vm485, %v612, %v616
        %v619 = vshrl.u32 %v416, 16
        %v621 = vshll.u32 %v416, 16
        %v623 = vrot.slane %v621, 1
        %v624 = vor.u32 %v619, %v623
        %v626 = vshll.u32 %v480, 16
        %v628 = vrot.slane %v626, 1
        %v629 = vsel %vm485, %v624, %v628
        %v631 = vshrl.u32 %v417, 16
        %v633 = vshll.u32 %v417, 16
        %v635 = vrot.slane %v633, 1
        %v636 = vor.u32 %v631, %v635
        %v638 = vshll.u32 %v481, 16
        %v640 = vrot.slane %v638, 1
        %v641 = vsel %vm485, %v636, %v640
        %v643 = vshrl.u32 %v418, 16
        %v645 = vshll.u32 %v418, 16
        %v647 = vrot.slane %v645, 1
        %v648 = vor.u32 %v643, %v647
        %v650 = vshll.u32 %v482, 16
        %v652 = vrot.slane %v650, 1
        %v653 = vsel %vm485, %v648, %v652
        %v655 = vshrl.u32 %v419, 16
        %v657 = vshll.u32 %v419, 16
        %v659 = vrot.slane %v657, 1
        %v660 = vor.u32 %v655, %v659
        %v662 = vshll.u32 %v483, 16
        %v664 = vrot.slane %v662, 1
        %v665 = vsel %vm485, %v660, %v664
        %v667 = vshrl.u32 %v420, 16
        %v669 = vshll.u32 %v420, 16
        %v671 = vrot.slane %v669, 1
        %v672 = vor.u32 %v667, %v671
        %v674 = vshll.u32 %v484, 16
        %v676 = vrot.slane %v674, 1
        %v677 = vsel %vm485, %v672, %v676
        %vm694 = vcmask 1046528
        %v695 = vrot.slane %v405, 1
        %v696 = vrot.slane %v469, 1
        %v697 = vsel %vm694, %v695, %v696
        %v698 = vrot.slane %v406, 1
        %v699 = vrot.slane %v470, 1
        %v700 = vsel %vm694, %v698, %v699
        %v701 = vrot.slane %v407, 1
        %v702 = vrot.slane %v471, 1
        %v703 = vsel %vm694, %v701, %v702
        %v704 = vrot.slane %v408, 1
        %v705 = vrot.slane %v472, 1
        %v706 = vsel %vm694, %v704, %v705
        %v707 = vrot.slane %v409, 1
        %v708 = vrot.slane %v473, 1
        %v709 = vsel %vm694, %v707, %v708
        %v710 = vrot.slane %v410, 1
        %v711 = vrot.slane %v474, 1
        %v712 = vsel %vm694, %v710, %v711
        %v713 = vrot.slane %v411, 1
        %v714 = vrot.slane %v475, 1
        %v715 = vsel %vm694, %v713, %v714
        %v716 = vrot.slane %v412, 1
        %v717 = vrot.slane %v476, 1
        %v718 = vsel %vm694, %v716, %v717
        %v719 = vrot.slane %v413, 1
        %v720 = vrot.slane %v477, 1
        %v721 = vsel %vm694, %v719, %v720
        %v722 = vrot.slane %v414, 1
        %v723 = vrot.slane %v478, 1
        %v724 = vsel %vm694, %v722, %v723
        %v725 = vrot.slane %v415, 1
        %v726 = vrot.slane %v479, 1
        %v727 = vsel %vm694, %v725, %v726
        %v728 = vrot.slane %v416, 1
        %v729 = vrot.slane %v480, 1
        %v730 = vsel %vm694, %v728, %v729
        %v731 = vrot.slane %v417, 1
        %v732 = vrot.slane %v481, 1
        %v733 = vsel %vm694, %v731, %v732
        %v734 = vrot.slane %v418, 1
        %v735 = vrot.slane %v482, 1
        %v736 = vsel %vm694, %v734, %v735
        %v737 = vrot.slane %v419, 1
        %v738 = vrot.slane %v483, 1
        %v739 = vsel %vm694, %v737, %v738
        %v740 = vrot.slane %v420, 1
        %v741 = vrot.slane %v484, 1
        %v742 = vsel %vm694, %v740, %v741
        %v791 = vunpack.c.l.b16 %v241
        %v792 = vunpack.c.l.b16 %v242
        %v793 = vunpack.c.l.b16 %v244
        %v794 = vunpack.c.l.b16 %v245
        %v795 = vunpack.c.l.b16 %v247
        %v796 = vunpack.c.l.b16 %v248
        %v797 = vunpack.c.l.b16 %v250
        %v798 = vunpack.c.l.b16 %v251
        %v799 = vunpack.c.l.b16 %v253
        %v800 = vunpack.c.l.b16 %v254
        %v801 = vunpack.c.l.b16 %v256
        %v802 = vunpack.c.l.b16 %v257
        %v803 = vunpack.c.l.b16 %v259
        %v804 = vunpack.c.l.b16 %v260
        %v805 = vunpack.c.l.b16 %v262
        %v806 = vunpack.c.l.b16 %v263
        %v807 = vunpack.c.l.b16 %v265
        %v808 = vunpack.c.l.b16 %v266
        %v809 = vunpack.c.l.b16 %v268
        %v810 = vunpack.c.l.b16 %v269
        %v811 = vunpack.c.l.b16 %v271
        %v812 = vunpack.c.l.b16 %v272
        %v813 = vunpack.c.l.b16 %v274
        %v814 = vunpack.c.l.b16 %v275
        %v815 = vunpack.c.l.b16 %v277
        %v816 = vunpack.c.l.b16 %v278
        %v817 = vunpack.c.l.b16 %v280
        %v818 = vunpack.c.l.b16 %v281
        %v819 = vunpack.c.l.b16 %v283
        %v820 = vunpack.c.l.b16 %v284
        %v821 = vunpack.c.l.b16 %v286
        %v822 = vunpack.c.l.b16 %v287
        %v823 = vpack.c.b16 %v792, %v791
        %v824 = vpack.c.b16 %v794, %v793
        %v825 = vpack.c.b16 %v796, %v795
        %v826 = vpack.c.b16 %v798, %v797
        %v827 = vpack.c.b16 %v800, %v799
        %v828 = vpack.c.b16 %v802, %v801
        %v829 = vpack.c.b16 %v804, %v803
        %v830 = vpack.c.b16 %v806, %v805
        %v831 = vpack.c.b16 %v808, %v807
        %v832 = vpack.c.b16 %v810, %v809
        %v833 = vpack.c.b16 %v812, %v811
        %v834 = vpack.c.b16 %v814, %v813
        %v835 = vpack.c.b16 %v816, %v815
        %v836 = vpack.c.b16 %v818, %v817
        %v837 = vpack.c.b16 %v820, %v819
        %v838 = vpack.c.b16 %v822, %v821
        %v871 = vunpack.c.l.b16 %v243
        %v872 = vunpack.c.l.b16 %v246
        %v873 = vunpack.c.l.b16 %v249
        %v874 = vunpack.c.l.b16 %v252
        %v875 = vunpack.c.l.b16 %v255
        %v876 = vunpack.c.l.b16 %v258
        %v877 = vunpack.c.l.b16 %v261
        %v878 = vunpack.c.l.b16 %v264
        %v879 = vunpack.c.l.b16 %v267
        %v880 = vunpack.c.l.b16 %v270
        %v881 = vunpack.c.l.b16 %v273
        %v882 = vunpack.c.l.b16 %v276
        %v883 = vunpack.c.l.b16 %v279
        %v884 = vunpack.c.l.b16 %v282
        %v885 = vunpack.c.l.b16 %v285
        %v886 = vunpack.c.l.b16 %v288
        %v887 = vpack.c.b16 %v871, %v871
        %v888 = vpack.c.b16 %v872, %v872
        %v889 = vpack.c.b16 %v873, %v873
        %v890 = vpack.c.b16 %v874, %v874
        %v891 = vpack.c.b16 %v875, %v875
        %v892 = vpack.c.b16 %v876, %v876
        %v893 = vpack.c.b16 %v877, %v877
        %v894 = vpack.c.b16 %v878, %v878
        %v895 = vpack.c.b16 %v879, %v879
        %v896 = vpack.c.b16 %v880, %v880
        %v897 = vpack.c.b16 %v881, %v881
        %v898 = vpack.c.b16 %v882, %v882
        %v899 = vpack.c.b16 %v883, %v883
        %v900 = vpack.c.b16 %v884, %v884
        %v901 = vpack.c.b16 %v885, %v885
        %v902 = vpack.c.b16 %v886, %v886
        %v904 = vshrl.u32 %v823, 16
        %v906 = vshll.u32 %v823, 16
        %v908 = vrot.slane %v906, 1
        %v909 = vor.u32 %v904, %v908
        %v911 = vshll.u32 %v887, 16
        %v913 = vrot.slane %v911, 1
        %v914 = vsel %vm485, %v909, %v913
        %v916 = vshrl.u32 %v824, 16
        %v918 = vshll.u32 %v824, 16
        %v920 = vrot.slane %v918, 1
        %v921 = vor.u32 %v916, %v920
        %v923 = vshll.u32 %v888, 16
        %v925 = vrot.slane %v923, 1
        %v926 = vsel %vm485, %v921, %v925
        %v928 = vshrl.u32 %v825, 16
        %v930 = vshll.u32 %v825, 16
        %v932 = vrot.slane %v930, 1
        %v933 = vor.u32 %v928, %v932
        %v935 = vshll.u32 %v889, 16
        %v937 = vrot.slane %v935, 1
        %v938 = vsel %vm485, %v933, %v937
        %v940 = vshrl.u32 %v826, 16
        %v942 = vshll.u32 %v826, 16
        %v944 = vrot.slane %v942, 1
        %v945 = vor.u32 %v940, %v944
        %v947 = vshll.u32 %v890, 16
        %v949 = vrot.slane %v947, 1
        %v950 = vsel %vm485, %v945, %v949
        %v952 = vshrl.u32 %v827, 16
        %v954 = vshll.u32 %v827, 16
        %v956 = vrot.slane %v954, 1
        %v957 = vor.u32 %v952, %v956
        %v959 = vshll.u32 %v891, 16
        %v961 = vrot.slane %v959, 1
        %v962 = vsel %vm485, %v957, %v961
        %v964 = vshrl.u32 %v828, 16
        %v966 = vshll.u32 %v828, 16
        %v968 = vrot.slane %v966, 1
        %v969 = vor.u32 %v964, %v968
        %v971 = vshll.u32 %v892, 16
        %v973 = vrot.slane %v971, 1
        %v974 = vsel %vm485, %v969, %v973
        %v976 = vshrl.u32 %v829, 16
        %v978 = vshll.u32 %v829, 16
        %v980 = vrot.slane %v978, 1
        %v981 = vor.u32 %v976, %v980
        %v983 = vshll.u32 %v893, 16
        %v985 = vrot.slane %v983, 1
        %v986 = vsel %vm485, %v981, %v985
        %v988 = vshrl.u32 %v830, 16
        %v990 = vshll.u32 %v830, 16
        %v992 = vrot.slane %v990, 1
        %v993 = vor.u32 %v988, %v992
        %v995 = vshll.u32 %v894, 16
        %v997 = vrot.slane %v995, 1
        %v998 = vsel %vm485, %v993, %v997
        %v1000 = vshrl.u32 %v831, 16
        %v1002 = vshll.u32 %v831, 16
        %v1004 = vrot.slane %v1002, 1
        %v1005 = vor.u32 %v1000, %v1004
        %v1007 = vshll.u32 %v895, 16
        %v1009 = vrot.slane %v1007, 1
        %v1010 = vsel %vm485, %v1005, %v1009
        %v1012 = vshrl.u32 %v832, 16
        %v1014 = vshll.u32 %v832, 16
        %v1016 = vrot.slane %v1014, 1
        %v1017 = vor.u32 %v1012, %v1016
        %v1019 = vshll.u32 %v896, 16
        %v1021 = vrot.slane %v1019, 1
        %v1022 = vsel %vm485, %v1017, %v1021
        %v1024 = vshrl.u32 %v833, 16
        %v1026 = vshll.u32 %v833, 16
        %v1028 = vrot.slane %v1026, 1
        %v1029 = vor.u32 %v1024, %v1028
        %v1031 = vshll.u32 %v897, 16
        %v1033 = vrot.slane %v1031, 1
        %v1034 = vsel %vm485, %v1029, %v1033
        %v1036 = vshrl.u32 %v834, 16
        %v1038 = vshll.u32 %v834, 16
        %v1040 = vrot.slane %v1038, 1
        %v1041 = vor.u32 %v1036, %v1040
        %v1043 = vshll.u32 %v898, 16
        %v1045 = vrot.slane %v1043, 1
        %v1046 = vsel %vm485, %v1041, %v1045
        %v1048 = vshrl.u32 %v835, 16
        %v1050 = vshll.u32 %v835, 16
        %v1052 = vrot.slane %v1050, 1
        %v1053 = vor.u32 %v1048, %v1052
        %v1055 = vshll.u32 %v899, 16
        %v1057 = vrot.slane %v1055, 1
        %v1058 = vsel %vm485, %v1053, %v1057
        %v1060 = vshrl.u32 %v836, 16
        %v1062 = vshll.u32 %v836, 16
        %v1064 = vrot.slane %v1062, 1
        %v1065 = vor.u32 %v1060, %v1064
        %v1067 = vshll.u32 %v900, 16
        %v1069 = vrot.slane %v1067, 1
        %v1070 = vsel %vm485, %v1065, %v1069
        %v1072 = vshrl.u32 %v837, 16
        %v1074 = vshll.u32 %v837, 16
        %v1076 = vrot.slane %v1074, 1
        %v1077 = vor.u32 %v1072, %v1076
        %v1079 = vshll.u32 %v901, 16
        %v1081 = vrot.slane %v1079, 1
        %v1082 = vsel %vm485, %v1077, %v1081
        %v1084 = vshrl.u32 %v838, 16
        %v1086 = vshll.u32 %v838, 16
        %v1088 = vrot.slane %v1086, 1
        %v1089 = vor.u32 %v1084, %v1088
        %v1091 = vshll.u32 %v902, 16
        %v1093 = vrot.slane %v1091, 1
        %v1094 = vsel %vm485, %v1089, %v1093
        %v1111 = vrot.slane %v823, 1
        %v1112 = vrot.slane %v887, 1
        %v1113 = vsel %vm694, %v1111, %v1112
        %v1114 = vrot.slane %v824, 1
        %v1115 = vrot.slane %v888, 1
        %v1116 = vsel %vm694, %v1114, %v1115
        %v1117 = vrot.slane %v825, 1
        %v1118 = vrot.slane %v889, 1
        %v1119 = vsel %vm694, %v1117, %v1118
        %v1120 = vrot.slane %v826, 1
        %v1121 = vrot.slane %v890, 1
        %v1122 = vsel %vm694, %v1120, %v1121
        %v1123 = vrot.slane %v827, 1
        %v1124 = vrot.slane %v891, 1
        %v1125 = vsel %vm694, %v1123, %v1124
        %v1126 = vrot.slane %v828, 1
        %v1127 = vrot.slane %v892, 1
        %v1128 = vsel %vm694, %v1126, %v1127
        %v1129 = vrot.slane %v829, 1
        %v1130 = vrot.slane %v893, 1
        %v1131 = vsel %vm694, %v1129, %v1130
        %v1132 = vrot.slane %v830, 1
        %v1133 = vrot.slane %v894, 1
        %v1134 = vsel %vm694, %v1132, %v1133
        %v1135 = vrot.slane %v831, 1
        %v1136 = vrot.slane %v895, 1
        %v1137 = vsel %vm694, %v1135, %v1136
        %v1138 = vrot.slane %v832, 1
        %v1139 = vrot.slane %v896, 1
        %v1140 = vsel %vm694, %v1138, %v1139
        %v1141 = vrot.slane %v833, 1
        %v1142 = vrot.slane %v897, 1
        %v1143 = vsel %vm694, %v1141, %v1142
        %v1144 = vrot.slane %v834, 1
        %v1145 = vrot.slane %v898, 1
        %v1146 = vsel %vm694, %v1144, %v1145
        %v1147 = vrot.slane %v835, 1
        %v1148 = vrot.slane %v899, 1
        %v1149 = vsel %vm694, %v1147, %v1148
        %v1150 = vrot.slane %v836, 1
        %v1151 = vrot.slane %v900, 1
        %v1152 = vsel %vm694, %v1150, %v1151
        %v1153 = vrot.slane %v837, 1
        %v1154 = vrot.slane %v901, 1
        %v1155 = vsel %vm694, %v1153, %v1154
        %v1156 = vrot.slane %v838, 1
        %v1157 = vrot.slane %v902, 1
        %v1158 = vsel %vm694, %v1156, %v1157
        %v1207 = vunpack.c.l.b16 %v293
        %v1208 = vunpack.c.l.b16 %v294
        %v1209 = vunpack.c.l.b16 %v296
        %v1210 = vunpack.c.l.b16 %v297
        %v1211 = vunpack.c.l.b16 %v299
        %v1212 = vunpack.c.l.b16 %v300
        %v1213 = vunpack.c.l.b16 %v302
        %v1214 = vunpack.c.l.b16 %v303
        %v1215 = vunpack.c.l.b16 %v305
        %v1216 = vunpack.c.l.b16 %v306
        %v1217 = vunpack.c.l.b16 %v308
        %v1218 = vunpack.c.l.b16 %v309
        %v1219 = vunpack.c.l.b16 %v311
        %v1220 = vunpack.c.l.b16 %v312
        %v1221 = vunpack.c.l.b16 %v314
        %v1222 = vunpack.c.l.b16 %v315
        %v1223 = vunpack.c.l.b16 %v317
        %v1224 = vunpack.c.l.b16 %v318
        %v1225 = vunpack.c.l.b16 %v320
        %v1226 = vunpack.c.l.b16 %v321
        %v1227 = vunpack.c.l.b16 %v323
        %v1228 = vunpack.c.l.b16 %v324
        %v1229 = vunpack.c.l.b16 %v326
        %v1230 = vunpack.c.l.b16 %v327
        %v1231 = vunpack.c.l.b16 %v329
        %v1232 = vunpack.c.l.b16 %v330
        %v1233 = vunpack.c.l.b16 %v332
        %v1234 = vunpack.c.l.b16 %v333
        %v1235 = vunpack.c.l.b16 %v335
        %v1236 = vunpack.c.l.b16 %v336
        %v1237 = vunpack.c.l.b16 %v338
        %v1238 = vunpack.c.l.b16 %v339
        %v1239 = vpack.c.b16 %v1208, %v1207
        %v1240 = vpack.c.b16 %v1210, %v1209
        %v1241 = vpack.c.b16 %v1212, %v1211
        %v1242 = vpack.c.b16 %v1214, %v1213
        %v1243 = vpack.c.b16 %v1216, %v1215
        %v1244 = vpack.c.b16 %v1218, %v1217
        %v1245 = vpack.c.b16 %v1220, %v1219
        %v1246 = vpack.c.b16 %v1222, %v1221
        %v1247 = vpack.c.b16 %v1224, %v1223
        %v1248 = vpack.c.b16 %v1226, %v1225
        %v1249 = vpack.c.b16 %v1228, %v1227
        %v1250 = vpack.c.b16 %v1230, %v1229
        %v1251 = vpack.c.b16 %v1232, %v1231
        %v1252 = vpack.c.b16 %v1234, %v1233
        %v1253 = vpack.c.b16 %v1236, %v1235
        %v1254 = vpack.c.b16 %v1238, %v1237
        %v1287 = vunpack.c.l.b16 %v295
        %v1288 = vunpack.c.l.b16 %v298
        %v1289 = vunpack.c.l.b16 %v301
        %v1290 = vunpack.c.l.b16 %v304
        %v1291 = vunpack.c.l.b16 %v307
        %v1292 = vunpack.c.l.b16 %v310
        %v1293 = vunpack.c.l.b16 %v313
        %v1294 = vunpack.c.l.b16 %v316
        %v1295 = vunpack.c.l.b16 %v319
        %v1296 = vunpack.c.l.b16 %v322
        %v1297 = vunpack.c.l.b16 %v325
        %v1298 = vunpack.c.l.b16 %v328
        %v1299 = vunpack.c.l.b16 %v331
        %v1300 = vunpack.c.l.b16 %v334
        %v1301 = vunpack.c.l.b16 %v337
        %v1302 = vunpack.c.l.b16 %v340
        %v1303 = vpack.c.b16 %v1287, %v1287
        %v1304 = vpack.c.b16 %v1288, %v1288
        %v1305 = vpack.c.b16 %v1289, %v1289
        %v1306 = vpack.c.b16 %v1290, %v1290
        %v1307 = vpack.c.b16 %v1291, %v1291
        %v1308 = vpack.c.b16 %v1292, %v1292
        %v1309 = vpack.c.b16 %v1293, %v1293
        %v1310 = vpack.c.b16 %v1294, %v1294
        %v1311 = vpack.c.b16 %v1295, %v1295
        %v1312 = vpack.c.b16 %v1296, %v1296
        %v1313 = vpack.c.b16 %v1297, %v1297
        %v1314 = vpack.c.b16 %v1298, %v1298
        %v1315 = vpack.c.b16 %v1299, %v1299
        %v1316 = vpack.c.b16 %v1300, %v1300
        %v1317 = vpack.c.b16 %v1301, %v1301
        %v1318 = vpack.c.b16 %v1302, %v1302
        %v1320 = vshrl.u32 %v1239, 16
        %v1322 = vshll.u32 %v1239, 16
        %v1324 = vrot.slane %v1322, 1
        %v1325 = vor.u32 %v1320, %v1324
        %v1327 = vshll.u32 %v1303, 16
        %v1329 = vrot.slane %v1327, 1
        %v1330 = vsel %vm485, %v1325, %v1329
        %v1332 = vshrl.u32 %v1240, 16
        %v1334 = vshll.u32 %v1240, 16
        %v1336 = vrot.slane %v1334, 1
        %v1337 = vor.u32 %v1332, %v1336
        %v1339 = vshll.u32 %v1304, 16
        %v1341 = vrot.slane %v1339, 1
        %v1342 = vsel %vm485, %v1337, %v1341
        %v1344 = vshrl.u32 %v1241, 16
        %v1346 = vshll.u32 %v1241, 16
        %v1348 = vrot.slane %v1346, 1
        %v1349 = vor.u32 %v1344, %v1348
        %v1351 = vshll.u32 %v1305, 16
        %v1353 = vrot.slane %v1351, 1
        %v1354 = vsel %vm485, %v1349, %v1353
        %v1356 = vshrl.u32 %v1242, 16
        %v1358 = vshll.u32 %v1242, 16
        %v1360 = vrot.slane %v1358, 1
        %v1361 = vor.u32 %v1356, %v1360
        %v1363 = vshll.u32 %v1306, 16
        %v1365 = vrot.slane %v1363, 1
        %v1366 = vsel %vm485, %v1361, %v1365
        %v1368 = vshrl.u32 %v1243, 16
        %v1370 = vshll.u32 %v1243, 16
        %v1372 = vrot.slane %v1370, 1
        %v1373 = vor.u32 %v1368, %v1372
        %v1375 = vshll.u32 %v1307, 16
        %v1377 = vrot.slane %v1375, 1
        %v1378 = vsel %vm485, %v1373, %v1377
        %v1380 = vshrl.u32 %v1244, 16
        %v1382 = vshll.u32 %v1244, 16
        %v1384 = vrot.slane %v1382, 1
        %v1385 = vor.u32 %v1380, %v1384
        %v1387 = vshll.u32 %v1308, 16
        %v1389 = vrot.slane %v1387, 1
        %v1390 = vsel %vm485, %v1385, %v1389
        %v1392 = vshrl.u32 %v1245, 16
        %v1394 = vshll.u32 %v1245, 16
        %v1396 = vrot.slane %v1394, 1
        %v1397 = vor.u32 %v1392, %v1396
        %v1399 = vshll.u32 %v1309, 16
        %v1401 = vrot.slane %v1399, 1
        %v1402 = vsel %vm485, %v1397, %v1401
        %v1404 = vshrl.u32 %v1246, 16
        %v1406 = vshll.u32 %v1246, 16
        %v1408 = vrot.slane %v1406, 1
        %v1409 = vor.u32 %v1404, %v1408
        %v1411 = vshll.u32 %v1310, 16
        %v1413 = vrot.slane %v1411, 1
        %v1414 = vsel %vm485, %v1409, %v1413
        %v1416 = vshrl.u32 %v1247, 16
        %v1418 = vshll.u32 %v1247, 16
        %v1420 = vrot.slane %v1418, 1
        %v1421 = vor.u32 %v1416, %v1420
        %v1423 = vshll.u32 %v1311, 16
        %v1425 = vrot.slane %v1423, 1
        %v1426 = vsel %vm485, %v1421, %v1425
        %v1428 = vshrl.u32 %v1248, 16
        %v1430 = vshll.u32 %v1248, 16
        %v1432 = vrot.slane %v1430, 1
        %v1433 = vor.u32 %v1428, %v1432
        %v1435 = vshll.u32 %v1312, 16
        %v1437 = vrot.slane %v1435, 1
        %v1438 = vsel %vm485, %v1433, %v1437
        %v1440 = vshrl.u32 %v1249, 16
        %v1442 = vshll.u32 %v1249, 16
        %v1444 = vrot.slane %v1442, 1
        %v1445 = vor.u32 %v1440, %v1444
        %v1447 = vshll.u32 %v1313, 16
        %v1449 = vrot.slane %v1447, 1
        %v1450 = vsel %vm485, %v1445, %v1449
        %v1452 = vshrl.u32 %v1250, 16
        %v1454 = vshll.u32 %v1250, 16
        %v1456 = vrot.slane %v1454, 1
        %v1457 = vor.u32 %v1452, %v1456
        %v1459 = vshll.u32 %v1314, 16
        %v1461 = vrot.slane %v1459, 1
        %v1462 = vsel %vm485, %v1457, %v1461
        %v1464 = vshrl.u32 %v1251, 16
        %v1466 = vshll.u32 %v1251, 16
        %v1468 = vrot.slane %v1466, 1
        %v1469 = vor.u32 %v1464, %v1468
        %v1471 = vshll.u32 %v1315, 16
        %v1473 = vrot.slane %v1471, 1
        %v1474 = vsel %vm485, %v1469, %v1473
        %v1476 = vshrl.u32 %v1252, 16
        %v1478 = vshll.u32 %v1252, 16
        %v1480 = vrot.slane %v1478, 1
        %v1481 = vor.u32 %v1476, %v1480
        %v1483 = vshll.u32 %v1316, 16
        %v1485 = vrot.slane %v1483, 1
        %v1486 = vsel %vm485, %v1481, %v1485
        %v1488 = vshrl.u32 %v1253, 16
        %v1490 = vshll.u32 %v1253, 16
        %v1492 = vrot.slane %v1490, 1
        %v1493 = vor.u32 %v1488, %v1492
        %v1495 = vshll.u32 %v1317, 16
        %v1497 = vrot.slane %v1495, 1
        %v1498 = vsel %vm485, %v1493, %v1497
        %v1500 = vshrl.u32 %v1254, 16
        %v1502 = vshll.u32 %v1254, 16
        %v1504 = vrot.slane %v1502, 1
        %v1505 = vor.u32 %v1500, %v1504
        %v1507 = vshll.u32 %v1318, 16
        %v1509 = vrot.slane %v1507, 1
        %v1510 = vsel %vm485, %v1505, %v1509
        %v1527 = vrot.slane %v1239, 1
        %v1528 = vrot.slane %v1303, 1
        %v1529 = vsel %vm694, %v1527, %v1528
        %v1530 = vrot.slane %v1240, 1
        %v1531 = vrot.slane %v1304, 1
        %v1532 = vsel %vm694, %v1530, %v1531
        %v1533 = vrot.slane %v1241, 1
        %v1534 = vrot.slane %v1305, 1
        %v1535 = vsel %vm694, %v1533, %v1534
        %v1536 = vrot.slane %v1242, 1
        %v1537 = vrot.slane %v1306, 1
        %v1538 = vsel %vm694, %v1536, %v1537
        %v1539 = vrot.slane %v1243, 1
        %v1540 = vrot.slane %v1307, 1
        %v1541 = vsel %vm694, %v1539, %v1540
        %v1542 = vrot.slane %v1244, 1
        %v1543 = vrot.slane %v1308, 1
        %v1544 = vsel %vm694, %v1542, %v1543
        %v1545 = vrot.slane %v1245, 1
        %v1546 = vrot.slane %v1309, 1
        %v1547 = vsel %vm694, %v1545, %v1546
        %v1548 = vrot.slane %v1246, 1
        %v1549 = vrot.slane %v1310, 1
        %v1550 = vsel %vm694, %v1548, %v1549
        %v1551 = vrot.slane %v1247, 1
        %v1552 = vrot.slane %v1311, 1
        %v1553 = vsel %vm694, %v1551, %v1552
        %v1554 = vrot.slane %v1248, 1
        %v1555 = vrot.slane %v1312, 1
        %v1556 = vsel %vm694, %v1554, %v1555
        %v1557 = vrot.slane %v1249, 1
        %v1558 = vrot.slane %v1313, 1
        %v1559 = vsel %vm694, %v1557, %v1558
        %v1560 = vrot.slane %v1250, 1
        %v1561 = vrot.slane %v1314, 1
        %v1562 = vsel %vm694, %v1560, %v1561
        %v1563 = vrot.slane %v1251, 1
        %v1564 = vrot.slane %v1315, 1
        %v1565 = vsel %vm694, %v1563, %v1564
        %v1566 = vrot.slane %v1252, 1
        %v1567 = vrot.slane %v1316, 1
        %v1568 = vsel %vm694, %v1566, %v1567
        %v1569 = vrot.slane %v1253, 1
        %v1570 = vrot.slane %v1317, 1
        %v1571 = vsel %vm694, %v1569, %v1570
        %v1572 = vrot.slane %v1254, 1
        %v1573 = vrot.slane %v1318, 1
        %v1574 = vsel %vm694, %v1572, %v1573
        %v1591 = vld [vmem:[%s1] sm:$0xf]
        %v1592 = vld [vmem:[%s1 + $0x4] sm:$0xf]
        %v1593 = vld [vmem:[%s1 + $0x8] sm:$0xf]
        %v1594 = vld [vmem:[%s1 + $0xc] sm:$0xf]
        %v1595 = vld [vmem:[%s1 + $0x10] sm:$0xf]
        %v1596 = vld [vmem:[%s1 + $0x14] sm:$0xf]
        %v1597 = vld [vmem:[%s1 + $0x18] sm:$0xf]
        %v1598 = vld [vmem:[%s1 + $0x1c] sm:$0xf]
        %v1599 = vld [vmem:[%s1 + $0x20] sm:$0xf]
        %v1600 = vld [vmem:[%s1 + $0x24] sm:$0xf]
        %v1601 = vld [vmem:[%s1 + $0x28] sm:$0xf]
        %v1602 = vld [vmem:[%s1 + $0x2c] sm:$0xf]
        %v1603 = vld [vmem:[%s1 + $0x30] sm:$0xf]
        %v1604 = vld [vmem:[%s1 + $0x34] sm:$0xf]
        %v1605 = vld [vmem:[%s1 + $0x38] sm:$0xf]
        %v1606 = vld [vmem:[%s1 + $0x3c] sm:$0xf]
        %v1607 = vld [vmem:[%s1 + $0x40] sm:$0xf]
        %v1608 = vld [vmem:[%s1 + $0x44] sm:$0xf]
        %v1609 = vld [vmem:[%s1 + $0x48] sm:$0xf]
        %v1610 = vld [vmem:[%s1 + $0x4c] sm:$0xf]
        %v1611 = vld [vmem:[%s1 + $0x50] sm:$0xf]
        %v1612 = vld [vmem:[%s1 + $0x54] sm:$0xf]
        %v1613 = vld [vmem:[%s1 + $0x58] sm:$0xf]
        %v1614 = vld [vmem:[%s1 + $0x5c] sm:$0xf]
        %v1615 = vld [vmem:[%s1 + $0x60] sm:$0xf]
        %v1616 = vld [vmem:[%s1 + $0x64] sm:$0xf]
        %v1617 = vld [vmem:[%s1 + $0x68] sm:$0xf]
        %v1618 = vld [vmem:[%s1 + $0x6c] sm:$0xf]
        %v1619 = vld [vmem:[%s1 + $0x70] sm:$0xf]
        %v1620 = vld [vmem:[%s1 + $0x74] sm:$0xf]
        %v1621 = vld [vmem:[%s1 + $0x78] sm:$0xf]
        %v1622 = vld [vmem:[%s1 + $0x7c] sm:$0xf]
        %v1623 = vld [vmem:[%s1 + $0x80] sm:$0xf]
        %v1624 = vld [vmem:[%s1 + $0x84] sm:$0xf]
        %v1625 = vld [vmem:[%s1 + $0x88] sm:$0xf]
        %v1626 = vld [vmem:[%s1 + $0x8c] sm:$0xf]
        %v1627 = vld [vmem:[%s1 + $0x90] sm:$0xf]
        %v1628 = vld [vmem:[%s1 + $0x94] sm:$0xf]
        %v1629 = vld [vmem:[%s1 + $0x98] sm:$0xf]
        %v1630 = vld [vmem:[%s1 + $0x9c] sm:$0xf]
        %v1631 = vld [vmem:[%s1 + $0xa0] sm:$0xf]
        %v1632 = vld [vmem:[%s1 + $0xa4] sm:$0xf]
        %v1633 = vld [vmem:[%s1 + $0xa8] sm:$0xf]
        %v1634 = vld [vmem:[%s1 + $0xac] sm:$0xf]
        %v1635 = vld [vmem:[%s1 + $0xb0] sm:$0xf]
        %v1636 = vld [vmem:[%s1 + $0xb4] sm:$0xf]
        %v1637 = vld [vmem:[%s1 + $0xb8] sm:$0xf]
        %v1638 = vld [vmem:[%s1 + $0xbc] sm:$0xf]
        %v1639 = vld [vmem:[%s1 + $0xc0] sm:$0xf]
        %v1640 = vld [vmem:[%s1 + $0xc4] sm:$0xf]
        %v1641 = vld [vmem:[%s1 + $0xc8] sm:$0xf]
        %v1642 = vld [vmem:[%s1 + $0xcc] sm:$0xf]
        %v1643 = vld [vmem:[%s1 + $0xd0] sm:$0xf]
        %v1644 = vld [vmem:[%s1 + $0xd4] sm:$0xf]
        %v1645 = vld [vmem:[%s1 + $0xd8] sm:$0xf]
        %v1646 = vld [vmem:[%s1 + $0xdc] sm:$0xf]
        %v1647 = vld [vmem:[%s1 + $0xe0] sm:$0xf]
        %v1648 = vld [vmem:[%s1 + $0xe4] sm:$0xf]
        %v1649 = vld [vmem:[%s1 + $0xe8] sm:$0xf]
        %v1650 = vld [vmem:[%s1 + $0xec] sm:$0xf]
        %v1651 = vld [vmem:[%s1 + $0xf0] sm:$0xf]
        %v1652 = vld [vmem:[%s1 + $0xf4] sm:$0xf]
        %v1653 = vld [vmem:[%s1 + $0xf8] sm:$0xf]
        %v1654 = vld [vmem:[%s1 + $0xfc] sm:$0xf]
        %v1655 = vld [vmem:[%s1 + $0x100] sm:$0xf]
        %v1656 = vld [vmem:[%s1 + $0x104] sm:$0xf]
        %v1657 = vld [vmem:[%s1 + $0x108] sm:$0xf]
        %v1658 = vld [vmem:[%s1 + $0x10c] sm:$0xf]
        %v1659 = vld [vmem:[%s1 + $0x110] sm:$0xf]
        %v1660 = vld [vmem:[%s1 + $0x114] sm:$0xf]
        %v1661 = vld [vmem:[%s1 + $0x118] sm:$0xf]
        %v1662 = vld [vmem:[%s1 + $0x11c] sm:$0xf]
        %v1663 = vld [vmem:[%s1 + $0x120] sm:$0xf]
        %v1664 = vld [vmem:[%s1 + $0x124] sm:$0xf]
        %v1665 = vld [vmem:[%s1 + $0x128] sm:$0xf]
        %v1666 = vld [vmem:[%s1 + $0x12c] sm:$0xf]
        %v1667 = vld [vmem:[%s1 + $0x130] sm:$0xf]
        %v1668 = vld [vmem:[%s1 + $0x134] sm:$0xf]
        %v1669 = vld [vmem:[%s1 + $0x138] sm:$0xf]
        %v1670 = vld [vmem:[%s1 + $0x13c] sm:$0xf]
        %v1671 = vld [vmem:[%s1 + $0x140] sm:$0xf]
        %v1672 = vld [vmem:[%s1 + $0x144] sm:$0xf]
        %v1673 = vld [vmem:[%s1 + $0x148] sm:$0xf]
        %v1674 = vld [vmem:[%s1 + $0x14c] sm:$0xf]
        %v1675 = vld [vmem:[%s1 + $0x150] sm:$0xf]
        %v1676 = vld [vmem:[%s1 + $0x154] sm:$0xf]
        %v1677 = vld [vmem:[%s1 + $0x158] sm:$0xf]
        %v1678 = vld [vmem:[%s1 + $0x15c] sm:$0xf]
        %v1679 = vld [vmem:[%s1 + $0x160] sm:$0xf]
        %v1680 = vld [vmem:[%s1 + $0x164] sm:$0xf]
        %v1681 = vld [vmem:[%s1 + $0x168] sm:$0xf]
        %v1682 = vld [vmem:[%s1 + $0x16c] sm:$0xf]
        %v1683 = vld [vmem:[%s1 + $0x170] sm:$0xf]
        %v1684 = vld [vmem:[%s1 + $0x174] sm:$0xf]
        %v1685 = vld [vmem:[%s1 + $0x178] sm:$0xf]
        %v1686 = vld [vmem:[%s1 + $0x17c] sm:$0xf]
        %v1687 = vld [vmem:[%s1 + $0x180] sm:$0xf]
        %v1688 = vld [vmem:[%s1 + $0x184] sm:$0xf]
        %v1689 = vld [vmem:[%s1 + $0x188] sm:$0xf]
        %v1690 = vld [vmem:[%s1 + $0x18c] sm:$0xf]
        %v1691 = vld [vmem:[%s1 + $0x190] sm:$0xf]
        %v1692 = vld [vmem:[%s1 + $0x194] sm:$0xf]
        %v1693 = vld [vmem:[%s1 + $0x198] sm:$0xf]
        %v1694 = vld [vmem:[%s1 + $0x19c] sm:$0xf]
        %v1695 = vld [vmem:[%s1 + $0x1a0] sm:$0xf]
        %v1696 = vld [vmem:[%s1 + $0x1a4] sm:$0xf]
        %v1697 = vld [vmem:[%s1 + $0x1a8] sm:$0xf]
        %v1698 = vld [vmem:[%s1 + $0x1ac] sm:$0xf]
        %v1699 = vld [vmem:[%s1 + $0x1b0] sm:$0xf]
        %v1700 = vld [vmem:[%s1 + $0x1b4] sm:$0xf]
        %v1701 = vld [vmem:[%s1 + $0x1b8] sm:$0xf]
        %v1702 = vld [vmem:[%s1 + $0x1bc] sm:$0xf]
        %v1703 = vld [vmem:[%s1 + $0x1c0] sm:$0xf]
        %v1704 = vld [vmem:[%s1 + $0x1c4] sm:$0xf]
        %v1705 = vld [vmem:[%s1 + $0x1c8] sm:$0xf]
        %v1706 = vld [vmem:[%s1 + $0x1cc] sm:$0xf]
        %v1707 = vld [vmem:[%s1 + $0x1d0] sm:$0xf]
        %v1708 = vld [vmem:[%s1 + $0x1d4] sm:$0xf]
        %v1709 = vld [vmem:[%s1 + $0x1d8] sm:$0xf]
        %v1710 = vld [vmem:[%s1 + $0x1dc] sm:$0xf]
        %v1711 = vld [vmem:[%s1 + $0x1e0] sm:$0xf]
        %v1712 = vld [vmem:[%s1 + $0x1e4] sm:$0xf]
        %v1713 = vld [vmem:[%s1 + $0x1e8] sm:$0xf]
        %v1714 = vld [vmem:[%s1 + $0x1ec] sm:$0xf]
        %v1715 = vld [vmem:[%s1 + $0x1f0] sm:$0xf]
        %v1716 = vld [vmem:[%s1 + $0x1f4] sm:$0xf]
        %v1717 = vld [vmem:[%s1 + $0x1f8] sm:$0xf]
        %v1718 = vld [vmem:[%s1 + $0x1fc] sm:$0xf]
        %v1719 = vld [vmem:[%s1 + $0x200] sm:$0xf]
        %v1720 = vld [vmem:[%s1 + $0x204] sm:$0xf]
        %v1721 = vld [vmem:[%s1 + $0x208] sm:$0xf]
        %v1722 = vld [vmem:[%s1 + $0x20c] sm:$0xf]
        %v1723 = vld [vmem:[%s1 + $0x210] sm:$0xf]
        %v1724 = vld [vmem:[%s1 + $0x214] sm:$0xf]
        %v1725 = vld [vmem:[%s1 + $0x218] sm:$0xf]
        %v1726 = vld [vmem:[%s1 + $0x21c] sm:$0xf]
        %v1727 = vld [vmem:[%s1 + $0x220] sm:$0xf]
        %v1728 = vld [vmem:[%s1 + $0x224] sm:$0xf]
        %v1729 = vld [vmem:[%s1 + $0x228] sm:$0xf]
        %v1730 = vld [vmem:[%s1 + $0x22c] sm:$0xf]
        %v1731 = vld [vmem:[%s1 + $0x230] sm:$0xf]
        %v1732 = vld [vmem:[%s1 + $0x234] sm:$0xf]
        %v1733 = vld [vmem:[%s1 + $0x238] sm:$0xf]
        %v1734 = vld [vmem:[%s1 + $0x23c] sm:$0xf]
        %v1735 = vld [vmem:[%s2] sm:$0x1]
        %v1737 = vlaneseq
        %v1738 = vshrl.u32 %v1737, 7
        %v1739 = vsub.s32 0, %v1738
        %v1740 = vrot.slane %v1735, %v1739
        %v1886 = vunpack.c.l.b16 %v1591
        %v1887 = vunpack.c.l.b16 %v1592
        %v1888 = vunpack.c.l.b16 %v1593
        %v1889 = vunpack.c.l.b16 %v1594
        %v1890 = vunpack.c.l.b16 %v1595
        %v1891 = vunpack.c.l.b16 %v1596
        %v1892 = vunpack.c.l.b16 %v1597
        %v1893 = vunpack.c.l.b16 %v1598
        %v1894 = vunpack.c.l.b16 %v1599
        %v1895 = vunpack.c.l.b16 %v1600
        %v1896 = vunpack.c.l.b16 %v1601
        %v1897 = vunpack.c.l.b16 %v1602
        %v1898 = vunpack.c.l.b16 %v1603
        %v1899 = vunpack.c.l.b16 %v1604
        %v1900 = vunpack.c.l.b16 %v1605
        %v1901 = vunpack.c.l.b16 %v1606
        %v1902 = vunpack.c.l.b16 %v1607
        %v1903 = vunpack.c.l.b16 %v1608
        %v1904 = vunpack.c.l.b16 %v1609
        %v1905 = vunpack.c.l.b16 %v1610
        %v1906 = vunpack.c.l.b16 %v1611
        %v1907 = vunpack.c.l.b16 %v1612
        %v1908 = vunpack.c.l.b16 %v1613
        %v1909 = vunpack.c.l.b16 %v1614
        %v1910 = vunpack.c.l.b16 %v1615
        %v1911 = vunpack.c.l.b16 %v1616
        %v1912 = vunpack.c.l.b16 %v1617
        %v1913 = vunpack.c.l.b16 %v1618
        %v1914 = vunpack.c.l.b16 %v1619
        %v1915 = vunpack.c.l.b16 %v1620
        %v1916 = vunpack.c.l.b16 %v1621
        %v1917 = vunpack.c.l.b16 %v1622
        %v1918 = vunpack.c.l.b16 %v1623
        %v1919 = vunpack.c.l.b16 %v1624
        %v1920 = vunpack.c.l.b16 %v1625
        %v1921 = vunpack.c.l.b16 %v1626
        %v1922 = vunpack.c.l.b16 %v1627
        %v1923 = vunpack.c.l.b16 %v1628
        %v1924 = vunpack.c.l.b16 %v1629
        %v1925 = vunpack.c.l.b16 %v1630
        %v1926 = vunpack.c.l.b16 %v1631
        %v1927 = vunpack.c.l.b16 %v1632
        %v1928 = vunpack.c.l.b16 %v1633
        %v1929 = vunpack.c.l.b16 %v1634
        %v1930 = vunpack.c.l.b16 %v1635
        %v1931 = vunpack.c.l.b16 %v1636
        %v1932 = vunpack.c.l.b16 %v1637
        %v1933 = vunpack.c.l.b16 %v1638
        %v1934 = vunpack.c.l.b16 %v1639
        %v1935 = vunpack.c.l.b16 %v1640
        %v1936 = vunpack.c.l.b16 %v1641
        %v1937 = vunpack.c.l.b16 %v1642
        %v1938 = vunpack.c.l.b16 %v1643
        %v1939 = vunpack.c.l.b16 %v1644
        %v1940 = vunpack.c.l.b16 %v1645
        %v1941 = vunpack.c.l.b16 %v1646
        %v1942 = vunpack.c.l.b16 %v1647
        %v1943 = vunpack.c.l.b16 %v1648
        %v1944 = vunpack.c.l.b16 %v1649
        %v1945 = vunpack.c.l.b16 %v1650
        %v1946 = vunpack.c.l.b16 %v1651
        %v1947 = vunpack.c.l.b16 %v1652
        %v1948 = vunpack.c.l.b16 %v1653
        %v1949 = vunpack.c.l.b16 %v1654
        %v1950 = vunpack.c.l.b16 %v1655
        %v1951 = vunpack.c.l.b16 %v1656
        %v1952 = vunpack.c.l.b16 %v1657
        %v1953 = vunpack.c.l.b16 %v1658
        %v1954 = vunpack.c.l.b16 %v1659
        %v1955 = vunpack.c.l.b16 %v1660
        %v1956 = vunpack.c.l.b16 %v1661
        %v1957 = vunpack.c.l.b16 %v1662
        %v1958 = vunpack.c.l.b16 %v1663
        %v1959 = vunpack.c.l.b16 %v1664
        %v1960 = vunpack.c.l.b16 %v1665
        %v1961 = vunpack.c.l.b16 %v1666
        %v1962 = vunpack.c.l.b16 %v1667
        %v1963 = vunpack.c.l.b16 %v1668
        %v1964 = vunpack.c.l.b16 %v1669
        %v1965 = vunpack.c.l.b16 %v1670
        %v1966 = vunpack.c.l.b16 %v1671
        %v1967 = vunpack.c.l.b16 %v1672
        %v1968 = vunpack.c.l.b16 %v1673
        %v1969 = vunpack.c.l.b16 %v1674
        %v1970 = vunpack.c.l.b16 %v1675
        %v1971 = vunpack.c.l.b16 %v1676
        %v1972 = vunpack.c.l.b16 %v1677
        %v1973 = vunpack.c.l.b16 %v1678
        %v1974 = vunpack.c.l.b16 %v1679
        %v1975 = vunpack.c.l.b16 %v1680
        %v1976 = vunpack.c.l.b16 %v1681
        %v1977 = vunpack.c.l.b16 %v1682
        %v1978 = vunpack.c.l.b16 %v1683
        %v1979 = vunpack.c.l.b16 %v1684
        %v1980 = vunpack.c.l.b16 %v1685
        %v1981 = vunpack.c.l.b16 %v1686
        %v1982 = vunpack.c.l.b16 %v1687
        %v1983 = vunpack.c.l.b16 %v1688
        %v1984 = vunpack.c.l.b16 %v1689
        %v1985 = vunpack.c.l.b16 %v1690
        %v1986 = vunpack.c.l.b16 %v1691
        %v1987 = vunpack.c.l.b16 %v1692
        %v1988 = vunpack.c.l.b16 %v1693
        %v1989 = vunpack.c.l.b16 %v1694
        %v1990 = vunpack.c.l.b16 %v1695
        %v1991 = vunpack.c.l.b16 %v1696
        %v1992 = vunpack.c.l.b16 %v1697
        %v1993 = vunpack.c.l.b16 %v1698
        %v1994 = vunpack.c.l.b16 %v1699
        %v1995 = vunpack.c.l.b16 %v1700
        %v1996 = vunpack.c.l.b16 %v1701
        %v1997 = vunpack.c.l.b16 %v1702
        %v1998 = vunpack.c.l.b16 %v1703
        %v1999 = vunpack.c.l.b16 %v1704
        %v2000 = vunpack.c.l.b16 %v1705
        %v2001 = vunpack.c.l.b16 %v1706
        %v2002 = vunpack.c.l.b16 %v1707
        %v2003 = vunpack.c.l.b16 %v1708
        %v2004 = vunpack.c.l.b16 %v1709
        %v2005 = vunpack.c.l.b16 %v1710
        %v2006 = vunpack.c.l.b16 %v1711
        %v2007 = vunpack.c.l.b16 %v1712
        %v2008 = vunpack.c.l.b16 %v1713
        %v2009 = vunpack.c.l.b16 %v1714
        %v2010 = vunpack.c.l.b16 %v1715
        %v2011 = vunpack.c.l.b16 %v1716
        %v2012 = vunpack.c.l.b16 %v1717
        %v2013 = vunpack.c.l.b16 %v1718
        %v2014 = vunpack.c.l.b16 %v1719
        %v2015 = vunpack.c.l.b16 %v1720
        %v2016 = vunpack.c.l.b16 %v1721
        %v2017 = vunpack.c.l.b16 %v1722
        %v2018 = vunpack.c.l.b16 %v1723
        %v2019 = vunpack.c.l.b16 %v1724
        %v2020 = vunpack.c.l.b16 %v1725
        %v2021 = vunpack.c.l.b16 %v1726
        %v2022 = vunpack.c.l.b16 %v1727
        %v2023 = vunpack.c.l.b16 %v1728
        %v2024 = vunpack.c.l.b16 %v1729
        %v2025 = vunpack.c.l.b16 %v1730
        %v2026 = vunpack.c.l.b16 %v1731
        %v2027 = vunpack.c.l.b16 %v1732
        %v2028 = vunpack.c.l.b16 %v1733
        %v2029 = vunpack.c.l.b16 %v1734
        %v2030 = vpack.c.b16 %v1887, %v1886
        %v2031 = vpack.c.b16 %v1889, %v1888
        %v2032 = vpack.c.b16 %v1891, %v1890
        %v2033 = vpack.c.b16 %v1893, %v1892
        %v2034 = vpack.c.b16 %v1895, %v1894
        %v2035 = vpack.c.b16 %v1897, %v1896
        %v2036 = vpack.c.b16 %v1899, %v1898
        %v2037 = vpack.c.b16 %v1901, %v1900
        %v2038 = vpack.c.b16 %v1903, %v1902
        %v2039 = vpack.c.b16 %v1905, %v1904
        %v2040 = vpack.c.b16 %v1907, %v1906
        %v2041 = vpack.c.b16 %v1909, %v1908
        %v2042 = vpack.c.b16 %v1911, %v1910
        %v2043 = vpack.c.b16 %v1913, %v1912
        %v2044 = vpack.c.b16 %v1915, %v1914
        %v2045 = vpack.c.b16 %v1917, %v1916
        %v2046 = vpack.c.b16 %v1919, %v1918
        %v2047 = vpack.c.b16 %v1921, %v1920
        %v2048 = vpack.c.b16 %v1923, %v1922
        %v2049 = vpack.c.b16 %v1925, %v1924
        %v2050 = vpack.c.b16 %v1927, %v1926
        %v2051 = vpack.c.b16 %v1929, %v1928
        %v2052 = vpack.c.b16 %v1931, %v1930
        %v2053 = vpack.c.b16 %v1933, %v1932
        %v2054 = vpack.c.b16 %v1935, %v1934
        %v2055 = vpack.c.b16 %v1937, %v1936
        %v2056 = vpack.c.b16 %v1939, %v1938
        %v2057 = vpack.c.b16 %v1941, %v1940
        %v2058 = vpack.c.b16 %v1943, %v1942
        %v2059 = vpack.c.b16 %v1945, %v1944
        %v2060 = vpack.c.b16 %v1947, %v1946
        %v2061 = vpack.c.b16 %v1949, %v1948
        %v2062 = vpack.c.b16 %v1951, %v1950
        %v2063 = vpack.c.b16 %v1953, %v1952
        %v2064 = vpack.c.b16 %v1955, %v1954
        %v2065 = vpack.c.b16 %v1957, %v1956
        %v2066 = vpack.c.b16 %v1959, %v1958
        %v2067 = vpack.c.b16 %v1961, %v1960
        %v2068 = vpack.c.b16 %v1963, %v1962
        %v2069 = vpack.c.b16 %v1965, %v1964
        %v2070 = vpack.c.b16 %v1967, %v1966
        %v2071 = vpack.c.b16 %v1969, %v1968
        %v2072 = vpack.c.b16 %v1971, %v1970
        %v2073 = vpack.c.b16 %v1973, %v1972
        %v2074 = vpack.c.b16 %v1975, %v1974
        %v2075 = vpack.c.b16 %v1977, %v1976
        %v2076 = vpack.c.b16 %v1979, %v1978
        %v2077 = vpack.c.b16 %v1981, %v1980
        %v2078 = vpack.c.b16 %v1983, %v1982
        %v2079 = vpack.c.b16 %v1985, %v1984
        %v2080 = vpack.c.b16 %v1987, %v1986
        %v2081 = vpack.c.b16 %v1989, %v1988
        %v2082 = vpack.c.b16 %v1991, %v1990
        %v2083 = vpack.c.b16 %v1993, %v1992
        %v2084 = vpack.c.b16 %v1995, %v1994
        %v2085 = vpack.c.b16 %v1997, %v1996
        %v2086 = vpack.c.b16 %v1999, %v1998
        %v2087 = vpack.c.b16 %v2001, %v2000
        %v2088 = vpack.c.b16 %v2003, %v2002
        %v2089 = vpack.c.b16 %v2005, %v2004
        %v2090 = vpack.c.b16 %v2007, %v2006
        %v2091 = vpack.c.b16 %v2009, %v2008
        %v2092 = vpack.c.b16 %v2011, %v2010
        %v2093 = vpack.c.b16 %v2013, %v2012
        %v2094 = vpack.c.b16 %v2015, %v2014
        %v2095 = vpack.c.b16 %v2017, %v2016
        %v2096 = vpack.c.b16 %v2019, %v2018
        %v2097 = vpack.c.b16 %v2021, %v2020
        %v2098 = vpack.c.b16 %v2023, %v2022
        %v2099 = vpack.c.b16 %v2025, %v2024
        %v2100 = vpack.c.b16 %v2027, %v2026
        %v2101 = vpack.c.b16 %v2029, %v2028
        %2174 = vmatprep.subr.bf16.mxu0 0
        %2175 = vmatpush1.bf16.msra.mxu0 %v2030
        %2176 = vmatprep.subr.bf16.mxu0 0
        %2177 = vmatpush1.bf16.msra.mxu0 %v2031
        %2178 = vmatprep.subr.bf16.mxu0 0
        %2179 = vmatpush1.bf16.msra.mxu0 %v2032
        %2180 = vmatprep.subr.bf16.mxu0 0
        %2181 = vmatpush1.bf16.msra.mxu0 %v2033
        %2182 = vmatprep.subr.bf16.mxu0 0
        %2183 = vmatpush1.bf16.msra.mxu0 %v2034
        %2184 = vmatprep.subr.bf16.mxu0 0
        %2185 = vmatpush1.bf16.msra.mxu0 %v2035
        %2186 = vmatprep.subr.bf16.mxu0 0
        %2187 = vmatpush1.bf16.msra.mxu0 %v2036
        %2188 = vmatprep.subr.bf16.mxu0 0
        %2189 = vmatpush1.bf16.msra.mxu0 %v2037
        %2190 = vmatprep.subr.bf16.mxu0 0
        %2191 = vmatpush1.bf16.msra.mxu0 %v2038
        %2192 = vmatprep.subr.bf16.mxu0 0
        %2193 = vmatpush1.bf16.msra.mxu0 %v2039
        %2194 = vmatprep.subr.bf16.mxu0 0
        %2195 = vmatpush1.bf16.msra.mxu0 %v2040
        %2196 = vmatprep.subr.bf16.mxu0 0
        %2197 = vmatpush1.bf16.msra.mxu0 %v2041
        %2198 = vmatprep.subr.bf16.mxu0 0
        %2199 = vmatpush1.bf16.msra.mxu0 %v2042
        %2200 = vmatprep.subr.bf16.mxu0 0
        %2201 = vmatpush1.bf16.msra.mxu0 %v2043
        %2202 = vmatprep.subr.bf16.mxu0 0
        %2203 = vmatpush1.bf16.msra.mxu0 %v2044
        %2204 = vmatprep.subr.bf16.mxu0 0
        %2205 = vmatpush1.bf16.msra.mxu0 %v2045
        %2206 = vmatprep.mubr.bf16.mxu0 %v497
        %2207 = vmatmul.mubr.bf16.gmra.mrb[0].mxu0 %v405
        %v2208 = vpop.f32.mrb[0].mxu0
        %v2209 = vadd.f32 %v1740, %v2208
        %v2210 = vpop.f32.mrb[0].mxu0
        %v2211 = vpop.f32.mrb[0].mxu0
        %v2212 = vadd.f32 %v1740, %v2211
        %v2213 = vpop.f32.mrb[0].mxu0
        %2214 = vmatprep.mubr.bf16.mxu0 %v509
        %2215 = vmatmul.mubr.bf16.gmra.mrb[0].mxu0 %v406
        %v2216 = vpop.f32.mrb[0].mxu0
        %v2217 = vadd.f32 %v1740, %v2216
        %v2218 = vpop.f32.mrb[0].mxu0
        %v2219 = vpop.f32.mrb[0].mxu0
        %v2220 = vadd.f32 %v1740, %v2219
        %v2221 = vpop.f32.mrb[0].mxu0
        %2222 = vmatprep.mubr.bf16.mxu0 %v521
        %2223 = vmatmul.mubr.bf16.gmra.mrb[0].mxu0 %v407
        %v2224 = vpop.f32.mrb[0].mxu0
        %v2225 = vadd.f32 %v1740, %v2224
        %v2226 = vpop.f32.mrb[0].mxu0
        %v2227 = vpop.f32.mrb[0].mxu0
        %v2228 = vadd.f32 %v1740, %v2227
        %v2229 = vpop.f32.mrb[0].mxu0
        %2230 = vmatprep.mubr.bf16.mxu0 %v533
        %2231 = vmatmul.mubr.bf16.gmra.mrb[0].mxu0 %v408
        %v2232 = vpop.f32.mrb[0].mxu0
        %v2233 = vadd.f32 %v1740, %v2232
        %v2234 = vpop.f32.mrb[0].mxu0
        %v2235 = vpop.f32.mrb[0].mxu0
        %v2236 = vadd.f32 %v1740, %v2235
        %v2237 = vpop.f32.mrb[0].mxu0
        %2238 = vmatprep.mubr.bf16.mxu0 %v545
        %2239 = vmatmul.mubr.bf16.gmra.mrb[0].mxu0 %v409
        %v2240 = vpop.f32.mrb[0].mxu0
        %v2241 = vadd.f32 %v1740, %v2240
        %v2242 = vpop.f32.mrb[0].mxu0
        %v2243 = vpop.f32.mrb[0].mxu0
        %v2244 = vadd.f32 %v1740, %v2243
        %v2245 = vpop.f32.mrb[0].mxu0
        %2246 = vmatprep.mubr.bf16.mxu0 %v557
        %2247 = vmatmul.mubr.bf16.gmra.mrb[0].mxu0 %v410
        %v2248 = vpop.f32.mrb[0].mxu0
        %v2249 = vadd.f32 %v1740, %v2248
        %v2250 = vpop.f32.mrb[0].mxu0
        %v2251 = vpop.f32.mrb[0].mxu0
        %v2252 = vadd.f32 %v1740, %v2251
        %v2253 = vpop.f32.mrb[0].mxu0
        %2254 = vmatprep.mubr.bf16.mxu0 %v569
        %2255 = vmatmul.mubr.bf16.gmra.mrb[0].mxu0 %v411
        %v2256 = vpop.f32.mrb[0].mxu0
        %v2257 = vadd.f32 %v1740, %v2256
        %v2258 = vpop.f32.mrb[0].mxu0
        %v2259 = vpop.f32.mrb[0].mxu0
        %v2260 = vadd.f32 %v1740, %v2259
        %v2261 = vpop.f32.mrb[0].mxu0
        %2262 = vmatprep.mubr.bf16.mxu0 %v581
        %2263 = vmatmul.mubr.bf16.gmra.mrb[0].mxu0 %v412
        %v2264 = vpop.f32.mrb[0].mxu0
        %v2265 = vadd.f32 %v1740, %v2264
        %v2266 = vpop.f32.mrb[0].mxu0
        %v2267 = vpop.f32.mrb[0].mxu0
        %v2268 = vadd.f32 %v1740, %v2267
        %v2269 = vpop.f32.mrb[0].mxu0
        %2270 = vmatprep.mubr.bf16.mxu0 %v593
        %2271 = vmatmul.mubr.bf16.gmra.mrb[0].mxu0 %v413
        %v2272 = vpop.f32.mrb[0].mxu0
        %v2273 = vadd.f32 %v1740, %v2272
        %v2274 = vpop.f32.mrb[0].mxu0
        %v2275 = vpop.f32.mrb[0].mxu0
        %v2276 = vadd.f32 %v1740, %v2275
        %v2277 = vpop.f32.mrb[0].mxu0
        %2278 = vmatprep.mubr.bf16.mxu0 %v605
        %2279 = vmatmul.mubr.bf16.gmra.mrb[0].mxu0 %v414
        %v2280 = vpop.f32.mrb[0].mxu0
        %v2281 = vadd.f32 %v1740, %v2280
        %v2282 = vpop.f32.mrb[0].mxu0
        %v2283 = vpop.f32.mrb[0].mxu0
        %v2284 = vadd.f32 %v1740, %v2283
        %v2285 = vpop.f32.mrb[0].mxu0
        %2286 = vmatprep.mubr.bf16.mxu0 %v617
        %2287 = vmatmul.mubr.bf16.gmra.mrb[0].mxu0 %v415
        %v2288 = vpop.f32.mrb[0].mxu0
        %v2289 = vadd.f32 %v1740, %v2288
        %v2290 = vpop.f32.mrb[0].mxu0
        %v2291 = vpop.f32.mrb[0].mxu0
        %v2292 = vadd.f32 %v1740, %v2291
        %v2293 = vpop.f32.mrb[0].mxu0
        %2294 = vmatprep.mubr.bf16.mxu0 %v629
        %2295 = vmatmul.mubr.bf16.gmra.mrb[0].mxu0 %v416
        %v2296 = vpop.f32.mrb[0].mxu0
        %v2297 = vadd.f32 %v1740, %v2296
        %v2298 = vpop.f32.mrb[0].mxu0
        %v2299 = vpop.f32.mrb[0].mxu0
        %v2300 = vadd.f32 %v1740, %v2299
        %v2301 = vpop.f32.mrb[0].mxu0
        %2302 = vmatprep.mubr.bf16.mxu0 %v641
        %2303 = vmatmul.mubr.bf16.gmra.mrb[0].mxu0 %v417
        %v2304 = vpop.f32.mrb[0].mxu0
        %v2305 = vadd.f32 %v1740, %v2304
        %v2306 = vpop.f32.mrb[0].mxu0
        %v2307 = vpop.f32.mrb[0].mxu0
        %v2308 = vadd.f32 %v1740, %v2307
        %v2309 = vpop.f32.mrb[0].mxu0
        %2310 = vmatprep.mubr.bf16.mxu0 %v653
        %2311 = vmatmul.mubr.bf16.gmra.mrb[0].mxu0 %v418
        %v2312 = vpop.f32.mrb[0].mxu0
        %v2313 = vadd.f32 %v1740, %v2312
        %v2314 = vpop.f32.mrb[0].mxu0
        %v2315 = vpop.f32.mrb[0].mxu0
        %v2316 = vadd.f32 %v1740, %v2315
        %v2317 = vpop.f32.mrb[0].mxu0
        %2318 = vmatprep.mubr.bf16.mxu0 %v665
        %2319 = vmatmul.mubr.bf16.gmra.mrb[0].mxu0 %v419
        %v2320 = vpop.f32.mrb[0].mxu0
        %v2321 = vadd.f32 %v1740, %v2320
        %v2322 = vpop.f32.mrb[0].mxu0
        %v2323 = vpop.f32.mrb[0].mxu0
        %v2324 = vadd.f32 %v1740, %v2323
        %v2325 = vpop.f32.mrb[0].mxu0
        %2326 = vmatprep.mubr.bf16.mxu0 %v677
        %2327 = vmatmul.mubr.bf16.gmra.mrb[0].mxu0 %v420
        %v2328 = vpop.f32.mrb[0].mxu0
        %v2329 = vadd.f32 %v1740, %v2328
        %v2330 = vpop.f32.mrb[0].mxu0
        %v2331 = vpop.f32.mrb[0].mxu0
        %v2332 = vadd.f32 %v1740, %v2331
        %v2333 = vpop.f32.mrb[0].mxu0
        %2334 = vdwg.mxu0
        %2335 = vmatprep.subr.bf16.mxu0 0
        %2336 = vmatpush1.bf16.msra.mxu0 %v2046
        %2337 = vmatprep.subr.bf16.mxu0 0
        %2338 = vmatpush1.bf16.msra.mxu0 %v2047
        %2339 = vmatprep.subr.bf16.mxu0 0
        %2340 = vmatpush1.bf16.msra.mxu0 %v2048
        %2341 = vmatprep.subr.bf16.mxu0 0
        %2342 = vmatpush1.bf16.msra.mxu0 %v2049
        %2343 = vmatprep.subr.bf16.mxu0 0
        %2344 = vmatpush1.bf16.msra.mxu0 %v2050
        %2345 = vmatprep.subr.bf16.mxu0 0
        %2346 = vmatpush1.bf16.msra.mxu0 %v2051
        %2347 = vmatprep.subr.bf16.mxu0 0
        %2348 = vmatpush1.bf16.msra.mxu0 %v2052
        %2349 = vmatprep.subr.bf16.mxu0 0
        %2350 = vmatpush1.bf16.msra.mxu0 %v2053
        %2351 = vmatprep.subr.bf16.mxu0 0
        %2352 = vmatpush1.bf16.msra.mxu0 %v2054
        %2353 = vmatprep.subr.bf16.mxu0 0
        %2354 = vmatpush1.bf16.msra.mxu0 %v2055
        %2355 = vmatprep.subr.bf16.mxu0 0
        %2356 = vmatpush1.bf16.msra.mxu0 %v2056
        %2357 = vmatprep.subr.bf16.mxu0 0
        %2358 = vmatpush1.bf16.msra.mxu0 %v2057
        %2359 = vmatprep.subr.bf16.mxu0 0
        %2360 = vmatpush1.bf16.msra.mxu0 %v2058
        %2361 = vmatprep.subr.bf16.mxu0 0
        %2362 = vmatpush1.bf16.msra.mxu0 %v2059
        %2363 = vmatprep.subr.bf16.mxu0 0
        %2364 = vmatpush1.bf16.msra.mxu0 %v2060
        %2365 = vmatprep.subr.bf16.mxu0 0
        %2366 = vmatpush1.bf16.msra.mxu0 %v2061
        %2367 = vmatprep.mubr.bf16.mxu0 %v823
        %2368 = vmatmul.mubr.bf16.gmra.mrb[0].mxu0 %v697
        %v2369 = vpop.f32.mrb[0].mxu0
        %v2370 = vadd.f32 %v2209, %v2369
        %v2371 = vpop.f32.mrb[0].mxu0
        %v2372 = vpop.f32.mrb[0].mxu0
        %v2373 = vadd.f32 %v2212, %v2372
        %v2374 = vpop.f32.mrb[0].mxu0
        %2375 = vmatprep.mubr.bf16.mxu0 %v824
        %2376 = vmatmul.mubr.bf16.gmra.mrb[0].mxu0 %v700
        %v2377 = vpop.f32.mrb[0].mxu0
        %v2378 = vadd.f32 %v2217, %v2377
        %v2379 = vpop.f32.mrb[0].mxu0
        %v2380 = vpop.f32.mrb[0].mxu0
        %v2381 = vadd.f32 %v2220, %v2380
        %v2382 = vpop.f32.mrb[0].mxu0
        %2383 = vmatprep.mubr.bf16.mxu0 %v825
        %2384 = vmatmul.mubr.bf16.gmra.mrb[0].mxu0 %v703
        %v2385 = vpop.f32.mrb[0].mxu0
        %v2386 = vadd.f32 %v2225, %v2385
        %v2387 = vpop.f32.mrb[0].mxu0
        %v2388 = vpop.f32.mrb[0].mxu0
        %v2389 = vadd.f32 %v2228, %v2388
        %v2390 = vpop.f32.mrb[0].mxu0
        %2391 = vmatprep.mubr.bf16.mxu0 %v826
        %2392 = vmatmul.mubr.bf16.gmra.mrb[0].mxu0 %v706
        %v2393 = vpop.f32.mrb[0].mxu0
        %v2394 = vadd.f32 %v2233, %v2393
        %v2395 = vpop.f32.mrb[0].mxu0
        %v2396 = vpop.f32.mrb[0].mxu0
        %v2397 = vadd.f32 %v2236, %v2396
        %v2398 = vpop.f32.mrb[0].mxu0
        %2399 = vmatprep.mubr.bf16.mxu0 %v827
        %2400 = vmatmul.mubr.bf16.gmra.mrb[0].mxu0 %v709
        %v2401 = vpop.f32.mrb[0].mxu0
        %v2402 = vadd.f32 %v2241, %v2401
        %v2403 = vpop.f32.mrb[0].mxu0
        %v2404 = vpop.f32.mrb[0].mxu0
        %v2405 = vadd.f32 %v2244, %v2404
        %v2406 = vpop.f32.mrb[0].mxu0
        %2407 = vmatprep.mubr.bf16.mxu0 %v828
        %2408 = vmatmul.mubr.bf16.gmra.mrb[0].mxu0 %v712
        %v2409 = vpop.f32.mrb[0].mxu0
        %v2410 = vadd.f32 %v2249, %v2409
        %v2411 = vpop.f32.mrb[0].mxu0
        %v2412 = vpop.f32.mrb[0].mxu0
        %v2413 = vadd.f32 %v2252, %v2412
        %v2414 = vpop.f32.mrb[0].mxu0
        %2415 = vmatprep.mubr.bf16.mxu0 %v829
        %2416 = vmatmul.mubr.bf16.gmra.mrb[0].mxu0 %v715
        %v2417 = vpop.f32.mrb[0].mxu0
        %v2418 = vadd.f32 %v2257, %v2417
        %v2419 = vpop.f32.mrb[0].mxu0
        %v2420 = vpop.f32.mrb[0].mxu0
        %v2421 = vadd.f32 %v2260, %v2420
        %v2422 = vpop.f32.mrb[0].mxu0
        %2423 = vmatprep.mubr.bf16.mxu0 %v830
        %2424 = vmatmul.mubr.bf16.gmra.mrb[0].mxu0 %v718
        %v2425 = vpop.f32.mrb[0].mxu0
        %v2426 = vadd.f32 %v2265, %v2425
        %v2427 = vpop.f32.mrb[0].mxu0
        %v2428 = vpop.f32.mrb[0].mxu0
        %v2429 = vadd.f32 %v2268, %v2428
        %v2430 = vpop.f32.mrb[0].mxu0
        %2431 = vmatprep.mubr.bf16.mxu0 %v831
        %2432 = vmatmul.mubr.bf16.gmra.mrb[0].mxu0 %v721
        %v2433 = vpop.f32.mrb[0].mxu0
        %v2434 = vadd.f32 %v2273, %v2433
        %v2435 = vpop.f32.mrb[0].mxu0
        %v2436 = vpop.f32.mrb[0].mxu0
        %v2437 = vadd.f32 %v2276, %v2436
        %v2438 = vpop.f32.mrb[0].mxu0
        %2439 = vmatprep.mubr.bf16.mxu0 %v832
        %2440 = vmatmul.mubr.bf16.gmra.mrb[0].mxu0 %v724
        %v2441 = vpop.f32.mrb[0].mxu0
        %v2442 = vadd.f32 %v2281, %v2441
        %v2443 = vpop.f32.mrb[0].mxu0
        %v2444 = vpop.f32.mrb[0].mxu0
        %v2445 = vadd.f32 %v2284, %v2444
        %v2446 = vpop.f32.mrb[0].mxu0
        %2447 = vmatprep.mubr.bf16.mxu0 %v833
        %2448 = vmatmul.mubr.bf16.gmra.mrb[0].mxu0 %v727
        %v2449 = vpop.f32.mrb[0].mxu0
        %v2450 = vadd.f32 %v2289, %v2449
        %v2451 = vpop.f32.mrb[0].mxu0
        %v2452 = vpop.f32.mrb[0].mxu0
        %v2453 = vadd.f32 %v2292, %v2452
        %v2454 = vpop.f32.mrb[0].mxu0
        %2455 = vmatprep.mubr.bf16.mxu0 %v834
        %2456 = vmatmul.mubr.bf16.gmra.mrb[0].mxu0 %v730
        %v2457 = vpop.f32.mrb[0].mxu0
        %v2458 = vadd.f32 %v2297, %v2457
        %v2459 = vpop.f32.mrb[0].mxu0
        %v2460 = vpop.f32.mrb[0].mxu0
        %v2461 = vadd.f32 %v2300, %v2460
        %v2462 = vpop.f32.mrb[0].mxu0
        %2463 = vmatprep.mubr.bf16.mxu0 %v835
        %2464 = vmatmul.mubr.bf16.gmra.mrb[0].mxu0 %v733
        %v2465 = vpop.f32.mrb[0].mxu0
        %v2466 = vadd.f32 %v2305, %v2465
        %v2467 = vpop.f32.mrb[0].mxu0
        %v2468 = vpop.f32.mrb[0].mxu0
        %v2469 = vadd.f32 %v2308, %v2468
        %v2470 = vpop.f32.mrb[0].mxu0
        %2471 = vmatprep.mubr.bf16.mxu0 %v836
        %2472 = vmatmul.mubr.bf16.gmra.mrb[0].mxu0 %v736
        %v2473 = vpop.f32.mrb[0].mxu0
        %v2474 = vadd.f32 %v2313, %v2473
        %v2475 = vpop.f32.mrb[0].mxu0
        %v2476 = vpop.f32.mrb[0].mxu0
        %v2477 = vadd.f32 %v2316, %v2476
        %v2478 = vpop.f32.mrb[0].mxu0
        %2479 = vmatprep.mubr.bf16.mxu0 %v837
        %2480 = vmatmul.mubr.bf16.gmra.mrb[0].mxu0 %v739
        %v2481 = vpop.f32.mrb[0].mxu0
        %v2482 = vadd.f32 %v2321, %v2481
        %v2483 = vpop.f32.mrb[0].mxu0
        %v2484 = vpop.f32.mrb[0].mxu0
        %v2485 = vadd.f32 %v2324, %v2484
        %v2486 = vpop.f32.mrb[0].mxu0
        %2487 = vmatprep.mubr.bf16.mxu0 %v838
        %2488 = vmatmul.mubr.bf16.gmra.mrb[0].mxu0 %v742
        %v2489 = vpop.f32.mrb[0].mxu0
        %v2490 = vadd.f32 %v2329, %v2489
        %v2491 = vpop.f32.mrb[0].mxu0
        %v2492 = vpop.f32.mrb[0].mxu0
        %v2493 = vadd.f32 %v2332, %v2492
        %v2494 = vpop.f32.mrb[0].mxu0
        %2495 = vdwg.mxu0
        %2496 = vmatprep.subr.bf16.mxu0 0
        %2497 = vmatpush1.bf16.msra.mxu0 %v2062
        %2498 = vmatprep.subr.bf16.mxu0 0
        %2499 = vmatpush1.bf16.msra.mxu0 %v2063
        %2500 = vmatprep.subr.bf16.mxu0 0
        %2501 = vmatpush1.bf16.msra.mxu0 %v2064
        %2502 = vmatprep.subr.bf16.mxu0 0
        %2503 = vmatpush1.bf16.msra.mxu0 %v2065
        %2504 = vmatprep.subr.bf16.mxu0 0
        %2505 = vmatpush1.bf16.msra.mxu0 %v2066
        %2506 = vmatprep.subr.bf16.mxu0 0
        %2507 = vmatpush1.bf16.msra.mxu0 %v2067
        %2508 = vmatprep.subr.bf16.mxu0 0
        %2509 = vmatpush1.bf16.msra.mxu0 %v2068
        %2510 = vmatprep.subr.bf16.mxu0 0
        %2511 = vmatpush1.bf16.msra.mxu0 %v2069
        %2512 = vmatprep.subr.bf16.mxu0 0
        %2513 = vmatpush1.bf16.msra.mxu0 %v2070
        %2514 = vmatprep.subr.bf16.mxu0 0
        %2515 = vmatpush1.bf16.msra.mxu0 %v2071
        %2516 = vmatprep.subr.bf16.mxu0 0
        %2517 = vmatpush1.bf16.msra.mxu0 %v2072
        %2518 = vmatprep.subr.bf16.mxu0 0
        %2519 = vmatpush1.bf16.msra.mxu0 %v2073
        %2520 = vmatprep.subr.bf16.mxu0 0
        %2521 = vmatpush1.bf16.msra.mxu0 %v2074
        %2522 = vmatprep.subr.bf16.mxu0 0
        %2523 = vmatpush1.bf16.msra.mxu0 %v2075
        %2524 = vmatprep.subr.bf16.mxu0 0
        %2525 = vmatpush1.bf16.msra.mxu0 %v2076
        %2526 = vmatprep.subr.bf16.mxu0 0
        %2527 = vmatpush1.bf16.msra.mxu0 %v2077
        %2528 = vmatprep.mubr.bf16.mxu0 %v1113
        %2529 = vmatmul.mubr.bf16.gmra.mrb[0].mxu0 %v914
        %v2530 = vpop.f32.mrb[0].mxu0
        %v2531 = vadd.f32 %v2370, %v2530
        %v2532 = vpop.f32.mrb[0].mxu0
        %v2533 = vpop.f32.mrb[0].mxu0
        %v2534 = vadd.f32 %v2373, %v2533
        %v2535 = vpop.f32.mrb[0].mxu0
        %2536 = vmatprep.mubr.bf16.mxu0 %v1116
        %2537 = vmatmul.mubr.bf16.gmra.mrb[0].mxu0 %v926
        %v2538 = vpop.f32.mrb[0].mxu0
        %v2539 = vadd.f32 %v2378, %v2538
        %v2540 = vpop.f32.mrb[0].mxu0
        %v2541 = vpop.f32.mrb[0].mxu0
        %v2542 = vadd.f32 %v2381, %v2541
        %v2543 = vpop.f32.mrb[0].mxu0
        %2544 = vmatprep.mubr.bf16.mxu0 %v1119
        %2545 = vmatmul.mubr.bf16.gmra.mrb[0].mxu0 %v938
        %v2546 = vpop.f32.mrb[0].mxu0
        %v2547 = vadd.f32 %v2386, %v2546
        %v2548 = vpop.f32.mrb[0].mxu0
        %v2549 = vpop.f32.mrb[0].mxu0
        %v2550 = vadd.f32 %v2389, %v2549
        %v2551 = vpop.f32.mrb[0].mxu0
        %2552 = vmatprep.mubr.bf16.mxu0 %v1122
        %2553 = vmatmul.mubr.bf16.gmra.mrb[0].mxu0 %v950
        %v2554 = vpop.f32.mrb[0].mxu0
        %v2555 = vadd.f32 %v2394, %v2554
        %v2556 = vpop.f32.mrb[0].mxu0
        %v2557 = vpop.f32.mrb[0].mxu0
        %v2558 = vadd.f32 %v2397, %v2557
        %v2559 = vpop.f32.mrb[0].mxu0
        %2560 = vmatprep.mubr.bf16.mxu0 %v1125
        %2561 = vmatmul.mubr.bf16.gmra.mrb[0].mxu0 %v962
        %v2562 = vpop.f32.mrb[0].mxu0
        %v2563 = vadd.f32 %v2402, %v2562
        %v2564 = vpop.f32.mrb[0].mxu0
        %v2565 = vpop.f32.mrb[0].mxu0
        %v2566 = vadd.f32 %v2405, %v2565
        %v2567 = vpop.f32.mrb[0].mxu0
        %2568 = vmatprep.mubr.bf16.mxu0 %v1128
        %2569 = vmatmul.mubr.bf16.gmra.mrb[0].mxu0 %v974
        %v2570 = vpop.f32.mrb[0].mxu0
        %v2571 = vadd.f32 %v2410, %v2570
        %v2572 = vpop.f32.mrb[0].mxu0
        %v2573 = vpop.f32.mrb[0].mxu0
        %v2574 = vadd.f32 %v2413, %v2573
        %v2575 = vpop.f32.mrb[0].mxu0
        %2576 = vmatprep.mubr.bf16.mxu0 %v1131
        %2577 = vmatmul.mubr.bf16.gmra.mrb[0].mxu0 %v986
        %v2578 = vpop.f32.mrb[0].mxu0
        %v2579 = vadd.f32 %v2418, %v2578
        %v2580 = vpop.f32.mrb[0].mxu0
        %v2581 = vpop.f32.mrb[0].mxu0
        %v2582 = vadd.f32 %v2421, %v2581
        %v2583 = vpop.f32.mrb[0].mxu0
        %2584 = vmatprep.mubr.bf16.mxu0 %v1134
        %2585 = vmatmul.mubr.bf16.gmra.mrb[0].mxu0 %v998
        %v2586 = vpop.f32.mrb[0].mxu0
        %v2587 = vadd.f32 %v2426, %v2586
        %v2588 = vpop.f32.mrb[0].mxu0
        %v2589 = vpop.f32.mrb[0].mxu0
        %v2590 = vadd.f32 %v2429, %v2589
        %v2591 = vpop.f32.mrb[0].mxu0
        %2592 = vmatprep.mubr.bf16.mxu0 %v1137
        %2593 = vmatmul.mubr.bf16.gmra.mrb[0].mxu0 %v1010
        %v2594 = vpop.f32.mrb[0].mxu0
        %v2595 = vadd.f32 %v2434, %v2594
        %v2596 = vpop.f32.mrb[0].mxu0
        %v2597 = vpop.f32.mrb[0].mxu0
        %v2598 = vadd.f32 %v2437, %v2597
        %v2599 = vpop.f32.mrb[0].mxu0
        %2600 = vmatprep.mubr.bf16.mxu0 %v1140
        %2601 = vmatmul.mubr.bf16.gmra.mrb[0].mxu0 %v1022
        %v2602 = vpop.f32.mrb[0].mxu0
        %v2603 = vadd.f32 %v2442, %v2602
        %v2604 = vpop.f32.mrb[0].mxu0
        %v2605 = vpop.f32.mrb[0].mxu0
        %v2606 = vadd.f32 %v2445, %v2605
        %v2607 = vpop.f32.mrb[0].mxu0
        %2608 = vmatprep.mubr.bf16.mxu0 %v1143
        %2609 = vmatmul.mubr.bf16.gmra.mrb[0].mxu0 %v1034
        %v2610 = vpop.f32.mrb[0].mxu0
        %v2611 = vadd.f32 %v2450, %v2610
        %v2612 = vpop.f32.mrb[0].mxu0
        %v2613 = vpop.f32.mrb[0].mxu0
        %v2614 = vadd.f32 %v2453, %v2613
        %v2615 = vpop.f32.mrb[0].mxu0
        %2616 = vmatprep.mubr.bf16.mxu0 %v1146
        %2617 = vmatmul.mubr.bf16.gmra.mrb[0].mxu0 %v1046
        %v2618 = vpop.f32.mrb[0].mxu0
        %v2619 = vadd.f32 %v2458, %v2618
        %v2620 = vpop.f32.mrb[0].mxu0
        %v2621 = vpop.f32.mrb[0].mxu0
        %v2622 = vadd.f32 %v2461, %v2621
        %v2623 = vpop.f32.mrb[0].mxu0
        %2624 = vmatprep.mubr.bf16.mxu0 %v1149
        %2625 = vmatmul.mubr.bf16.gmra.mrb[0].mxu0 %v1058
        %v2626 = vpop.f32.mrb[0].mxu0
        %v2627 = vadd.f32 %v2466, %v2626
        %v2628 = vpop.f32.mrb[0].mxu0
        %v2629 = vpop.f32.mrb[0].mxu0
        %v2630 = vadd.f32 %v2469, %v2629
        %v2631 = vpop.f32.mrb[0].mxu0
        %2632 = vmatprep.mubr.bf16.mxu0 %v1152
        %2633 = vmatmul.mubr.bf16.gmra.mrb[0].mxu0 %v1070
        %v2634 = vpop.f32.mrb[0].mxu0
        %v2635 = vadd.f32 %v2474, %v2634
        %v2636 = vpop.f32.mrb[0].mxu0
        %v2637 = vpop.f32.mrb[0].mxu0
        %v2638 = vadd.f32 %v2477, %v2637
        %v2639 = vpop.f32.mrb[0].mxu0
        %2640 = vmatprep.mubr.bf16.mxu0 %v1155
        %2641 = vmatmul.mubr.bf16.gmra.mrb[0].mxu0 %v1082
        %v2642 = vpop.f32.mrb[0].mxu0
        %v2643 = vadd.f32 %v2482, %v2642
        %v2644 = vpop.f32.mrb[0].mxu0
        %v2645 = vpop.f32.mrb[0].mxu0
        %v2646 = vadd.f32 %v2485, %v2645
        %v2647 = vpop.f32.mrb[0].mxu0
        %2648 = vmatprep.mubr.bf16.mxu0 %v1158
        %2649 = vmatmul.mubr.bf16.gmra.mrb[0].mxu0 %v1094
        %v2650 = vpop.f32.mrb[0].mxu0
        %v2651 = vadd.f32 %v2490, %v2650
        %v2652 = vpop.f32.mrb[0].mxu0
        %v2653 = vpop.f32.mrb[0].mxu0
        %v2654 = vadd.f32 %v2493, %v2653
        %v2655 = vpop.f32.mrb[0].mxu0
        %2656 = vdwg.mxu0
        %2657 = vmatprep.subr.bf16.mxu0 0
        %2658 = vmatpush1.bf16.msra.mxu0 %v2078
        %2659 = vmatprep.subr.bf16.mxu0 0
        %2660 = vmatpush1.bf16.msra.mxu0 %v2079
        %2661 = vmatprep.subr.bf16.mxu0 0
        %2662 = vmatpush1.bf16.msra.mxu0 %v2080
        %2663 = vmatprep.subr.bf16.mxu0 0
        %2664 = vmatpush1.bf16.msra.mxu0 %v2081
        %2665 = vmatprep.subr.bf16.mxu0 0
        %2666 = vmatpush1.bf16.msra.mxu0 %v2082
        %2667 = vmatprep.subr.bf16.mxu0 0
        %2668 = vmatpush1.bf16.msra.mxu0 %v2083
        %2669 = vmatprep.subr.bf16.mxu0 0
        %2670 = vmatpush1.bf16.msra.mxu0 %v2084
        %2671 = vmatprep.subr.bf16.mxu0 0
        %2672 = vmatpush1.bf16.msra.mxu0 %v2085
        %2673 = vmatprep.subr.bf16.mxu0 0
        %2674 = vmatpush1.bf16.msra.mxu0 %v2086
        %2675 = vmatprep.subr.bf16.mxu0 0
        %2676 = vmatpush1.bf16.msra.mxu0 %v2087
        %2677 = vmatprep.subr.bf16.mxu0 0
        %2678 = vmatpush1.bf16.msra.mxu0 %v2088
        %2679 = vmatprep.subr.bf16.mxu0 0
        %2680 = vmatpush1.bf16.msra.mxu0 %v2089
        %2681 = vmatprep.subr.bf16.mxu0 0
        %2682 = vmatpush1.bf16.msra.mxu0 %v2090
        %2683 = vmatprep.subr.bf16.mxu0 0
        %2684 = vmatpush1.bf16.msra.mxu0 %v2091
        %2685 = vmatprep.subr.bf16.mxu0 0
        %2686 = vmatpush1.bf16.msra.mxu0 %v2092
        %2687 = vmatprep.subr.bf16.mxu0 0
        %2688 = vmatpush1.bf16.msra.mxu0 %v2093
        %2689 = vmatprep.mubr.bf16.mxu0 %v1330
        %2690 = vmatmul.mubr.bf16.gmra.mrb[0].mxu0 %v1239
        %v2691 = vpop.f32.mrb[0].mxu0
        %v2692 = vadd.f32 %v2531, %v2691
        %v2693 = vpop.f32.mrb[0].mxu0
        %v2694 = vpop.f32.mrb[0].mxu0
        %v2695 = vadd.f32 %v2534, %v2694
        %v2696 = vpop.f32.mrb[0].mxu0
        %2697 = vmatprep.mubr.bf16.mxu0 %v1342
        %2698 = vmatmul.mubr.bf16.gmra.mrb[0].mxu0 %v1240
        %v2699 = vpop.f32.mrb[0].mxu0
        %v2700 = vadd.f32 %v2539, %v2699
        %v2701 = vpop.f32.mrb[0].mxu0
        %v2702 = vpop.f32.mrb[0].mxu0
        %v2703 = vadd.f32 %v2542, %v2702
        %v2704 = vpop.f32.mrb[0].mxu0
        %2705 = vmatprep.mubr.bf16.mxu0 %v1354
        %2706 = vmatmul.mubr.bf16.gmra.mrb[0].mxu0 %v1241
        %v2707 = vpop.f32.mrb[0].mxu0
        %v2708 = vadd.f32 %v2547, %v2707
        %v2709 = vpop.f32.mrb[0].mxu0
        %v2710 = vpop.f32.mrb[0].mxu0
        %v2711 = vadd.f32 %v2550, %v2710
        %v2712 = vpop.f32.mrb[0].mxu0
        %2713 = vmatprep.mubr.bf16.mxu0 %v1366
        %2714 = vmatmul.mubr.bf16.gmra.mrb[0].mxu0 %v1242
        %v2715 = vpop.f32.mrb[0].mxu0
        %v2716 = vadd.f32 %v2555, %v2715
        %v2717 = vpop.f32.mrb[0].mxu0
        %v2718 = vpop.f32.mrb[0].mxu0
        %v2719 = vadd.f32 %v2558, %v2718
        %v2720 = vpop.f32.mrb[0].mxu0
        %2721 = vmatprep.mubr.bf16.mxu0 %v1378
        %2722 = vmatmul.mubr.bf16.gmra.mrb[0].mxu0 %v1243
        %v2723 = vpop.f32.mrb[0].mxu0
        %v2724 = vadd.f32 %v2563, %v2723
        %v2725 = vpop.f32.mrb[0].mxu0
        %v2726 = vpop.f32.mrb[0].mxu0
        %v2727 = vadd.f32 %v2566, %v2726
        %v2728 = vpop.f32.mrb[0].mxu0
        %2729 = vmatprep.mubr.bf16.mxu0 %v1390
        %2730 = vmatmul.mubr.bf16.gmra.mrb[0].mxu0 %v1244
        %v2731 = vpop.f32.mrb[0].mxu0
        %v2732 = vadd.f32 %v2571, %v2731
        %v2733 = vpop.f32.mrb[0].mxu0
        %v2734 = vpop.f32.mrb[0].mxu0
        %v2735 = vadd.f32 %v2574, %v2734
        %v2736 = vpop.f32.mrb[0].mxu0
        %2737 = vmatprep.mubr.bf16.mxu0 %v1402
        %2738 = vmatmul.mubr.bf16.gmra.mrb[0].mxu0 %v1245
        %v2739 = vpop.f32.mrb[0].mxu0
        %v2740 = vadd.f32 %v2579, %v2739
        %v2741 = vpop.f32.mrb[0].mxu0
        %v2742 = vpop.f32.mrb[0].mxu0
        %v2743 = vadd.f32 %v2582, %v2742
        %v2744 = vpop.f32.mrb[0].mxu0
        %2745 = vmatprep.mubr.bf16.mxu0 %v1414
        %2746 = vmatmul.mubr.bf16.gmra.mrb[0].mxu0 %v1246
        %v2747 = vpop.f32.mrb[0].mxu0
        %v2748 = vadd.f32 %v2587, %v2747
        %v2749 = vpop.f32.mrb[0].mxu0
        %v2750 = vpop.f32.mrb[0].mxu0
        %v2751 = vadd.f32 %v2590, %v2750
        %v2752 = vpop.f32.mrb[0].mxu0
        %2753 = vmatprep.mubr.bf16.mxu0 %v1426
        %2754 = vmatmul.mubr.bf16.gmra.mrb[0].mxu0 %v1247
        %v2755 = vpop.f32.mrb[0].mxu0
        %v2756 = vadd.f32 %v2595, %v2755
        %v2757 = vpop.f32.mrb[0].mxu0
        %v2758 = vpop.f32.mrb[0].mxu0
        %v2759 = vadd.f32 %v2598, %v2758
        %v2760 = vpop.f32.mrb[0].mxu0
        %2761 = vmatprep.mubr.bf16.mxu0 %v1438
        %2762 = vmatmul.mubr.bf16.gmra.mrb[0].mxu0 %v1248
        %v2763 = vpop.f32.mrb[0].mxu0
        %v2764 = vadd.f32 %v2603, %v2763
        %v2765 = vpop.f32.mrb[0].mxu0
        %v2766 = vpop.f32.mrb[0].mxu0
        %v2767 = vadd.f32 %v2606, %v2766
        %v2768 = vpop.f32.mrb[0].mxu0
        %2769 = vmatprep.mubr.bf16.mxu0 %v1450
        %2770 = vmatmul.mubr.bf16.gmra.mrb[0].mxu0 %v1249
        %v2771 = vpop.f32.mrb[0].mxu0
        %v2772 = vadd.f32 %v2611, %v2771
        %v2773 = vpop.f32.mrb[0].mxu0
        %v2774 = vpop.f32.mrb[0].mxu0
        %v2775 = vadd.f32 %v2614, %v2774
        %v2776 = vpop.f32.mrb[0].mxu0
        %2777 = vmatprep.mubr.bf16.mxu0 %v1462
        %2778 = vmatmul.mubr.bf16.gmra.mrb[0].mxu0 %v1250
        %v2779 = vpop.f32.mrb[0].mxu0
        %v2780 = vadd.f32 %v2619, %v2779
        %v2781 = vpop.f32.mrb[0].mxu0
        %v2782 = vpop.f32.mrb[0].mxu0
        %v2783 = vadd.f32 %v2622, %v2782
        %v2784 = vpop.f32.mrb[0].mxu0
        %2785 = vmatprep.mubr.bf16.mxu0 %v1474
        %2786 = vmatmul.mubr.bf16.gmra.mrb[0].mxu0 %v1251
        %v2787 = vpop.f32.mrb[0].mxu0
        %v2788 = vadd.f32 %v2627, %v2787
        %v2789 = vpop.f32.mrb[0].mxu0
        %v2790 = vpop.f32.mrb[0].mxu0
        %v2791 = vadd.f32 %v2630, %v2790
        %v2792 = vpop.f32.mrb[0].mxu0
        %2793 = vmatprep.mubr.bf16.mxu0 %v1486
        %2794 = vmatmul.mubr.bf16.gmra.mrb[0].mxu0 %v1252
        %v2795 = vpop.f32.mrb[0].mxu0
        %v2796 = vadd.f32 %v2635, %v2795
        %v2797 = vpop.f32.mrb[0].mxu0
        %v2798 = vpop.f32.mrb[0].mxu0
        %v2799 = vadd.f32 %v2638, %v2798
        %v2800 = vpop.f32.mrb[0].mxu0
        %2801 = vmatprep.mubr.bf16.mxu0 %v1498
        %2802 = vmatmul.mubr.bf16.gmra.mrb[0].mxu0 %v1253
        %v2803 = vpop.f32.mrb[0].mxu0
        %v2804 = vadd.f32 %v2643, %v2803
        %v2805 = vpop.f32.mrb[0].mxu0
        %v2806 = vpop.f32.mrb[0].mxu0
        %v2807 = vadd.f32 %v2646, %v2806
        %v2808 = vpop.f32.mrb[0].mxu0
        %2809 = vmatprep.mubr.bf16.mxu0 %v1510
        %2810 = vmatmul.mubr.bf16.gmra.mrb[0].mxu0 %v1254
        %v2811 = vpop.f32.mrb[0].mxu0
        %v2812 = vadd.f32 %v2651, %v2811
        %v2813 = vpop.f32.mrb[0].mxu0
        %v2814 = vpop.f32.mrb[0].mxu0
        %v2815 = vadd.f32 %v2654, %v2814
        %v2816 = vpop.f32.mrb[0].mxu0
        %2817 = vdwg.mxu0
        %2818 = vmatprep.subr.bf16.mxu0 0
        %2819 = vmatpush1.bf16.msra.mxu0 %v2094
        %2820 = vmatprep.subr.bf16.mxu0 0
        %2821 = vmatpush1.bf16.msra.mxu0 %v2095
        %2822 = vmatprep.subr.bf16.mxu0 0
        %2823 = vmatpush1.bf16.msra.mxu0 %v2096
        %2824 = vmatprep.subr.bf16.mxu0 0
        %2825 = vmatpush1.bf16.msra.mxu0 %v2097
        %2826 = vmatprep.subr.bf16.mxu0 0
        %2827 = vmatpush1.bf16.msra.mxu0 %v2098
        %2828 = vmatprep.subr.bf16.mxu0 0
        %2829 = vmatpush1.bf16.msra.mxu0 %v2099
        %2830 = vmatprep.subr.bf16.mxu0 0
        %2831 = vmatpush1.bf16.msra.mxu0 %v2100
        %2832 = vmatprep.subr.bf16.mxu0 0
        %2833 = vmatpush1.bf16.msra.mxu0 %v2101
        %2834 = vmatprep.subr.bf16.mxu0 0
        %2835 = vmatpush1.bf16.msra.mxu0 0
        %2836 = vmatprep.subr.bf16.mxu0 0
        %2837 = vmatpush1.bf16.msra.mxu0 0
        %2838 = vmatprep.subr.bf16.mxu0 0
        %2839 = vmatpush1.bf16.msra.mxu0 0
        %2840 = vmatprep.subr.bf16.mxu0 0
        %2841 = vmatpush1.bf16.msra.mxu0 0
        %2842 = vmatprep.subr.bf16.mxu0 0
        %2843 = vmatpush1.bf16.msra.mxu0 0
        %2844 = vmatprep.subr.bf16.mxu0 0
        %2845 = vmatpush1.bf16.msra.mxu0 0
        %2846 = vmatprep.subr.bf16.mxu0 0
        %2847 = vmatpush1.bf16.msra.mxu0 0
        %2848 = vmatprep.subr.bf16.mxu0 0
        %2849 = vmatpush1.bf16.msra.mxu0 0
        %2850 = vmatprep.mubr.bf16.mxu0 0
        %2851 = vmatmul.mubr.bf16.gmra.mrb[0].mxu0 %v1529
        %v2852 = vpop.f32.mrb[0].mxu0
        %v2853 = vadd.f32 %v2692, %v2852
        %v2854 = vpop.f32.mrb[0].mxu0
        %v2855 = vpop.f32.mrb[0].mxu0
        %v2856 = vadd.f32 %v2695, %v2855
        %v2857 = vpop.f32.mrb[0].mxu0
        %2858 = vmatprep.mubr.bf16.mxu0 0
        %2859 = vmatmul.mubr.bf16.gmra.mrb[0].mxu0 %v1532
        %v2860 = vpop.f32.mrb[0].mxu0
        %v2861 = vadd.f32 %v2700, %v2860
        %v2862 = vpop.f32.mrb[0].mxu0
        %v2863 = vpop.f32.mrb[0].mxu0
        %v2864 = vadd.f32 %v2703, %v2863
        %v2865 = vpop.f32.mrb[0].mxu0
        %2866 = vmatprep.mubr.bf16.mxu0 0
        %2867 = vmatmul.mubr.bf16.gmra.mrb[0].mxu0 %v1535
        %v2868 = vpop.f32.mrb[0].mxu0
        %v2869 = vadd.f32 %v2708, %v2868
        %v2870 = vpop.f32.mrb[0].mxu0
        %v2871 = vpop.f32.mrb[0].mxu0
        %v2872 = vadd.f32 %v2711, %v2871
        %v2873 = vpop.f32.mrb[0].mxu0
        %2874 = vmatprep.mubr.bf16.mxu0 0
        %2875 = vmatmul.mubr.bf16.gmra.mrb[0].mxu0 %v1538
        %v2876 = vpop.f32.mrb[0].mxu0
        %v2877 = vadd.f32 %v2716, %v2876
        %v2878 = vpop.f32.mrb[0].mxu0
        %v2879 = vpop.f32.mrb[0].mxu0
        %v2880 = vadd.f32 %v2719, %v2879
        %v2881 = vpop.f32.mrb[0].mxu0
        %2882 = vmatprep.mubr.bf16.mxu0 0
        %2883 = vmatmul.mubr.bf16.gmra.mrb[0].mxu0 %v1541
        %v2884 = vpop.f32.mrb[0].mxu0
        %v2885 = vadd.f32 %v2724, %v2884
        %v2886 = vpop.f32.mrb[0].mxu0
        %v2887 = vpop.f32.mrb[0].mxu0
        %v2888 = vadd.f32 %v2727, %v2887
        %v2889 = vpop.f32.mrb[0].mxu0
        %2890 = vmatprep.mubr.bf16.mxu0 0
        %2891 = vmatmul.mubr.bf16.gmra.mrb[0].mxu0 %v1544
        %v2892 = vpop.f32.mrb[0].mxu0
        %v2893 = vadd.f32 %v2732, %v2892
        %v2894 = vpop.f32.mrb[0].mxu0
        %v2895 = vpop.f32.mrb[0].mxu0
        %v2896 = vadd.f32 %v2735, %v2895
        %v2897 = vpop.f32.mrb[0].mxu0
        %2898 = vmatprep.mubr.bf16.mxu0 0
        %2899 = vmatmul.mubr.bf16.gmra.mrb[0].mxu0 %v1547
        %v2900 = vpop.f32.mrb[0].mxu0
        %v2901 = vadd.f32 %v2740, %v2900
        %v2902 = vpop.f32.mrb[0].mxu0
        %v2903 = vpop.f32.mrb[0].mxu0
        %v2904 = vadd.f32 %v2743, %v2903
        %v2905 = vpop.f32.mrb[0].mxu0
        %2906 = vmatprep.mubr.bf16.mxu0 0
        %2907 = vmatmul.mubr.bf16.gmra.mrb[0].mxu0 %v1550
        %v2908 = vpop.f32.mrb[0].mxu0
        %v2909 = vadd.f32 %v2748, %v2908
        %v2910 = vpop.f32.mrb[0].mxu0
        %v2911 = vpop.f32.mrb[0].mxu0
        %v2912 = vadd.f32 %v2751, %v2911
        %v2913 = vpop.f32.mrb[0].mxu0
        %2914 = vmatprep.mubr.bf16.mxu0 0
        %2915 = vmatmul.mubr.bf16.gmra.mrb[0].mxu0 %v1553
        %v2916 = vpop.f32.mrb[0].mxu0
        %v2917 = vadd.f32 %v2756, %v2916
        %v2918 = vpop.f32.mrb[0].mxu0
        %v2919 = vpop.f32.mrb[0].mxu0
        %v2920 = vadd.f32 %v2759, %v2919
        %v2921 = vpop.f32.mrb[0].mxu0
        %2922 = vmatprep.mubr.bf16.mxu0 0
        %2923 = vmatmul.mubr.bf16.gmra.mrb[0].mxu0 %v1556
        %v2924 = vpop.f32.mrb[0].mxu0
        %v2925 = vadd.f32 %v2764, %v2924
        %v2926 = vpop.f32.mrb[0].mxu0
        %v2927 = vpop.f32.mrb[0].mxu0
        %v2928 = vadd.f32 %v2767, %v2927
        %v2929 = vpop.f32.mrb[0].mxu0
        %2930 = vmatprep.mubr.bf16.mxu0 0
        %2931 = vmatmul.mubr.bf16.gmra.mrb[0].mxu0 %v1559
        %v2932 = vpop.f32.mrb[0].mxu0
        %v2933 = vadd.f32 %v2772, %v2932
        %v2934 = vpop.f32.mrb[0].mxu0
        %v2935 = vpop.f32.mrb[0].mxu0
        %v2936 = vadd.f32 %v2775, %v2935
        %v2937 = vpop.f32.mrb[0].mxu0
        %2938 = vmatprep.mubr.bf16.mxu0 0
        %2939 = vmatmul.mubr.bf16.gmra.mrb[0].mxu0 %v1562
        %v2940 = vpop.f32.mrb[0].mxu0
        %v2941 = vadd.f32 %v2780, %v2940
        %v2942 = vpop.f32.mrb[0].mxu0
        %v2943 = vpop.f32.mrb[0].mxu0
        %v2944 = vadd.f32 %v2783, %v2943
        %v2945 = vpop.f32.mrb[0].mxu0
        %2946 = vmatprep.mubr.bf16.mxu0 0
        %2947 = vmatmul.mubr.bf16.gmra.mrb[0].mxu0 %v1565
        %v2948 = vpop.f32.mrb[0].mxu0
        %v2949 = vadd.f32 %v2788, %v2948
        %v2950 = vpop.f32.mrb[0].mxu0
        %v2951 = vpop.f32.mrb[0].mxu0
        %v2952 = vadd.f32 %v2791, %v2951
        %v2953 = vpop.f32.mrb[0].mxu0
        %2954 = vmatprep.mubr.bf16.mxu0 0
        %2955 = vmatmul.mubr.bf16.gmra.mrb[0].mxu0 %v1568
        %v2956 = vpop.f32.mrb[0].mxu0
        %v2957 = vadd.f32 %v2796, %v2956
        %v2958 = vpop.f32.mrb[0].mxu0
        %v2959 = vpop.f32.mrb[0].mxu0
        %v2960 = vadd.f32 %v2799, %v2959
        %v2961 = vpop.f32.mrb[0].mxu0
        %2962 = vmatprep.mubr.bf16.mxu0 0
        %2963 = vmatmul.mubr.bf16.gmra.mrb[0].mxu0 %v1571
        %v2964 = vpop.f32.mrb[0].mxu0
        %v2965 = vadd.f32 %v2804, %v2964
        %v2966 = vpop.f32.mrb[0].mxu0
        %v2967 = vpop.f32.mrb[0].mxu0
        %v2968 = vadd.f32 %v2807, %v2967
        %v2969 = vpop.f32.mrb[0].mxu0
        %2970 = vmatprep.mubr.bf16.mxu0 0
        %2971 = vmatmul.mubr.bf16.gmra.mrb[0].mxu0 %v1574
        %v2972 = vpop.f32.mrb[0].mxu0
        %v2973 = vadd.f32 %v2812, %v2972
        %v2974 = vpop.f32.mrb[0].mxu0
        %v2975 = vpop.f32.mrb[0].mxu0
        %v2976 = vadd.f32 %v2815, %v2975
        %v2977 = vpop.f32.mrb[0].mxu0
        %2978 = vdwg.mxu0
        %v2979 = vmax.f32 %v2853, 0.0
        %v2980 = vmax.f32 %v2856, 0.0
        %v2981 = vmax.f32 %v2861, 0.0
        %v2982 = vmax.f32 %v2864, 0.0
        %v2983 = vmax.f32 %v2869, 0.0
        %v2984 = vmax.f32 %v2872, 0.0
        %v2985 = vmax.f32 %v2877, 0.0
        %v2986 = vmax.f32 %v2880, 0.0
        %v2987 = vmax.f32 %v2885, 0.0
        %v2988 = vmax.f32 %v2888, 0.0
        %v2989 = vmax.f32 %v2893, 0.0
        %v2990 = vmax.f32 %v2896, 0.0
        %v2991 = vmax.f32 %v2901, 0.0
        %v2992 = vmax.f32 %v2904, 0.0
        %v2993 = vmax.f32 %v2909, 0.0
        %v2994 = vmax.f32 %v2912, 0.0
        %v2995 = vmax.f32 %v2917, 0.0
        %v2996 = vmax.f32 %v2920, 0.0
        %v2997 = vmax.f32 %v2925, 0.0
        %v2998 = vmax.f32 %v2928, 0.0
        %v2999 = vmax.f32 %v2933, 0.0
        %v3000 = vmax.f32 %v2936, 0.0
        %v3001 = vmax.f32 %v2941, 0.0
        %v3002 = vmax.f32 %v2944, 0.0
        %v3003 = vmax.f32 %v2949, 0.0
        %v3004 = vmax.f32 %v2952, 0.0
        %v3005 = vmax.f32 %v2957, 0.0
        %v3006 = vmax.f32 %v2960, 0.0
        %v3007 = vmax.f32 %v2965, 0.0
        %v3008 = vmax.f32 %v2968, 0.0
        %v3009 = vmax.f32 %v2973, 0.0
        %v3010 = vmax.f32 %v2976, 0.0
        %v3011 = vpack.c.bf16 %v2980, %v2979
        %v3012 = vpack.c.bf16 %v2982, %v2981
        %v3013 = vpack.c.bf16 %v2984, %v2983
        %v3014 = vpack.c.bf16 %v2986, %v2985
        %v3015 = vpack.c.bf16 %v2988, %v2987
        %v3016 = vpack.c.bf16 %v2990, %v2989
        %v3017 = vpack.c.bf16 %v2992, %v2991
        %v3018 = vpack.c.bf16 %v2994, %v2993
        %v3019 = vpack.c.bf16 %v2996, %v2995
        %v3020 = vpack.c.bf16 %v2998, %v2997
        %v3021 = vpack.c.bf16 %v3000, %v2999
        %v3022 = vpack.c.bf16 %v3002, %v3001
        %v3023 = vpack.c.bf16 %v3004, %v3003
        %v3024 = vpack.c.bf16 %v3006, %v3005
        %v3025 = vpack.c.bf16 %v3008, %v3007
        %v3026 = vpack.c.bf16 %v3010, %v3009
        %v3043 = vunpack.c.l.b16 %v3011
        %v3044 = vunpack.c.h.b16 %v3011
        %v3045 = vunpack.c.l.b16 %v3012
        %v3046 = vunpack.c.h.b16 %v3012
        %v3047 = vunpack.c.l.b16 %v3013
        %v3048 = vunpack.c.h.b16 %v3013
        %v3049 = vunpack.c.l.b16 %v3014
        %v3050 = vunpack.c.h.b16 %v3014
        %v3051 = vunpack.c.l.b16 %v3015
        %v3052 = vunpack.c.h.b16 %v3015
        %v3053 = vunpack.c.l.b16 %v3016
        %v3054 = vunpack.c.h.b16 %v3016
        %v3055 = vunpack.c.l.b16 %v3017
        %v3056 = vunpack.c.h.b16 %v3017
        %v3057 = vunpack.c.l.b16 %v3018
        %v3058 = vunpack.c.h.b16 %v3018
        %v3059 = vunpack.c.l.b16 %v3019
        %v3060 = vunpack.c.h.b16 %v3019
        %v3061 = vunpack.c.l.b16 %v3020
        %v3062 = vunpack.c.h.b16 %v3020
        %v3063 = vunpack.c.l.b16 %v3021
        %v3064 = vunpack.c.h.b16 %v3021
        %v3065 = vunpack.c.l.b16 %v3022
        %v3066 = vunpack.c.h.b16 %v3022
        %v3067 = vunpack.c.l.b16 %v3023
        %v3068 = vunpack.c.h.b16 %v3023
        %v3069 = vunpack.c.l.b16 %v3024
        %v3070 = vunpack.c.h.b16 %v3024
        %v3071 = vunpack.c.l.b16 %v3025
        %v3072 = vunpack.c.h.b16 %v3025
        %v3073 = vunpack.c.l.b16 %v3026
        %v3074 = vunpack.c.h.b16 %v3026
        %v3075 = vpack.c.b16 %v3043, %v3043
        %v3076 = vpack.c.b16 %v3044, %v3044
        %v3077 = vpack.c.b16 %v3045, %v3045
        %v3078 = vpack.c.b16 %v3046, %v3046
        %v3079 = vpack.c.b16 %v3047, %v3047
        %v3080 = vpack.c.b16 %v3048, %v3048
        %v3081 = vpack.c.b16 %v3049, %v3049
        %v3082 = vpack.c.b16 %v3050, %v3050
        %v3083 = vpack.c.b16 %v3051, %v3051
        %v3084 = vpack.c.b16 %v3052, %v3052
        %v3085 = vpack.c.b16 %v3053, %v3053
        %v3086 = vpack.c.b16 %v3054, %v3054
        %v3087 = vpack.c.b16 %v3055, %v3055
        %v3088 = vpack.c.b16 %v3056, %v3056
        %v3089 = vpack.c.b16 %v3057, %v3057
        %v3090 = vpack.c.b16 %v3058, %v3058
        %v3091 = vpack.c.b16 %v3059, %v3059
        %v3092 = vpack.c.b16 %v3060, %v3060
        %v3093 = vpack.c.b16 %v3061, %v3061
        %v3094 = vpack.c.b16 %v3062, %v3062
        %v3095 = vpack.c.b16 %v3063, %v3063
        %v3096 = vpack.c.b16 %v3064, %v3064
        %v3097 = vpack.c.b16 %v3065, %v3065
        %v3098 = vpack.c.b16 %v3066, %v3066
        %v3099 = vpack.c.b16 %v3067, %v3067
        %v3100 = vpack.c.b16 %v3068, %v3068
        %v3101 = vpack.c.b16 %v3069, %v3069
        %v3102 = vpack.c.b16 %v3070, %v3070
        %v3103 = vpack.c.b16 %v3071, %v3071
        %v3104 = vpack.c.b16 %v3072, %v3072
        %v3105 = vpack.c.b16 %v3073, %v3073
        %v3106 = vpack.c.b16 %v3074, %v3074
        %3139 = vst [vmem:[%s177] sm:$0xf] %v3075
        %3140 = vst [vmem:[%s177 + $0x4] sm:$0xf] %v3076
        %3141 = vst [vmem:[%s177 + $0x8] sm:$0xf] %v3077
        %3142 = vst [vmem:[%s177 + $0xc] sm:$0xf] %v3078
        %3143 = vst [vmem:[%s177 + $0x10] sm:$0xf] %v3079
        %3144 = vst [vmem:[%s177 + $0x14] sm:$0xf] %v3080
        %3145 = vst [vmem:[%s177 + $0x18] sm:$0xf] %v3081
        %3146 = vst [vmem:[%s177 + $0x1c] sm:$0xf] %v3082
        %3147 = vst [vmem:[%s177 + $0x20] sm:$0xf] %v3083
        %3148 = vst [vmem:[%s177 + $0x24] sm:$0xf] %v3084
        %3149 = vst [vmem:[%s177 + $0x28] sm:$0xf] %v3085
        %3150 = vst [vmem:[%s177 + $0x2c] sm:$0xf] %v3086
        %3151 = vst [vmem:[%s177 + $0x30] sm:$0xf] %v3087
        %3152 = vst [vmem:[%s177 + $0x34] sm:$0xf] %v3088
        %3153 = vst [vmem:[%s177 + $0x38] sm:$0xf] %v3089
        %3154 = vst [vmem:[%s177 + $0x3c] sm:$0xf] %v3090
        %3155 = vst [vmem:[%s177 + $0x40] sm:$0xf] %v3091
        %3156 = vst [vmem:[%s177 + $0x44] sm:$0xf] %v3092
        %3157 = vst [vmem:[%s177 + $0x48] sm:$0xf] %v3093
        %3158 = vst [vmem:[%s177 + $0x4c] sm:$0xf] %v3094
        %3159 = vst [vmem:[%s177 + $0x50] sm:$0xf] %v3095
        %3160 = vst [vmem:[%s177 + $0x54] sm:$0xf] %v3096
        %3161 = vst [vmem:[%s177 + $0x58] sm:$0xf] %v3097
        %3162 = vst [vmem:[%s177 + $0x5c] sm:$0xf] %v3098
        %3163 = vst [vmem:[%s177 + $0x60] sm:$0xf] %v3099
        %3164 = vst [vmem:[%s177 + $0x64] sm:$0xf] %v3100
        %3165 = vst [vmem:[%s177 + $0x68] sm:$0xf] %v3101
        %3166 = vst [vmem:[%s177 + $0x6c] sm:$0xf] %v3102
        %3167 = vst [vmem:[%s177 + $0x70] sm:$0xf] %v3103
        %3168 = vst [vmem:[%s177 + $0x74] sm:$0xf] %v3104
        %3169 = vst [vmem:[%s177 + $0x78] sm:$0xf] %v3105
        %3170 = vst [vmem:[%s177 + $0x7c] sm:$0xf] %v3106
        %s3171 = sand.u32 %s107, 1
        %s3172 = scalar_lea.sflag [#allocation3], %s3171
        %s3173 = sand.u32 %s107, 1
        %s3174 = smul.addr %s3173, 128
        %s3175 = scalar_lea.vmem [#allocation2], %s3174
        // Predicated region
        $region33: #{tpu_custom_call.1} parent=31 // pred_check
          %p3176 = pneg %p117
        $region34: #{tpu_custom_call.1} parent=31 // pred_check_branch
          %3178 = sbr.rel (%p3176) target = $region36
        $region35: #{tpu_custom_call.1} parent=31 // pred_region
          %s3179 = smul.u32 16, %s22
          %s3181 = ssub.s32 2048, 2048
          %3182 = vsyncadd %s3172, %s3181
          %s3183 = smul.addr %s3179, 2
          %s3184 = smul.addr %s21, 32
          %s3185 = sadd.s32 %s3183, %s3184
          %s3186 = smul.addr %s3185, 64
          %s3187 = scalar_lea.hbm %s3, %s3186
          %s3188 = sshll.u32 %s3175, 4
          %s3189 = int_to_ptr.vmem [resolvable:$true] %s3188
          %3194 = dma.vmem_to_hbm [thread:$0]  %s3189, 2048, %s3187, %s3172, 64, 64, 4
        $region36: #{tpu_custom_call.1} parent=31 // pred_fallthru
          _
      $region32: #{tpu_custom_call.1} parent=5 // pred_fallthru
        _
      %p3195 = scmp.le.s32.totalorder 2, %s12
      // Predicated region
      $region37: #{tpu_custom_call.1} parent=5 // pred_check
        %p3196 = pneg %p3195
      $region38: #{tpu_custom_call.1} parent=5 // pred_check_branch
        %3198 = sbr.rel (%p3196) target = $region40
      $region39: #{tpu_custom_call.1} parent=5 // pred_region
        %s3199 = ssub.s32 %s12, 2
        // Predicated region
        $region41: #{tpu_custom_call.1} parent=39 // pred_check
          %p3200 = pneg %p123
        $region42: #{tpu_custom_call.1} parent=39 // pred_check_branch
          %3202 = sbr.rel (%p3200) target = $region44
        $region43: #{tpu_custom_call.1} parent=39 // pred_region
          %s3203 = sand.u32 %s108, 1
          %s3204 = scalar_lea.sflag [#allocation3], %s3203
          %s3205 = sand.u32 %s108, 1
          %s3206 = smul.addr %s3205, 128
          %s3207 = scalar_lea.vmem [#allocation2], %s3206
          %3208 = dma.done %s3204, 2048
        $region44: #{tpu_custom_call.1} parent=39 // pred_fallthru
          _
      $region40: #{tpu_custom_call.1} parent=5 // pred_fallthru
        _
    $region6: #{tpu_custom_call.1} parent=1 // loop_footer
      %s16 = sadd.s32 1, %s12
    $region7: #{tpu_custom_call.1} parent=1 // loop_footer_branch
      %11 = sbr.rel target = $region3
    $region8: #{tpu_custom_call.1} parent=1 // loop_exit
      _
    %3209 = vsyncpa [#allocation3], 1
    %s3210 = scalar_lea.sflag [#allocation3], 1
    %3211 = vsyncpa %s3210, 1

</llo_original>
